<compile_context>
chip_gen: v5e
topology: v5e:2x2
jax: 0.10.0
libtpu: 0.0.40
codegen_flags: <defaults>
</compile_context>

<pallas_src>
import jax
import jax.numpy as jnp
from jax.experimental import pallas as pl
from jax.experimental.pallas import tpu as pltpu


def head_kernel(x_ref, w1_ref, b1_ref, w2_ref, b2_ref, o_ref):
    # x_ref : (TB, HW, C)   NHWC-flattened feature-map tile (f32)
    # w1_ref: (C, 1024)     classifier Linear weight, (in, out), bf16,
    #                       pre-scaled by 1/HW (folds the average-pool divide)
    # b1_ref: (1, 1024)     f32
    # w2_ref: (C, NC_PAD)   top_layer Linear weight, (in, out), bf16, zero-padded N
    # b2_ref: (1, NC_PAD)   f32, zero-padded
    # o_ref : (TB, NC_PAD)  f32 logits (padded columns sliced off by the wrapper)

    # features['avgpool'] + out.view(B, -1): sum over spatial (sublane axis);
    # the 1/HW scale lives in w1, and the (TB, C) result is lane-major in C.
    pooled = jnp.sum(x_ref[...].astype(jnp.float32), axis=1)          # (TB, C)

    # classifier: Dropout(0.5) [identity, inference] -> Linear(1024,1024) -> ReLU
    h = jnp.dot(pooled.astype(jnp.bfloat16), w1_ref[...],
                preferred_element_type=jnp.float32) + b1_ref[...]
    h = jnp.maximum(h, 0.0)

    # top_layer: Linear(1024, num_classes) (N padded to a lane-dense 128 multiple)
    o_ref[...] = jnp.dot(h.astype(jnp.bfloat16), w2_ref[...],
                         preferred_element_type=jnp.float32) + b2_ref[...]


def _round_up(x, m):
    return ((x + m - 1) // m) * m


def _vmem_budget_bytes():
    """Returns (tiling_budget, physical_capacity) in bytes.
    ~96 MiB budget on v5e/v6e (128 MiB physical VMEM); ~45 MiB on v7x
    (64 MiB physical) or when the hardware query is unavailable."""
    capacity = 64 * 1024 * 1024
    try:
        info = pltpu.get_tpu_info()
        cap = getattr(info, "vmem_capacity_bytes", None)
        if cap:
            capacity = int(cap)
    except Exception:
        pass
    if capacity >= 128 * 1024 * 1024:
        return 96 * 1024 * 1024, capacity          # v5e / v6e
    return 45 * 1024 * 1024, capacity              # v7x (or unknown: be safe)


def _pick_batch_tile(B, bytes_per_row, resident_bytes, vmem_budget):
    """Largest batch tile (multiple of 8, or the whole small batch) whose
    DOUBLE-buffered activation+output tiles plus the SINGLE-buffered resident
    weights fit `vmem_budget`. `bytes_per_row` must already be (8,128)
    padding-aware. When B >= 16, cap the tile so there are >= 4 grid steps
    (>= 2 per TensorCore on v7x megacore) for pipelining / core sharding."""
    avail = vmem_budget - resident_bytes
    cap = int(avail // (2 * bytes_per_row)) if avail > 0 else 0
    # tb = 8 always fits for GoogLeNet-sized feature maps (8 rows ~ 2 MiB).
    cap = max(8, (cap // 8) * 8)
    if B < 16:
        return B if B <= cap else 8
    cap = min(cap, max(8, _round_up(pl.cdiv(B, 4), 8)))   # >= ~4 grid steps
    return min(cap, 512)


def googlenet_head(x_nchw, w1, b1, w2, b2):
    """x_nchw: (B, 1024, H, W) float32, NCHW (PyTorch convention).
    w1: (1024, 1024)        torch Linear weight (out, in) -> classifier
    b1: (1024,)
    w2: (num_classes, 1024) torch Linear weight (out, in) -> top_layer
    b2: (num_classes,)
    returns: (B, num_classes) float32 logits
    """
    B, C, H, W = x_nchw.shape
    assert C == 1024, "GoogLeNet classifier expects 1024 channels after 'b5'"
    num_classes = w2.shape[0]
    HW = H * W
    HW_PAD = _round_up(HW, 8)
    NC_PAD = _round_up(num_classes, 128)

    # Activations as (B, HW, C): pool over sublanes, keep C in lanes for the
    # MXU LHS. (Upstream XLA conv stacks are typically NHWC physically, so
    # this is layout plumbing, not extra compute.)
    x3 = jnp.transpose(x_nchw, (0, 2, 3, 1)).reshape(B, HW, C)

    # One-time weight prep: pre-transposed to (in, out), bf16 for HBM/VMEM,
    # 1/HW pooling scale folded into w1, top_layer padded to a lane-dense N.
    w1t = (jnp.transpose(w1).astype(jnp.float32) * (1.0 / HW)).astype(jnp.bfloat16)
    b1r = b1.reshape(1, -1).astype(jnp.float32)
    w2t = jnp.transpose(w2).astype(jnp.bfloat16)
    b2r = b2.reshape(1, -1).astype(jnp.float32)
    if NC_PAD != num_classes:
        w2t = jnp.pad(w2t, ((0, 0), (0, NC_PAD - num_classes)))
        b2r = jnp.pad(b2r, ((0, 0), (0, NC_PAD - num_classes)))

    # Padding-aware VMEM accounting ((8,128) VMEM tiles; bf16 packs 2/word).
    resident_bytes = (C * 1024 * 2              # w1t bf16 (exact multiple of tiles)
                      + C * NC_PAD * 2          # w2t bf16
                      + 8 * 1024 * 4            # b1r (1,1024) pads to (8,1024)
                      + 8 * NC_PAD * 4)         # b2r
    x_row_bytes = HW_PAD * C * 4                # one batch row of the x tile
    out_row_bytes = NC_PAD * 4                  # one batch row of the out tile
    budget, vmem_capacity = _vmem_budget_bytes()

    tb = _pick_batch_tile(B, x_row_bytes + out_row_bytes, resident_bytes, budget)
    grid = (pl.cdiv(B, tb),)

    x_tile_bytes = tb * x_row_bytes
    out_tile_bytes = _round_up(tb, 8) * NC_PAD * 4
    per_step = 2 * (x_tile_bytes + out_tile_bytes) + resident_bytes
    vmem_limit = int(min(max(per_step + (8 << 20), 32 << 20),
                         vmem_capacity - (8 << 20)))

    flops = 2 * B * C * (1024 + NC_PAD) + B * HW * C
    bytes_accessed = (B * HW * C * 4
                      + C * 1024 * 2 + C * NC_PAD * 2
                      + (1024 + NC_PAD) * 4
                      + B * NC_PAD * 4)

    out_padded = pl.pallas_call(
        head_kernel,
        out_shape=jax.ShapeDtypeStruct((B, NC_PAD), jnp.float32),
        grid=grid,
        in_specs=[
            # Streamed (double-buffered) activation tiles.
            pl.BlockSpec((tb, HW, C), lambda i: (i, 0, 0)),
            # VMEM-resident operands: constant index_map -> single-buffered.
            pl.BlockSpec((C, 1024), lambda i: (0, 0),
                         pipeline_mode=pl.Buffered(1)),
            pl.BlockSpec((1, 1024), lambda i: (0, 0),
                         pipeline_mode=pl.Buffered(1)),
            pl.BlockSpec((C, NC_PAD), lambda i: (0, 0),
                         pipeline_mode=pl.Buffered(1)),
            pl.BlockSpec((1, NC_PAD), lambda i: (0, 0),
                         pipeline_mode=pl.Buffered(1)),
        ],
        out_specs=pl.BlockSpec((tb, NC_PAD), lambda i: (i, 0)),
        compiler_params=pltpu.CompilerParams(
            dimension_semantics=("parallel",),   # batch axis shards over TCs
            vmem_limit_bytes=vmem_limit,
        ),
        cost_estimate=pl.CostEstimate(
            flops=flops, transcendentals=0, bytes_accessed=bytes_accessed),
    )(x3, w1t, b1r, w2t, b2r)

    return out_padded[:, :num_classes]


if __name__ == "__main__":
    # Classifier input width (1024) is fixed by Linear(1024, 1024); batch,
    # spatial and num_classes kept small.
    B, C, H, W = 2, 1024, 4, 4
    NUM_CLASSES = 16

    key = jax.random.PRNGKey(0)
    kx, kw1, kw2 = jax.random.split(key, 3)

    # Deterministic parameter init mirroring _initialize_weights():
    #   nn.Linear -> weight ~ N(0, 0.01), bias = 0
    x = jax.random.normal(kx, (B, C, H, W), dtype=jnp.float32)
    w1 = 0.01 * jax.random.normal(kw1, (1024, 1024), dtype=jnp.float32)
    b1 = jnp.zeros((1024,), dtype=jnp.float32)
    w2 = 0.01 * jax.random.normal(kw2, (NUM_CLASSES, 1024), dtype=jnp.float32)
    b2 = jnp.zeros((NUM_CLASSES,), dtype=jnp.float32)

    out = googlenet_head(x, w1, b1, w2, b2)
    jax.block_until_ready(out)
    assert out.shape == (B, NUM_CLASSES)

    # Pure-JAX reference (kernel is mixed bf16/f32 -> loose tolerance).
    pooled_ref = x.reshape(B, C, -1).mean(axis=-1)
    hidden_ref = jnp.maximum(pooled_ref @ w1.T + b1, 0.0)
    ref = hidden_ref @ w2.T + b2
    assert jnp.allclose(out, ref, rtol=5e-2, atol=5e-3), \
        float(jnp.max(jnp.abs(out - ref)))

    print("KERNEL_OK")
</pallas_src>

<mosaic_0001>
module attributes {stable_mosaic.version = 11 : i64} {
  func.func @head_kernel(%arg0: i32, %arg1: memref<2x16x1024xf32, #tpu.memory_space<vmem>>, %arg2: memref<1024x1024xbf16, #tpu.memory_space<vmem>>, %arg3: memref<1x1024xf32, #tpu.memory_space<vmem>>, %arg4: memref<1024x128xbf16, #tpu.memory_space<vmem>>, %arg5: memref<1x128xf32, #tpu.memory_space<vmem>>, %arg6: memref<2x128xf32, #tpu.memory_space<vmem>>) attributes {dimension_semantics = [#tpu.dimension_semantics<parallel>], iteration_bounds = array<i64: 1>, scalar_prefetch = 0 : i64, scratch_operands = 0 : i64, tpu.core_type = #tpu.core_type<tc>, window_params = [{transform_indices = @transform_0, window_bounds = array<i64: 2, 16, 1024>}, {pipeline_mode = #tpu.pipeline_mode<synchronous>, transform_indices = @transform_1, window_bounds = array<i64: 1024, 1024>}, {pipeline_mode = #tpu.pipeline_mode<synchronous>, transform_indices = @transform_2, window_bounds = array<i64: 1, 1024>}, {pipeline_mode = #tpu.pipeline_mode<synchronous>, transform_indices = @transform_3, window_bounds = array<i64: 1024, 128>}, {pipeline_mode = #tpu.pipeline_mode<synchronous>, transform_indices = @transform_4, window_bounds = array<i64: 1, 128>}, {transform_indices = @transform_5, window_bounds = array<i64: 2, 128>}]} {
    %c0 = arith.constant 0 : index
    %c0_0 = arith.constant 0 : index
    %c0_1 = arith.constant 0 : index
    %0 = vector.load %arg1[%c0, %c0_0, %c0_1] : memref<2x16x1024xf32, #tpu.memory_space<vmem>>, vector<2x16x1024xf32>
    %cst = arith.constant dense<0.000000e+00> : vector<2x1024xf32>
    %1 = vector.multi_reduction <add>, %0, %cst [1] : vector<2x16x1024xf32> to vector<2x1024xf32>
    %2 = arith.truncf %1 : vector<2x1024xf32> to vector<2x1024xbf16>
    %c0_2 = arith.constant 0 : index
    %c0_3 = arith.constant 0 : index
    %3 = vector.load %arg2[%c0_2, %c0_3] : memref<1024x1024xbf16, #tpu.memory_space<vmem>>, vector<1024x1024xbf16>
    %cst_4 = arith.constant dense<0.000000e+00> : vector<2x1024xf32>
    %4 = tpu.matmul %2, %3, %cst_4 {dimension_numbers = #tpu.dot_dimension_numbers<[1], [0], [0], [1], [0, 0, 1, 1], [], []>} : vector<2x1024xbf16>, vector<1024x1024xbf16>, vector<2x1024xf32> -> vector<2x1024xf32>
    %c0_5 = arith.constant 0 : index
    %c0_6 = arith.constant 0 : index
    %5 = vector.load %arg3[%c0_5, %c0_6] : memref<1x1024xf32, #tpu.memory_space<vmem>>, vector<1x1024xf32>
    %6 = vector.broadcast %5 : vector<1x1024xf32> to vector<2x1024xf32>
    %7 = arith.addf %4, %6 : vector<2x1024xf32>
    %cst_7 = arith.constant 0.000000e+00 : f32
    %8 = vector.broadcast %cst_7 : f32 to vector<2x1024xf32>
    %9 = arith.maximumf %7, %8 : vector<2x1024xf32>
    %10 = arith.truncf %9 : vector<2x1024xf32> to vector<2x1024xbf16>
    %c0_8 = arith.constant 0 : index
    %c0_9 = arith.constant 0 : index
    %11 = vector.load %arg4[%c0_8, %c0_9] : memref<1024x128xbf16, #tpu.memory_space<vmem>>, vector<1024x128xbf16>
    %cst_10 = arith.constant dense<0.000000e+00> : vector<2x128xf32>
    %12 = tpu.matmul %10, %11, %cst_10 {dimension_numbers = #tpu.dot_dimension_numbers<[1], [0], [0], [1], [0, 0, 1, 1], [], []>} : vector<2x1024xbf16>, vector<1024x128xbf16>, vector<2x128xf32> -> vector<2x128xf32>
    %c0_11 = arith.constant 0 : index
    %c0_12 = arith.constant 0 : index
    %13 = vector.load %arg5[%c0_11, %c0_12] : memref<1x128xf32, #tpu.memory_space<vmem>>, vector<1x128xf32>
    %14 = vector.broadcast %13 : vector<1x128xf32> to vector<2x128xf32>
    %15 = arith.addf %12, %14 : vector<2x128xf32>
    %c0_13 = arith.constant 0 : index
    %c0_14 = arith.constant 0 : index
    %16 = vector.load %arg6[%c0_13, %c0_14] : memref<2x128xf32, #tpu.memory_space<vmem>>, vector<2x128xf32>
    tpu.vector_store %arg6[%c0_13, %c0_14], %15 {strides = array<i32>} : memref<2x128xf32, #tpu.memory_space<vmem>>, vector<2x128xf32>,
    return
  }
  func.func @transform_0(%arg0: i32) -> (i32, i32, i32) {
    %c0_i32 = arith.constant 0 : i32
    %c0_i32_0 = arith.constant 0 : i32
    %c0_i32_1 = arith.constant 0 : i32
    return %arg0, %c0_i32, %c0_i32_0 : i32, i32, i32
  }
  func.func @transform_1(%arg0: i32) -> (i32, i32) {
    %c0_i32 = arith.constant 0 : i32
    %c0_i32_0 = arith.constant 0 : i32
    %c0_i32_1 = arith.constant 0 : i32
    return %c0_i32, %c0_i32_0 : i32, i32
  }
  func.func @transform_2(%arg0: i32) -> (i32, i32) {
    %c0_i32 = arith.constant 0 : i32
    %c0_i32_0 = arith.constant 0 : i32
    %c0_i32_1 = arith.constant 0 : i32
    return %c0_i32, %c0_i32_0 : i32, i32
  }
  func.func @transform_3(%arg0: i32) -> (i32, i32) {
    %c0_i32 = arith.constant 0 : i32
    %c0_i32_0 = arith.constant 0 : i32
    %c0_i32_1 = arith.constant 0 : i32
    return %c0_i32, %c0_i32_0 : i32, i32
  }
  func.func @transform_4(%arg0: i32) -> (i32, i32) {
    %c0_i32 = arith.constant 0 : i32
    %c0_i32_0 = arith.constant 0 : i32
    %c0_i32_1 = arith.constant 0 : i32
    return %c0_i32, %c0_i32_0 : i32, i32
  }
  func.func @transform_5(%arg0: i32) -> (i32, i32) {
    %c0_i32 = arith.constant 0 : i32
    %c0_i32_0 = arith.constant 0 : i32
    return %arg0, %c0_i32 : i32, i32
  }
}

</mosaic_0001>

<llo_original>
// kernel: tpu_custom_call.1
$region0: #{tpu_custom_call.1}
  #allocation0 [shape = 'u32[]', space=smem, size = 0x4, offset = 0x4, fixed_abs, tag = 'smem constant byte address 0x4 - core index']
  #allocation1 [shape = 'u32[72,128]{1,0:T(1,128)}', space=vmem, size = 0x9000, scoped, tag = 'internal scratch']
  %s0 = inlined_call_operand.hbm [shape: f32[2,16,1024], index: 0, kind: input, shape index: {}]
  %s1 = inlined_call_operand.hbm [shape: bf16[1024,1024], index: 1, kind: input, shape index: {}]
  %s2 = inlined_call_operand.hbm [shape: f32[1,1024], index: 2, kind: input, shape index: {}]
  %s3 = inlined_call_operand.hbm [shape: bf16[1024,128], index: 3, kind: input, shape index: {}]
  %s4 = inlined_call_operand.hbm [shape: f32[1,128], index: 4, kind: input, shape index: {}]
  %s5 = inlined_call_operand.hbm [shape: f32[2,128], index: 5, kind: output, shape index: {}]
  %s6 = sld [smem:[#allocation0]]
  $region50: #{tpu_custom_call.1} parent=0
    _
  %s8 = ssub.s32 1, %s6
  %s9 = scalar_select 0, %s8, %s6
  $region1: #{tpu_custom_call.1} parent=0
    #allocation2 [shape = 'u8[131072]{0}', space=vmem, size = 0x20000, scoped, tag = 'input window, operand 0, single buffered']
    #allocation3 [shape = 's32[1]{0}', space=sflag, size = 0x4, scoped, tag = 'scoped memory for tpu_custom_call.1']
    #allocation4 [shape = 's32[1]{0}', space=sflag, size = 0x4, scoped, tag = 'scoped memory for tpu_custom_call.1']
    #allocation5 [shape = 'u8[2097152]{0}', space=vmem, size = 0x200000, scoped, tag = 'input window, operand 1, single buffered']
    #allocation6 [shape = 's32[1]{0}', space=sflag, size = 0x4, scoped, tag = 'scoped memory for tpu_custom_call.1']
    #allocation7 [shape = 'u8[4096]{0}', space=vmem, size = 0x1000, scoped, tag = 'input window, operand 2, single buffered']
    #allocation8 [shape = 'u8[262144]{0}', space=vmem, size = 0x40000, scoped, tag = 'input window, operand 3, single buffered']
    #allocation9 [shape = 's32[1]{0}', space=sflag, size = 0x4, scoped, tag = 'scoped memory for tpu_custom_call.1']
    #allocation10 [shape = 'u8[512]{0}', space=vmem, size = 0x400, scoped, tag = 'input window, operand 4, single buffered']
    #allocation11 [shape = 'u8[1024]{0}', space=vmem, size = 0x400, scoped, tag = 'output window, operand 0, single buffered']
    %10 = vsyncpa [#allocation3], 0
    %11 = vsyncpa [#allocation6], 0
    %12 = vsyncpa [#allocation9], 0
    %13 = vsyncpa [#allocation4], 0
    // Predicated region
    $region2: #{tpu_custom_call.1} parent=1 // pred_check
      _
    $region3: #{tpu_custom_call.1} parent=1 // pred_check_branch
      %15 = sbr.rel (0) target = $region5
    $region4: #{tpu_custom_call.1} parent=1 // pred_region
      %17 = vsyncadd [#allocation3], 0
      %s18 = sshll.u32 %s0, 4
      %s19 = int_to_ptr.hbm [resolvable:$true] %s18
      %s20 = sshll.u32 [#allocation2], 4
      %s21 = int_to_ptr.vmem [resolvable:$true] %s20
      %26 = dma.hbm_to_vmem [thread:$0]  %s19, 4096, %s21, [#allocation3], 1024, 1024, 64
    $region5: #{tpu_custom_call.1} parent=1 // pred_fallthru
      _
    // Predicated region
    $region6: #{tpu_custom_call.1} parent=1 // pred_check
      _
    $region7: #{tpu_custom_call.1} parent=1 // pred_check_branch
      %28 = sbr.rel (0) target = $region9
    $region8: #{tpu_custom_call.1} parent=1 // pred_region
      %30 = vsyncadd [#allocation6], 0
      %s31 = sshll.u32 %s1, 4
      %s32 = int_to_ptr.hbm [resolvable:$true] %s31
      %s33 = sshll.u32 [#allocation5], 4
      %s34 = int_to_ptr.vmem [resolvable:$true] %s33
      %39 = dma.hbm_to_vmem [thread:$0]  %s32, 65536, %s34, [#allocation6], 512, 512, 32
    $region9: #{tpu_custom_call.1} parent=1 // pred_fallthru
      _
    // Predicated region
    $region10: #{tpu_custom_call.1} parent=1 // pred_check
      _
    $region11: #{tpu_custom_call.1} parent=1 // pred_check_branch
      %41 = sbr.rel (0) target = $region13
    $region12: #{tpu_custom_call.1} parent=1 // pred_region
      %43 = vsyncadd [#allocation6], 0
      %s45 = sshll.u32 %s2, 4
      %s46 = int_to_ptr.hbm [resolvable:$true] %s45
      %s47 = sshll.u32 [#allocation7], 4
      %s48 = int_to_ptr.vmem [resolvable:$true] %s47
      %50 = dma.hbm_to_vmem [thread:$0]  %s46, 128, %s48, [#allocation6]
    $region13: #{tpu_custom_call.1} parent=1 // pred_fallthru
      _
    // Predicated region
    $region14: #{tpu_custom_call.1} parent=1 // pred_check
      _
    $region15: #{tpu_custom_call.1} parent=1 // pred_check_branch
      %52 = sbr.rel (0) target = $region17
    $region16: #{tpu_custom_call.1} parent=1 // pred_region
      %54 = vsyncadd [#allocation9], 0
      %s55 = sshll.u32 %s3, 4
      %s56 = int_to_ptr.hbm [resolvable:$true] %s55
      %s57 = sshll.u32 [#allocation8], 4
      %s58 = int_to_ptr.vmem [resolvable:$true] %s57
      %63 = dma.hbm_to_vmem [thread:$0]  %s56, 8192, %s58, [#allocation9], 64, 64, 4
    $region17: #{tpu_custom_call.1} parent=1 // pred_fallthru
      _
    // Predicated region
    $region18: #{tpu_custom_call.1} parent=1 // pred_check
      _
    $region19: #{tpu_custom_call.1} parent=1 // pred_check_branch
      %65 = sbr.rel (0) target = $region21
    $region20: #{tpu_custom_call.1} parent=1 // pred_region
      %67 = vsyncadd [#allocation9], 0
      %s69 = sshll.u32 %s4, 4
      %s70 = int_to_ptr.hbm [resolvable:$true] %s69
      %s71 = sshll.u32 [#allocation10], 4
      %s72 = int_to_ptr.vmem [resolvable:$true] %s71
      %74 = dma.hbm_to_vmem [thread:$0]  %s70, 16, %s72, [#allocation9]
    $region21: #{tpu_custom_call.1} parent=1 // pred_fallthru
      _
    // Predicated region
    $region22: #{tpu_custom_call.1} parent=1 // pred_check
      _
    $region23: #{tpu_custom_call.1} parent=1 // pred_check_branch
      %76 = sbr.rel (0) target = $region25
    $region24: #{tpu_custom_call.1} parent=1 // pred_region
      %78 = dma.done [#allocation3], 4096
    $region25: #{tpu_custom_call.1} parent=1 // pred_fallthru
      _
    // Predicated region
    $region26: #{tpu_custom_call.1} parent=1 // pred_check
      _
    $region27: #{tpu_custom_call.1} parent=1 // pred_check_branch
      %80 = sbr.rel (0) target = $region29
    $region28: #{tpu_custom_call.1} parent=1 // pred_region
      %82 = dma.done [#allocation6], 65536
    $region29: #{tpu_custom_call.1} parent=1 // pred_fallthru
      _
    // Predicated region
    $region30: #{tpu_custom_call.1} parent=1 // pred_check
      _
    $region31: #{tpu_custom_call.1} parent=1 // pred_check_branch
      %84 = sbr.rel (0) target = $region33
    $region32: #{tpu_custom_call.1} parent=1 // pred_region
      %86 = dma.done [#allocation6], 128
    $region33: #{tpu_custom_call.1} parent=1 // pred_fallthru
      _
    // Predicated region
    $region34: #{tpu_custom_call.1} parent=1 // pred_check
      _
    $region35: #{tpu_custom_call.1} parent=1 // pred_check_branch
      %88 = sbr.rel (0) target = $region37
    $region36: #{tpu_custom_call.1} parent=1 // pred_region
      %90 = dma.done [#allocation9], 8192
    $region37: #{tpu_custom_call.1} parent=1 // pred_fallthru
      _
    // Predicated region
    $region38: #{tpu_custom_call.1} parent=1 // pred_check
      _
    $region39: #{tpu_custom_call.1} parent=1 // pred_check_branch
      %92 = sbr.rel (0) target = $region41
    $region40: #{tpu_custom_call.1} parent=1 // pred_region
      %94 = dma.done [#allocation9], 16
    $region41: #{tpu_custom_call.1} parent=1 // pred_fallthru
      _
    %v95 = vld [vmem:[#allocation2] sm:$0xff]
    %v96 = vld [vmem:[#allocation2 + $0x8] sm:$0xff]
    %v97 = vld [vmem:[#allocation2 + $0x10] sm:$0xff]
    %v98 = vld [vmem:[#allocation2 + $0x18] sm:$0xff]
    %v99 = vld [vmem:[#allocation2 + $0x20] sm:$0xff]
    %v100 = vld [vmem:[#allocation2 + $0x28] sm:$0xff]
    %v101 = vld [vmem:[#allocation2 + $0x30] sm:$0xff]
    %v102 = vld [vmem:[#allocation2 + $0x38] sm:$0xff]
    %v103 = vld [vmem:[#allocation2 + $0x40] sm:$0xff]
    %v104 = vld [vmem:[#allocation2 + $0x48] sm:$0xff]
    %v105 = vld [vmem:[#allocation2 + $0x50] sm:$0xff]
    %v106 = vld [vmem:[#allocation2 + $0x58] sm:$0xff]
    %v107 = vld [vmem:[#allocation2 + $0x60] sm:$0xff]
    %v108 = vld [vmem:[#allocation2 + $0x68] sm:$0xff]
    %v109 = vld [vmem:[#allocation2 + $0x70] sm:$0xff]
    %v110 = vld [vmem:[#allocation2 + $0x78] sm:$0xff]
    %v111 = vld [vmem:[#allocation2 + $0x80] sm:$0xff]
    %v112 = vld [vmem:[#allocation2 + $0x88] sm:$0xff]
    %v113 = vld [vmem:[#allocation2 + $0x90] sm:$0xff]
    %v114 = vld [vmem:[#allocation2 + $0x98] sm:$0xff]
    %v115 = vld [vmem:[#allocation2 + $0xa0] sm:$0xff]
    %v116 = vld [vmem:[#allocation2 + $0xa8] sm:$0xff]
    %v117 = vld [vmem:[#allocation2 + $0xb0] sm:$0xff]
    %v118 = vld [vmem:[#allocation2 + $0xb8] sm:$0xff]
    %v119 = vld [vmem:[#allocation2 + $0xc0] sm:$0xff]
    %v120 = vld [vmem:[#allocation2 + $0xc8] sm:$0xff]
    %v121 = vld [vmem:[#allocation2 + $0xd0] sm:$0xff]
    %v122 = vld [vmem:[#allocation2 + $0xd8] sm:$0xff]
    %v123 = vld [vmem:[#allocation2 + $0xe0] sm:$0xff]
    %v124 = vld [vmem:[#allocation2 + $0xe8] sm:$0xff]
    %v125 = vld [vmem:[#allocation2 + $0xf0] sm:$0xff]
    %v126 = vld [vmem:[#allocation2 + $0xf8] sm:$0xff]
    %v127 = vadd.f32 %v95, %v103
    %v128 = vrot.slane %v127, 4
    %v129 = vadd.f32 %v127, %v128
    %v130 = vrot.slane %v129, 2
    %v131 = vadd.f32 %v129, %v130
    %v132 = vrot.slane %v131, 1
    %v133 = vadd.f32 %v131, %v132
    %v134 = vadd.f32 %v96, %v104
    %v135 = vrot.slane %v134, 4
    %v136 = vadd.f32 %v134, %v135
    %v137 = vrot.slane %v136, 2
    %v138 = vadd.f32 %v136, %v137
    %v139 = vrot.slane %v138, 1
    %v140 = vadd.f32 %v138, %v139
    %v141 = vadd.f32 %v97, %v105
    %v142 = vrot.slane %v141, 4
    %v143 = vadd.f32 %v141, %v142
    %v144 = vrot.slane %v143, 2
    %v145 = vadd.f32 %v143, %v144
    %v146 = vrot.slane %v145, 1
    %v147 = vadd.f32 %v145, %v146
    %v148 = vadd.f32 %v98, %v106
    %v149 = vrot.slane %v148, 4
    %v150 = vadd.f32 %v148, %v149
    %v151 = vrot.slane %v150, 2
    %v152 = vadd.f32 %v150, %v151
    %v153 = vrot.slane %v152, 1
    %v154 = vadd.f32 %v152, %v153
    %v155 = vadd.f32 %v99, %v107
    %v156 = vrot.slane %v155, 4
    %v157 = vadd.f32 %v155, %v156
    %v158 = vrot.slane %v157, 2
    %v159 = vadd.f32 %v157, %v158
    %v160 = vrot.slane %v159, 1
    %v161 = vadd.f32 %v159, %v160
    %v162 = vadd.f32 %v100, %v108
    %v163 = vrot.slane %v162, 4
    %v164 = vadd.f32 %v162, %v163
    %v165 = vrot.slane %v164, 2
    %v166 = vadd.f32 %v164, %v165
    %v167 = vrot.slane %v166, 1
    %v168 = vadd.f32 %v166, %v167
    %v169 = vadd.f32 %v101, %v109
    %v170 = vrot.slane %v169, 4
    %v171 = vadd.f32 %v169, %v170
    %v172 = vrot.slane %v171, 2
    %v173 = vadd.f32 %v171, %v172
    %v174 = vrot.slane %v173, 1
    %v175 = vadd.f32 %v173, %v174
    %v176 = vadd.f32 %v102, %v110
    %v177 = vrot.slane %v176, 4
    %v178 = vadd.f32 %v176, %v177
    %v179 = vrot.slane %v178, 2
    %v180 = vadd.f32 %v178, %v179
    %v181 = vrot.slane %v180, 1
    %v182 = vadd.f32 %v180, %v181
    %v183 = vadd.f32 %v111, %v119
    %v184 = vrot.slane %v183, 4
    %v185 = vadd.f32 %v183, %v184
    %v186 = vrot.slane %v185, 2
    %v187 = vadd.f32 %v185, %v186
    %v188 = vrot.slane %v187, 1
    %v189 = vadd.f32 %v187, %v188
    %v190 = vadd.f32 %v112, %v120
    %v191 = vrot.slane %v190, 4
    %v192 = vadd.f32 %v190, %v191
    %v193 = vrot.slane %v192, 2
    %v194 = vadd.f32 %v192, %v193
    %v195 = vrot.slane %v194, 1
    %v196 = vadd.f32 %v194, %v195
    %v197 = vadd.f32 %v113, %v121
    %v198 = vrot.slane %v197, 4
    %v199 = vadd.f32 %v197, %v198
    %v200 = vrot.slane %v199, 2
    %v201 = vadd.f32 %v199, %v200
    %v202 = vrot.slane %v201, 1
    %v203 = vadd.f32 %v201, %v202
    %v204 = vadd.f32 %v114, %v122
    %v205 = vrot.slane %v204, 4
    %v206 = vadd.f32 %v204, %v205
    %v207 = vrot.slane %v206, 2
    %v208 = vadd.f32 %v206, %v207
    %v209 = vrot.slane %v208, 1
    %v210 = vadd.f32 %v208, %v209
    %v211 = vadd.f32 %v115, %v123
    %v212 = vrot.slane %v211, 4
    %v213 = vadd.f32 %v211, %v212
    %v214 = vrot.slane %v213, 2
    %v215 = vadd.f32 %v213, %v214
    %v216 = vrot.slane %v215, 1
    %v217 = vadd.f32 %v215, %v216
    %v218 = vadd.f32 %v116, %v124
    %v219 = vrot.slane %v218, 4
    %v220 = vadd.f32 %v218, %v219
    %v221 = vrot.slane %v220, 2
    %v222 = vadd.f32 %v220, %v221
    %v223 = vrot.slane %v222, 1
    %v224 = vadd.f32 %v222, %v223
    %v225 = vadd.f32 %v117, %v125
    %v226 = vrot.slane %v225, 4
    %v227 = vadd.f32 %v225, %v226
    %v228 = vrot.slane %v227, 2
    %v229 = vadd.f32 %v227, %v228
    %v230 = vrot.slane %v229, 1
    %v231 = vadd.f32 %v229, %v230
    %v232 = vadd.f32 %v118, %v126
    %v233 = vrot.slane %v232, 4
    %v234 = vadd.f32 %v232, %v233
    %v235 = vrot.slane %v234, 2
    %v236 = vadd.f32 %v234, %v235
    %v237 = vrot.slane %v236, 1
    %v238 = vadd.f32 %v236, %v237
    %v239 = vpack.c.bf16 %v133, %v133
    %v240 = vpack.c.bf16 %v140, %v140
    %v241 = vpack.c.bf16 %v147, %v147
    %v242 = vpack.c.bf16 %v154, %v154
    %v243 = vpack.c.bf16 %v161, %v161
    %v244 = vpack.c.bf16 %v168, %v168
    %v245 = vpack.c.bf16 %v175, %v175
    %v246 = vpack.c.bf16 %v182, %v182
    %v247 = vpack.c.bf16 %v189, %v189
    %v248 = vpack.c.bf16 %v196, %v196
    %v249 = vpack.c.bf16 %v203, %v203
    %v250 = vpack.c.bf16 %v210, %v210
    %v251 = vpack.c.bf16 %v217, %v217
    %v252 = vpack.c.bf16 %v224, %v224
    %v253 = vpack.c.bf16 %v231, %v231
    %v254 = vpack.c.bf16 %v238, %v238
    %v255 = vld [vmem:[#allocation5] sm:$0xff]
    %v256 = vld [vmem:[#allocation5 + $0x8] sm:$0xff]
    %v257 = vld [vmem:[#allocation5 + $0x10] sm:$0xff]
    %v258 = vld [vmem:[#allocation5 + $0x18] sm:$0xff]
    %v259 = vld [vmem:[#allocation5 + $0x20] sm:$0xff]
    %v260 = vld [vmem:[#allocation5 + $0x28] sm:$0xff]
    %v261 = vld [vmem:[#allocation5 + $0x30] sm:$0xff]
    %v262 = vld [vmem:[#allocation5 + $0x38] sm:$0xff]
    %v263 = vld [vmem:[#allocation5 + $0x40] sm:$0xff]
    %v264 = vld [vmem:[#allocation5 + $0x48] sm:$0xff]
    %v265 = vld [vmem:[#allocation5 + $0x50] sm:$0xff]
    %v266 = vld [vmem:[#allocation5 + $0x58] sm:$0xff]
    %v267 = vld [vmem:[#allocation5 + $0x60] sm:$0xff]
    %v268 = vld [vmem:[#allocation5 + $0x68] sm:$0xff]
    %v269 = vld [vmem:[#allocation5 + $0x70] sm:$0xff]
    %v270 = vld [vmem:[#allocation5 + $0x78] sm:$0xff]
    %v271 = vld [vmem:[#allocation5 + $0x80] sm:$0xff]
    %v272 = vld [vmem:[#allocation5 + $0x88] sm:$0xff]
    %v273 = vld [vmem:[#allocation5 + $0x90] sm:$0xff]
    %v274 = vld [vmem:[#allocation5 + $0x98] sm:$0xff]
    %v275 = vld [vmem:[#allocation5 + $0xa0] sm:$0xff]
    %v276 = vld [vmem:[#allocation5 + $0xa8] sm:$0xff]
    %v277 = vld [vmem:[#allocation5 + $0xb0] sm:$0xff]
    %v278 = vld [vmem:[#allocation5 + $0xb8] sm:$0xff]
    %v279 = vld [vmem:[#allocation5 + $0xc0] sm:$0xff]
    %v280 = vld [vmem:[#allocation5 + $0xc8] sm:$0xff]
    %v281 = vld [vmem:[#allocation5 + $0xd0] sm:$0xff]
    %v282 = vld [vmem:[#allocation5 + $0xd8] sm:$0xff]
    %v283 = vld [vmem:[#allocation5 + $0xe0] sm:$0xff]
    %v284 = vld [vmem:[#allocation5 + $0xe8] sm:$0xff]
    %v285 = vld [vmem:[#allocation5 + $0xf0] sm:$0xff]
    %v286 = vld [vmem:[#allocation5 + $0xf8] sm:$0xff]
    %v287 = vld [vmem:[#allocation5 + $0x100] sm:$0xff]
    %v288 = vld [vmem:[#allocation5 + $0x108] sm:$0xff]
    %v289 = vld [vmem:[#allocation5 + $0x110] sm:$0xff]
    %v290 = vld [vmem:[#allocation5 + $0x118] sm:$0xff]
    %v291 = vld [vmem:[#allocation5 + $0x120] sm:$0xff]
    %v292 = vld [vmem:[#allocation5 + $0x128] sm:$0xff]
    %v293 = vld [vmem:[#allocation5 + $0x130] sm:$0xff]
    %v294 = vld [vmem:[#allocation5 + $0x138] sm:$0xff]
    %v295 = vld [vmem:[#allocation5 + $0x140] sm:$0xff]
    %v296 = vld [vmem:[#allocation5 + $0x148] sm:$0xff]
    %v297 = vld [vmem:[#allocation5 + $0x150] sm:$0xff]
    %v298 = vld [vmem:[#allocation5 + $0x158] sm:$0xff]
    %v299 = vld [vmem:[#allocation5 + $0x160] sm:$0xff]
    %v300 = vld [vmem:[#allocation5 + $0x168] sm:$0xff]
    %v301 = vld [vmem:[#allocation5 + $0x170] sm:$0xff]
    %v302 = vld [vmem:[#allocation5 + $0x178] sm:$0xff]
    %v303 = vld [vmem:[#allocation5 + $0x180] sm:$0xff]
    %v304 = vld [vmem:[#allocation5 + $0x188] sm:$0xff]
    %v305 = vld [vmem:[#allocation5 + $0x190] sm:$0xff]
    %v306 = vld [vmem:[#allocation5 + $0x198] sm:$0xff]
    %v307 = vld [vmem:[#allocation5 + $0x1a0] sm:$0xff]
    %v308 = vld [vmem:[#allocation5 + $0x1a8] sm:$0xff]
    %v309 = vld [vmem:[#allocation5 + $0x1b0] sm:$0xff]
    %v310 = vld [vmem:[#allocation5 + $0x1b8] sm:$0xff]
    %v311 = vld [vmem:[#allocation5 + $0x1c0] sm:$0xff]
    %v312 = vld [vmem:[#allocation5 + $0x1c8] sm:$0xff]
    %v313 = vld [vmem:[#allocation5 + $0x1d0] sm:$0xff]
    %v314 = vld [vmem:[#allocation5 + $0x1d8] sm:$0xff]
    %v315 = vld [vmem:[#allocation5 + $0x1e0] sm:$0xff]
    %v316 = vld [vmem:[#allocation5 + $0x1e8] sm:$0xff]
    %v317 = vld [vmem:[#allocation5 + $0x1f0] sm:$0xff]
    %v318 = vld [vmem:[#allocation5 + $0x1f8] sm:$0xff]
    %v319 = vld [vmem:[#allocation5 + $0x200] sm:$0xff]
    %v320 = vld [vmem:[#allocation5 + $0x208] sm:$0xff]
    %v321 = vld [vmem:[#allocation5 + $0x210] sm:$0xff]
    %v322 = vld [vmem:[#allocation5 + $0x218] sm:$0xff]
    %v323 = vld [vmem:[#allocation5 + $0x220] sm:$0xff]
    %v324 = vld [vmem:[#allocation5 + $0x228] sm:$0xff]
    %v325 = vld [vmem:[#allocation5 + $0x230] sm:$0xff]
    %v326 = vld [vmem:[#allocation5 + $0x238] sm:$0xff]
    %v327 = vld [vmem:[#allocation5 + $0x240] sm:$0xff]
    %v328 = vld [vmem:[#allocation5 + $0x248] sm:$0xff]
    %v329 = vld [vmem:[#allocation5 + $0x250] sm:$0xff]
    %v330 = vld [vmem:[#allocation5 + $0x258] sm:$0xff]
    %v331 = vld [vmem:[#allocation5 + $0x260] sm:$0xff]
    %v332 = vld [vmem:[#allocation5 + $0x268] sm:$0xff]
    %v333 = vld [vmem:[#allocation5 + $0x270] sm:$0xff]
    %v334 = vld [vmem:[#allocation5 + $0x278] sm:$0xff]
    %v335 = vld [vmem:[#allocation5 + $0x280] sm:$0xff]
    %v336 = vld [vmem:[#allocation5 + $0x288] sm:$0xff]
    %v337 = vld [vmem:[#allocation5 + $0x290] sm:$0xff]
    %v338 = vld [vmem:[#allocation5 + $0x298] sm:$0xff]
    %v339 = vld [vmem:[#allocation5 + $0x2a0] sm:$0xff]
    %v340 = vld [vmem:[#allocation5 + $0x2a8] sm:$0xff]
    %v341 = vld [vmem:[#allocation5 + $0x2b0] sm:$0xff]
    %v342 = vld [vmem:[#allocation5 + $0x2b8] sm:$0xff]
    %v343 = vld [vmem:[#allocation5 + $0x2c0] sm:$0xff]
    %v344 = vld [vmem:[#allocation5 + $0x2c8] sm:$0xff]
    %v345 = vld [vmem:[#allocation5 + $0x2d0] sm:$0xff]
    %v346 = vld [vmem:[#allocation5 + $0x2d8] sm:$0xff]
    %v347 = vld [vmem:[#allocation5 + $0x2e0] sm:$0xff]
    %v348 = vld [vmem:[#allocation5 + $0x2e8] sm:$0xff]
    %v349 = vld [vmem:[#allocation5 + $0x2f0] sm:$0xff]
    %v350 = vld [vmem:[#allocation5 + $0x2f8] sm:$0xff]
    %v351 = vld [vmem:[#allocation5 + $0x300] sm:$0xff]
    %v352 = vld [vmem:[#allocation5 + $0x308] sm:$0xff]
    %v353 = vld [vmem:[#allocation5 + $0x310] sm:$0xff]
    %v354 = vld [vmem:[#allocation5 + $0x318] sm:$0xff]
    %v355 = vld [vmem:[#allocation5 + $0x320] sm:$0xff]
    %v356 = vld [vmem:[#allocation5 + $0x328] sm:$0xff]
    %v357 = vld [vmem:[#allocation5 + $0x330] sm:$0xff]
    %v358 = vld [vmem:[#allocation5 + $0x338] sm:$0xff]
    %v359 = vld [vmem:[#allocation5 + $0x340] sm:$0xff]
    %v360 = vld [vmem:[#allocation5 + $0x348] sm:$0xff]
    %v361 = vld [vmem:[#allocation5 + $0x350] sm:$0xff]
    %v362 = vld [vmem:[#allocation5 + $0x358] sm:$0xff]
    %v363 = vld [vmem:[#allocation5 + $0x360] sm:$0xff]
    %v364 = vld [vmem:[#allocation5 + $0x368] sm:$0xff]
    %v365 = vld [vmem:[#allocation5 + $0x370] sm:$0xff]
    %v366 = vld [vmem:[#allocation5 + $0x378] sm:$0xff]
    %v367 = vld [vmem:[#allocation5 + $0x380] sm:$0xff]
    %v368 = vld [vmem:[#allocation5 + $0x388] sm:$0xff]
    %v369 = vld [vmem:[#allocation5 + $0x390] sm:$0xff]
    %v370 = vld [vmem:[#allocation5 + $0x398] sm:$0xff]
    %v371 = vld [vmem:[#allocation5 + $0x3a0] sm:$0xff]
    %v372 = vld [vmem:[#allocation5 + $0x3a8] sm:$0xff]
    %v373 = vld [vmem:[#allocation5 + $0x3b0] sm:$0xff]
    %v374 = vld [vmem:[#allocation5 + $0x3b8] sm:$0xff]
    %v375 = vld [vmem:[#allocation5 + $0x3c0] sm:$0xff]
    %v376 = vld [vmem:[#allocation5 + $0x3c8] sm:$0xff]
    %v377 = vld [vmem:[#allocation5 + $0x3d0] sm:$0xff]
    %v378 = vld [vmem:[#allocation5 + $0x3d8] sm:$0xff]
    %v379 = vld [vmem:[#allocation5 + $0x3e0] sm:$0xff]
    %v380 = vld [vmem:[#allocation5 + $0x3e8] sm:$0xff]
    %v381 = vld [vmem:[#allocation5 + $0x3f0] sm:$0xff]
    %v382 = vld [vmem:[#allocation5 + $0x3f8] sm:$0xff]
    %v383 = vld [vmem:[#allocation5 + $0x400] sm:$0xff]
    %v384 = vld [vmem:[#allocation5 + $0x408] sm:$0xff]
    %v385 = vld [vmem:[#allocation5 + $0x410] sm:$0xff]
    %v386 = vld [vmem:[#allocation5 + $0x418] sm:$0xff]
    %v387 = vld [vmem:[#allocation5 + $0x420] sm:$0xff]
    %v388 = vld [vmem:[#allocation5 + $0x428] sm:$0xff]
    %v389 = vld [vmem:[#allocation5 + $0x430] sm:$0xff]
    %v390 = vld [vmem:[#allocation5 + $0x438] sm:$0xff]
    %v391 = vld [vmem:[#allocation5 + $0x440] sm:$0xff]
    %v392 = vld [vmem:[#allocation5 + $0x448] sm:$0xff]
    %v393 = vld [vmem:[#allocation5 + $0x450] sm:$0xff]
    %v394 = vld [vmem:[#allocation5 + $0x458] sm:$0xff]
    %v395 = vld [vmem:[#allocation5 + $0x460] sm:$0xff]
    %v396 = vld [vmem:[#allocation5 + $0x468] sm:$0xff]
    %v397 = vld [vmem:[#allocation5 + $0x470] sm:$0xff]
    %v398 = vld [vmem:[#allocation5 + $0x478] sm:$0xff]
    %v399 = vld [vmem:[#allocation5 + $0x480] sm:$0xff]
    %v400 = vld [vmem:[#allocation5 + $0x488] sm:$0xff]
    %v401 = vld [vmem:[#allocation5 + $0x490] sm:$0xff]
    %v402 = vld [vmem:[#allocation5 + $0x498] sm:$0xff]
    %v403 = vld [vmem:[#allocation5 + $0x4a0] sm:$0xff]
    %v404 = vld [vmem:[#allocation5 + $0x4a8] sm:$0xff]
    %v405 = vld [vmem:[#allocation5 + $0x4b0] sm:$0xff]
    %v406 = vld [vmem:[#allocation5 + $0x4b8] sm:$0xff]
    %v407 = vld [vmem:[#allocation5 + $0x4c0] sm:$0xff]
    %v408 = vld [vmem:[#allocation5 + $0x4c8] sm:$0xff]
    %v409 = vld [vmem:[#allocation5 + $0x4d0] sm:$0xff]
    %v410 = vld [vmem:[#allocation5 + $0x4d8] sm:$0xff]
    %v411 = vld [vmem:[#allocation5 + $0x4e0] sm:$0xff]
    %v412 = vld [vmem:[#allocation5 + $0x4e8] sm:$0xff]
    %v413 = vld [vmem:[#allocation5 + $0x4f0] sm:$0xff]
    %v414 = vld [vmem:[#allocation5 + $0x4f8] sm:$0xff]
    %v415 = vld [vmem:[#allocation5 + $0x500] sm:$0xff]
    %v416 = vld [vmem:[#allocation5 + $0x508] sm:$0xff]
    %v417 = vld [vmem:[#allocation5 + $0x510] sm:$0xff]
    %v418 = vld [vmem:[#allocation5 + $0x518] sm:$0xff]
    %v419 = vld [vmem:[#allocation5 + $0x520] sm:$0xff]
    %v420 = vld [vmem:[#allocation5 + $0x528] sm:$0xff]
    %v421 = vld [vmem:[#allocation5 + $0x530] sm:$0xff]
    %v422 = vld [vmem:[#allocation5 + $0x538] sm:$0xff]
    %v423 = vld [vmem:[#allocation5 + $0x540] sm:$0xff]
    %v424 = vld [vmem:[#allocation5 + $0x548] sm:$0xff]
    %v425 = vld [vmem:[#allocation5 + $0x550] sm:$0xff]
    %v426 = vld [vmem:[#allocation5 + $0x558] sm:$0xff]
    %v427 = vld [vmem:[#allocation5 + $0x560] sm:$0xff]
    %v428 = vld [vmem:[#allocation5 + $0x568] sm:$0xff]
    %v429 = vld [vmem:[#allocation5 + $0x570] sm:$0xff]
    %v430 = vld [vmem:[#allocation5 + $0x578] sm:$0xff]
    %v431 = vld [vmem:[#allocation5 + $0x580] sm:$0xff]
    %v432 = vld [vmem:[#allocation5 + $0x588] sm:$0xff]
    %v433 = vld [vmem:[#allocation5 + $0x590] sm:$0xff]
    %v434 = vld [vmem:[#allocation5 + $0x598] sm:$0xff]
    %v435 = vld [vmem:[#allocation5 + $0x5a0] sm:$0xff]
    %v436 = vld [vmem:[#allocation5 + $0x5a8] sm:$0xff]
    %v437 = vld [vmem:[#allocation5 + $0x5b0] sm:$0xff]
    %v438 = vld [vmem:[#allocation5 + $0x5b8] sm:$0xff]
    %v439 = vld [vmem:[#allocation5 + $0x5c0] sm:$0xff]
    %v440 = vld [vmem:[#allocation5 + $0x5c8] sm:$0xff]
    %v441 = vld [vmem:[#allocation5 + $0x5d0] sm:$0xff]
    %v442 = vld [vmem:[#allocation5 + $0x5d8] sm:$0xff]
    %v443 = vld [vmem:[#allocation5 + $0x5e0] sm:$0xff]
    %v444 = vld [vmem:[#allocation5 + $0x5e8] sm:$0xff]
    %v445 = vld [vmem:[#allocation5 + $0x5f0] sm:$0xff]
    %v446 = vld [vmem:[#allocation5 + $0x5f8] sm:$0xff]
    %v447 = vld [vmem:[#allocation5 + $0x600] sm:$0xff]
    %v448 = vld [vmem:[#allocation5 + $0x608] sm:$0xff]
    %v449 = vld [vmem:[#allocation5 + $0x610] sm:$0xff]
    %v450 = vld [vmem:[#allocation5 + $0x618] sm:$0xff]
    %v451 = vld [vmem:[#allocation5 + $0x620] sm:$0xff]
    %v452 = vld [vmem:[#allocation5 + $0x628] sm:$0xff]
    %v453 = vld [vmem:[#allocation5 + $0x630] sm:$0xff]
    %v454 = vld [vmem:[#allocation5 + $0x638] sm:$0xff]
    %v455 = vld [vmem:[#allocation5 + $0x640] sm:$0xff]
    %v456 = vld [vmem:[#allocation5 + $0x648] sm:$0xff]
    %v457 = vld [vmem:[#allocation5 + $0x650] sm:$0xff]
    %v458 = vld [vmem:[#allocation5 + $0x658] sm:$0xff]
    %v459 = vld [vmem:[#allocation5 + $0x660] sm:$0xff]
    %v460 = vld [vmem:[#allocation5 + $0x668] sm:$0xff]
    %v461 = vld [vmem:[#allocation5 + $0x670] sm:$0xff]
    %v462 = vld [vmem:[#allocation5 + $0x678] sm:$0xff]
    %v463 = vld [vmem:[#allocation5 + $0x680] sm:$0xff]
    %v464 = vld [vmem:[#allocation5 + $0x688] sm:$0xff]
    %v465 = vld [vmem:[#allocation5 + $0x690] sm:$0xff]
    %v466 = vld [vmem:[#allocation5 + $0x698] sm:$0xff]
    %v467 = vld [vmem:[#allocation5 + $0x6a0] sm:$0xff]
    %v468 = vld [vmem:[#allocation5 + $0x6a8] sm:$0xff]
    %v469 = vld [vmem:[#allocation5 + $0x6b0] sm:$0xff]
    %v470 = vld [vmem:[#allocation5 + $0x6b8] sm:$0xff]
    %v471 = vld [vmem:[#allocation5 + $0x6c0] sm:$0xff]
    %v472 = vld [vmem:[#allocation5 + $0x6c8] sm:$0xff]
    %v473 = vld [vmem:[#allocation5 + $0x6d0] sm:$0xff]
    %v474 = vld [vmem:[#allocation5 + $0x6d8] sm:$0xff]
    %v475 = vld [vmem:[#allocation5 + $0x6e0] sm:$0xff]
    %v476 = vld [vmem:[#allocation5 + $0x6e8] sm:$0xff]
    %v477 = vld [vmem:[#allocation5 + $0x6f0] sm:$0xff]
    %v478 = vld [vmem:[#allocation5 + $0x6f8] sm:$0xff]
    %v479 = vld [vmem:[#allocation5 + $0x700] sm:$0xff]
    %v480 = vld [vmem:[#allocation5 + $0x708] sm:$0xff]
    %v481 = vld [vmem:[#allocation5 + $0x710] sm:$0xff]
    %v482 = vld [vmem:[#allocation5 + $0x718] sm:$0xff]
    %v483 = vld [vmem:[#allocation5 + $0x720] sm:$0xff]
    %v484 = vld [vmem:[#allocation5 + $0x728] sm:$0xff]
    %v485 = vld [vmem:[#allocation5 + $0x730] sm:$0xff]
    %v486 = vld [vmem:[#allocation5 + $0x738] sm:$0xff]
    %v487 = vld [vmem:[#allocation5 + $0x740] sm:$0xff]
    %v488 = vld [vmem:[#allocation5 + $0x748] sm:$0xff]
    %v489 = vld [vmem:[#allocation5 + $0x750] sm:$0xff]
    %v490 = vld [vmem:[#allocation5 + $0x758] sm:$0xff]
    %v491 = vld [vmem:[#allocation5 + $0x760] sm:$0xff]
    %v492 = vld [vmem:[#allocation5 + $0x768] sm:$0xff]
    %v493 = vld [vmem:[#allocation5 + $0x770] sm:$0xff]
    %v494 = vld [vmem:[#allocation5 + $0x778] sm:$0xff]
    %v495 = vld [vmem:[#allocation5 + $0x780] sm:$0xff]
    %v496 = vld [vmem:[#allocation5 + $0x788] sm:$0xff]
    %v497 = vld [vmem:[#allocation5 + $0x790] sm:$0xff]
    %v498 = vld [vmem:[#allocation5 + $0x798] sm:$0xff]
    %v499 = vld [vmem:[#allocation5 + $0x7a0] sm:$0xff]
    %v500 = vld [vmem:[#allocation5 + $0x7a8] sm:$0xff]
    %v501 = vld [vmem:[#allocation5 + $0x7b0] sm:$0xff]
    %v502 = vld [vmem:[#allocation5 + $0x7b8] sm:$0xff]
    %v503 = vld [vmem:[#allocation5 + $0x7c0] sm:$0xff]
    %v504 = vld [vmem:[#allocation5 + $0x7c8] sm:$0xff]
    %v505 = vld [vmem:[#allocation5 + $0x7d0] sm:$0xff]
    %v506 = vld [vmem:[#allocation5 + $0x7d8] sm:$0xff]
    %v507 = vld [vmem:[#allocation5 + $0x7e0] sm:$0xff]
    %v508 = vld [vmem:[#allocation5 + $0x7e8] sm:$0xff]
    %v509 = vld [vmem:[#allocation5 + $0x7f0] sm:$0xff]
    %v510 = vld [vmem:[#allocation5 + $0x7f8] sm:$0xff]
    %v511 = vld [vmem:[#allocation5 + $0x800] sm:$0xff]
    %v512 = vld [vmem:[#allocation5 + $0x808] sm:$0xff]
    %v513 = vld [vmem:[#allocation5 + $0x810] sm:$0xff]
    %v514 = vld [vmem:[#allocation5 + $0x818] sm:$0xff]
    %v515 = vld [vmem:[#allocation5 + $0x820] sm:$0xff]
    %v516 = vld [vmem:[#allocation5 + $0x828] sm:$0xff]
    %v517 = vld [vmem:[#allocation5 + $0x830] sm:$0xff]
    %v518 = vld [vmem:[#allocation5 + $0x838] sm:$0xff]
    %v519 = vld [vmem:[#allocation5 + $0x840] sm:$0xff]
    %v520 = vld [vmem:[#allocation5 + $0x848] sm:$0xff]
    %v521 = vld [vmem:[#allocation5 + $0x850] sm:$0xff]
    %v522 = vld [vmem:[#allocation5 + $0x858] sm:$0xff]
    %v523 = vld [vmem:[#allocation5 + $0x860] sm:$0xff]
    %v524 = vld [vmem:[#allocation5 + $0x868] sm:$0xff]
    %v525 = vld [vmem:[#allocation5 + $0x870] sm:$0xff]
    %v526 = vld [vmem:[#allocation5 + $0x878] sm:$0xff]
    %v527 = vld [vmem:[#allocation5 + $0x880] sm:$0xff]
    %v528 = vld [vmem:[#allocation5 + $0x888] sm:$0xff]
    %v529 = vld [vmem:[#allocation5 + $0x890] sm:$0xff]
    %v530 = vld [vmem:[#allocation5 + $0x898] sm:$0xff]
    %v531 = vld [vmem:[#allocation5 + $0x8a0] sm:$0xff]
    %v532 = vld [vmem:[#allocation5 + $0x8a8] sm:$0xff]
    %v533 = vld [vmem:[#allocation5 + $0x8b0] sm:$0xff]
    %v534 = vld [vmem:[#allocation5 + $0x8b8] sm:$0xff]
    %v535 = vld [vmem:[#allocation5 + $0x8c0] sm:$0xff]
    %v536 = vld [vmem:[#allocation5 + $0x8c8] sm:$0xff]
    %v537 = vld [vmem:[#allocation5 + $0x8d0] sm:$0xff]
    %v538 = vld [vmem:[#allocation5 + $0x8d8] sm:$0xff]
    %v539 = vld [vmem:[#allocation5 + $0x8e0] sm:$0xff]
    %v540 = vld [vmem:[#allocation5 + $0x8e8] sm:$0xff]
    %v541 = vld [vmem:[#allocation5 + $0x8f0] sm:$0xff]
    %v542 = vld [vmem:[#allocation5 + $0x8f8] sm:$0xff]
    %v543 = vld [vmem:[#allocation5 + $0x900] sm:$0xff]
    %v544 = vld [vmem:[#allocation5 + $0x908] sm:$0xff]
    %v545 = vld [vmem:[#allocation5 + $0x910] sm:$0xff]
    %v546 = vld [vmem:[#allocation5 + $0x918] sm:$0xff]
    %v547 = vld [vmem:[#allocation5 + $0x920] sm:$0xff]
    %v548 = vld [vmem:[#allocation5 + $0x928] sm:$0xff]
    %v549 = vld [vmem:[#allocation5 + $0x930] sm:$0xff]
    %v550 = vld [vmem:[#allocation5 + $0x938] sm:$0xff]
    %v551 = vld [vmem:[#allocation5 + $0x940] sm:$0xff]
    %v552 = vld [vmem:[#allocation5 + $0x948] sm:$0xff]
    %v553 = vld [vmem:[#allocation5 + $0x950] sm:$0xff]
    %v554 = vld [vmem:[#allocation5 + $0x958] sm:$0xff]
    %v555 = vld [vmem:[#allocation5 + $0x960] sm:$0xff]
    %v556 = vld [vmem:[#allocation5 + $0x968] sm:$0xff]
    %v557 = vld [vmem:[#allocation5 + $0x970] sm:$0xff]
    %v558 = vld [vmem:[#allocation5 + $0x978] sm:$0xff]
    %v559 = vld [vmem:[#allocation5 + $0x980] sm:$0xff]
    %v560 = vld [vmem:[#allocation5 + $0x988] sm:$0xff]
    %v561 = vld [vmem:[#allocation5 + $0x990] sm:$0xff]
    %v562 = vld [vmem:[#allocation5 + $0x998] sm:$0xff]
    %v563 = vld [vmem:[#allocation5 + $0x9a0] sm:$0xff]
    %v564 = vld [vmem:[#allocation5 + $0x9a8] sm:$0xff]
    %v565 = vld [vmem:[#allocation5 + $0x9b0] sm:$0xff]
    %v566 = vld [vmem:[#allocation5 + $0x9b8] sm:$0xff]
    %v567 = vld [vmem:[#allocation5 + $0x9c0] sm:$0xff]
    %v568 = vld [vmem:[#allocation5 + $0x9c8] sm:$0xff]
    %v569 = vld [vmem:[#allocation5 + $0x9d0] sm:$0xff]
    %v570 = vld [vmem:[#allocation5 + $0x9d8] sm:$0xff]
    %v571 = vld [vmem:[#allocation5 + $0x9e0] sm:$0xff]
    %v572 = vld [vmem:[#allocation5 + $0x9e8] sm:$0xff]
    %v573 = vld [vmem:[#allocation5 + $0x9f0] sm:$0xff]
    %v574 = vld [vmem:[#allocation5 + $0x9f8] sm:$0xff]
    %v575 = vld [vmem:[#allocation5 + $0xa00] sm:$0xff]
    %v576 = vld [vmem:[#allocation5 + $0xa08] sm:$0xff]
    %v577 = vld [vmem:[#allocation5 + $0xa10] sm:$0xff]
    %v578 = vld [vmem:[#allocation5 + $0xa18] sm:$0xff]
    %v579 = vld [vmem:[#allocation5 + $0xa20] sm:$0xff]
    %v580 = vld [vmem:[#allocation5 + $0xa28] sm:$0xff]
    %v581 = vld [vmem:[#allocation5 + $0xa30] sm:$0xff]
    %v582 = vld [vmem:[#allocation5 + $0xa38] sm:$0xff]
    %v583 = vld [vmem:[#allocation5 + $0xa40] sm:$0xff]
    %v584 = vld [vmem:[#allocation5 + $0xa48] sm:$0xff]
    %v585 = vld [vmem:[#allocation5 + $0xa50] sm:$0xff]
    %v586 = vld [vmem:[#allocation5 + $0xa58] sm:$0xff]
    %v587 = vld [vmem:[#allocation5 + $0xa60] sm:$0xff]
    %v588 = vld [vmem:[#allocation5 + $0xa68] sm:$0xff]
    %v589 = vld [vmem:[#allocation5 + $0xa70] sm:$0xff]
    %v590 = vld [vmem:[#allocation5 + $0xa78] sm:$0xff]
    %v591 = vld [vmem:[#allocation5 + $0xa80] sm:$0xff]
    %v592 = vld [vmem:[#allocation5 + $0xa88] sm:$0xff]
    %v593 = vld [vmem:[#allocation5 + $0xa90] sm:$0xff]
    %v594 = vld [vmem:[#allocation5 + $0xa98] sm:$0xff]
    %v595 = vld [vmem:[#allocation5 + $0xaa0] sm:$0xff]
    %v596 = vld [vmem:[#allocation5 + $0xaa8] sm:$0xff]
    %v597 = vld [vmem:[#allocation5 + $0xab0] sm:$0xff]
    %v598 = vld [vmem:[#allocation5 + $0xab8] sm:$0xff]
    %v599 = vld [vmem:[#allocation5 + $0xac0] sm:$0xff]
    %v600 = vld [vmem:[#allocation5 + $0xac8] sm:$0xff]
    %v601 = vld [vmem:[#allocation5 + $0xad0] sm:$0xff]
    %v602 = vld [vmem:[#allocation5 + $0xad8] sm:$0xff]
    %v603 = vld [vmem:[#allocation5 + $0xae0] sm:$0xff]
    %v604 = vld [vmem:[#allocation5 + $0xae8] sm:$0xff]
    %v605 = vld [vmem:[#allocation5 + $0xaf0] sm:$0xff]
    %v606 = vld [vmem:[#allocation5 + $0xaf8] sm:$0xff]
    %v607 = vld [vmem:[#allocation5 + $0xb00] sm:$0xff]
    %v608 = vld [vmem:[#allocation5 + $0xb08] sm:$0xff]
    %v609 = vld [vmem:[#allocation5 + $0xb10] sm:$0xff]
    %v610 = vld [vmem:[#allocation5 + $0xb18] sm:$0xff]
    %v611 = vld [vmem:[#allocation5 + $0xb20] sm:$0xff]
    %v612 = vld [vmem:[#allocation5 + $0xb28] sm:$0xff]
    %v613 = vld [vmem:[#allocation5 + $0xb30] sm:$0xff]
    %v614 = vld [vmem:[#allocation5 + $0xb38] sm:$0xff]
    %v615 = vld [vmem:[#allocation5 + $0xb40] sm:$0xff]
    %v616 = vld [vmem:[#allocation5 + $0xb48] sm:$0xff]
    %v617 = vld [vmem:[#allocation5 + $0xb50] sm:$0xff]
    %v618 = vld [vmem:[#allocation5 + $0xb58] sm:$0xff]
    %v619 = vld [vmem:[#allocation5 + $0xb60] sm:$0xff]
    %v620 = vld [vmem:[#allocation5 + $0xb68] sm:$0xff]
    %v621 = vld [vmem:[#allocation5 + $0xb70] sm:$0xff]
    %v622 = vld [vmem:[#allocation5 + $0xb78] sm:$0xff]
    %v623 = vld [vmem:[#allocation5 + $0xb80] sm:$0xff]
    %v624 = vld [vmem:[#allocation5 + $0xb88] sm:$0xff]
    %v625 = vld [vmem:[#allocation5 + $0xb90] sm:$0xff]
    %v626 = vld [vmem:[#allocation5 + $0xb98] sm:$0xff]
    %v627 = vld [vmem:[#allocation5 + $0xba0] sm:$0xff]
    %v628 = vld [vmem:[#allocation5 + $0xba8] sm:$0xff]
    %v629 = vld [vmem:[#allocation5 + $0xbb0] sm:$0xff]
    %v630 = vld [vmem:[#allocation5 + $0xbb8] sm:$0xff]
    %v631 = vld [vmem:[#allocation5 + $0xbc0] sm:$0xff]
    %v632 = vld [vmem:[#allocation5 + $0xbc8] sm:$0xff]
    %v633 = vld [vmem:[#allocation5 + $0xbd0] sm:$0xff]
    %v634 = vld [vmem:[#allocation5 + $0xbd8] sm:$0xff]
    %v635 = vld [vmem:[#allocation5 + $0xbe0] sm:$0xff]
    %v636 = vld [vmem:[#allocation5 + $0xbe8] sm:$0xff]
    %v637 = vld [vmem:[#allocation5 + $0xbf0] sm:$0xff]
    %v638 = vld [vmem:[#allocation5 + $0xbf8] sm:$0xff]
    %v639 = vld [vmem:[#allocation5 + $0xc00] sm:$0xff]
    %v640 = vld [vmem:[#allocation5 + $0xc08] sm:$0xff]
    %v641 = vld [vmem:[#allocation5 + $0xc10] sm:$0xff]
    %v642 = vld [vmem:[#allocation5 + $0xc18] sm:$0xff]
    %v643 = vld [vmem:[#allocation5 + $0xc20] sm:$0xff]
    %v644 = vld [vmem:[#allocation5 + $0xc28] sm:$0xff]
    %v645 = vld [vmem:[#allocation5 + $0xc30] sm:$0xff]
    %v646 = vld [vmem:[#allocation5 + $0xc38] sm:$0xff]
    %v647 = vld [vmem:[#allocation5 + $0xc40] sm:$0xff]
    %v648 = vld [vmem:[#allocation5 + $0xc48] sm:$0xff]
    %v649 = vld [vmem:[#allocation5 + $0xc50] sm:$0xff]
    %v650 = vld [vmem:[#allocation5 + $0xc58] sm:$0xff]
    %v651 = vld [vmem:[#allocation5 + $0xc60] sm:$0xff]
    %v652 = vld [vmem:[#allocation5 + $0xc68] sm:$0xff]
    %v653 = vld [vmem:[#allocation5 + $0xc70] sm:$0xff]
    %v654 = vld [vmem:[#allocation5 + $0xc78] sm:$0xff]
    %v655 = vld [vmem:[#allocation5 + $0xc80] sm:$0xff]
    %v656 = vld [vmem:[#allocation5 + $0xc88] sm:$0xff]
    %v657 = vld [vmem:[#allocation5 + $0xc90] sm:$0xff]
    %v658 = vld [vmem:[#allocation5 + $0xc98] sm:$0xff]
    %v659 = vld [vmem:[#allocation5 + $0xca0] sm:$0xff]
    %v660 = vld [vmem:[#allocation5 + $0xca8] sm:$0xff]
    %v661 = vld [vmem:[#allocation5 + $0xcb0] sm:$0xff]
    %v662 = vld [vmem:[#allocation5 + $0xcb8] sm:$0xff]
    %v663 = vld [vmem:[#allocation5 + $0xcc0] sm:$0xff]
    %v664 = vld [vmem:[#allocation5 + $0xcc8] sm:$0xff]
    %v665 = vld [vmem:[#allocation5 + $0xcd0] sm:$0xff]
    %v666 = vld [vmem:[#allocation5 + $0xcd8] sm:$0xff]
    %v667 = vld [vmem:[#allocation5 + $0xce0] sm:$0xff]
    %v668 = vld [vmem:[#allocation5 + $0xce8] sm:$0xff]
    %v669 = vld [vmem:[#allocation5 + $0xcf0] sm:$0xff]
    %v670 = vld [vmem:[#allocation5 + $0xcf8] sm:$0xff]
    %v671 = vld [vmem:[#allocation5 + $0xd00] sm:$0xff]
    %v672 = vld [vmem:[#allocation5 + $0xd08] sm:$0xff]
    %v673 = vld [vmem:[#allocation5 + $0xd10] sm:$0xff]
    %v674 = vld [vmem:[#allocation5 + $0xd18] sm:$0xff]
    %v675 = vld [vmem:[#allocation5 + $0xd20] sm:$0xff]
    %v676 = vld [vmem:[#allocation5 + $0xd28] sm:$0xff]
    %v677 = vld [vmem:[#allocation5 + $0xd30] sm:$0xff]
    %v678 = vld [vmem:[#allocation5 + $0xd38] sm:$0xff]
    %v679 = vld [vmem:[#allocation5 + $0xd40] sm:$0xff]
    %v680 = vld [vmem:[#allocation5 + $0xd48] sm:$0xff]
    %v681 = vld [vmem:[#allocation5 + $0xd50] sm:$0xff]
    %v682 = vld [vmem:[#allocation5 + $0xd58] sm:$0xff]
    %v683 = vld [vmem:[#allocation5 + $0xd60] sm:$0xff]
    %v684 = vld [vmem:[#allocation5 + $0xd68] sm:$0xff]
    %v685 = vld [vmem:[#allocation5 + $0xd70] sm:$0xff]
    %v686 = vld [vmem:[#allocation5 + $0xd78] sm:$0xff]
    %v687 = vld [vmem:[#allocation5 + $0xd80] sm:$0xff]
    %v688 = vld [vmem:[#allocation5 + $0xd88] sm:$0xff]
    %v689 = vld [vmem:[#allocation5 + $0xd90] sm:$0xff]
    %v690 = vld [vmem:[#allocation5 + $0xd98] sm:$0xff]
    %v691 = vld [vmem:[#allocation5 + $0xda0] sm:$0xff]
    %v692 = vld [vmem:[#allocation5 + $0xda8] sm:$0xff]
    %v693 = vld [vmem:[#allocation5 + $0xdb0] sm:$0xff]
    %v694 = vld [vmem:[#allocation5 + $0xdb8] sm:$0xff]
    %v695 = vld [vmem:[#allocation5 + $0xdc0] sm:$0xff]
    %v696 = vld [vmem:[#allocation5 + $0xdc8] sm:$0xff]
    %v697 = vld [vmem:[#allocation5 + $0xdd0] sm:$0xff]
    %v698 = vld [vmem:[#allocation5 + $0xdd8] sm:$0xff]
    %v699 = vld [vmem:[#allocation5 + $0xde0] sm:$0xff]
    %v700 = vld [vmem:[#allocation5 + $0xde8] sm:$0xff]
    %v701 = vld [vmem:[#allocation5 + $0xdf0] sm:$0xff]
    %v702 = vld [vmem:[#allocation5 + $0xdf8] sm:$0xff]
    %v703 = vld [vmem:[#allocation5 + $0xe00] sm:$0xff]
    %v704 = vld [vmem:[#allocation5 + $0xe08] sm:$0xff]
    %v705 = vld [vmem:[#allocation5 + $0xe10] sm:$0xff]
    %v706 = vld [vmem:[#allocation5 + $0xe18] sm:$0xff]
    %v707 = vld [vmem:[#allocation5 + $0xe20] sm:$0xff]
    %v708 = vld [vmem:[#allocation5 + $0xe28] sm:$0xff]
    %v709 = vld [vmem:[#allocation5 + $0xe30] sm:$0xff]
    %v710 = vld [vmem:[#allocation5 + $0xe38] sm:$0xff]
    %v711 = vld [vmem:[#allocation5 + $0xe40] sm:$0xff]
    %v712 = vld [vmem:[#allocation5 + $0xe48] sm:$0xff]
    %v713 = vld [vmem:[#allocation5 + $0xe50] sm:$0xff]
    %v714 = vld [vmem:[#allocation5 + $0xe58] sm:$0xff]
    %v715 = vld [vmem:[#allocation5 + $0xe60] sm:$0xff]
    %v716 = vld [vmem:[#allocation5 + $0xe68] sm:$0xff]
    %v717 = vld [vmem:[#allocation5 + $0xe70] sm:$0xff]
    %v718 = vld [vmem:[#allocation5 + $0xe78] sm:$0xff]
    %v719 = vld [vmem:[#allocation5 + $0xe80] sm:$0xff]
    %v720 = vld [vmem:[#allocation5 + $0xe88] sm:$0xff]
    %v721 = vld [vmem:[#allocation5 + $0xe90] sm:$0xff]
    %v722 = vld [vmem:[#allocation5 + $0xe98] sm:$0xff]
    %v723 = vld [vmem:[#allocation5 + $0xea0] sm:$0xff]
    %v724 = vld [vmem:[#allocation5 + $0xea8] sm:$0xff]
    %v725 = vld [vmem:[#allocation5 + $0xeb0] sm:$0xff]
    %v726 = vld [vmem:[#allocation5 + $0xeb8] sm:$0xff]
    %v727 = vld [vmem:[#allocation5 + $0xec0] sm:$0xff]
    %v728 = vld [vmem:[#allocation5 + $0xec8] sm:$0xff]
    %v729 = vld [vmem:[#allocation5 + $0xed0] sm:$0xff]
    %v730 = vld [vmem:[#allocation5 + $0xed8] sm:$0xff]
    %v731 = vld [vmem:[#allocation5 + $0xee0] sm:$0xff]
    %v732 = vld [vmem:[#allocation5 + $0xee8] sm:$0xff]
    %v733 = vld [vmem:[#allocation5 + $0xef0] sm:$0xff]
    %v734 = vld [vmem:[#allocation5 + $0xef8] sm:$0xff]
    %v735 = vld [vmem:[#allocation5 + $0xf00] sm:$0xff]
    %v736 = vld [vmem:[#allocation5 + $0xf08] sm:$0xff]
    %v737 = vld [vmem:[#allocation5 + $0xf10] sm:$0xff]
    %v738 = vld [vmem:[#allocation5 + $0xf18] sm:$0xff]
    %v739 = vld [vmem:[#allocation5 + $0xf20] sm:$0xff]
    %v740 = vld [vmem:[#allocation5 + $0xf28] sm:$0xff]
    %v741 = vld [vmem:[#allocation5 + $0xf30] sm:$0xff]
    %v742 = vld [vmem:[#allocation5 + $0xf38] sm:$0xff]
    %v743 = vld [vmem:[#allocation5 + $0xf40] sm:$0xff]
    %v744 = vld [vmem:[#allocation5 + $0xf48] sm:$0xff]
    %v745 = vld [vmem:[#allocation5 + $0xf50] sm:$0xff]
    %v746 = vld [vmem:[#allocation5 + $0xf58] sm:$0xff]
    %v747 = vld [vmem:[#allocation5 + $0xf60] sm:$0xff]
    %v748 = vld [vmem:[#allocation5 + $0xf68] sm:$0xff]
    %v749 = vld [vmem:[#allocation5 + $0xf70] sm:$0xff]
    %v750 = vld [vmem:[#allocation5 + $0xf78] sm:$0xff]
    %v751 = vld [vmem:[#allocation5 + $0xf80] sm:$0xff]
    %v752 = vld [vmem:[#allocation5 + $0xf88] sm:$0xff]
    %v753 = vld [vmem:[#allocation5 + $0xf90] sm:$0xff]
    %v754 = vld [vmem:[#allocation5 + $0xf98] sm:$0xff]
    %v755 = vld [vmem:[#allocation5 + $0xfa0] sm:$0xff]
    %v756 = vld [vmem:[#allocation5 + $0xfa8] sm:$0xff]
    %v757 = vld [vmem:[#allocation5 + $0xfb0] sm:$0xff]
    %v758 = vld [vmem:[#allocation5 + $0xfb8] sm:$0xff]
    %v759 = vld [vmem:[#allocation5 + $0xfc0] sm:$0xff]
    %v760 = vld [vmem:[#allocation5 + $0xfc8] sm:$0xff]
    %v761 = vld [vmem:[#allocation5 + $0xfd0] sm:$0xff]
    %v762 = vld [vmem:[#allocation5 + $0xfd8] sm:$0xff]
    %v763 = vld [vmem:[#allocation5 + $0xfe0] sm:$0xff]
    %v764 = vld [vmem:[#allocation5 + $0xfe8] sm:$0xff]
    %v765 = vld [vmem:[#allocation5 + $0xff0] sm:$0xff]
    %v766 = vld [vmem:[#allocation5 + $0xff8] sm:$0xff]
    %v767 = vld [vmem:[#allocation7] sm:$0xff]
    %v769 = vperm.slane %v767, 0
    %v770 = vperm.slane %v767, 1
    %v771 = vperm.slane %v767, 2
    %v772 = vperm.slane %v767, 3
    %v773 = vperm.slane %v767, 4
    %v774 = vperm.slane %v767, 5
    %v775 = vperm.slane %v767, 6
    %v776 = vperm.slane %v767, 7
    %v801 = vunpack.c.l.b16 %v239
    %v802 = vunpack.c.l.b16 %v240
    %v803 = vunpack.c.l.b16 %v241
    %v804 = vunpack.c.l.b16 %v242
    %v805 = vunpack.c.l.b16 %v243
    %v806 = vunpack.c.l.b16 %v244
    %v807 = vunpack.c.l.b16 %v245
    %v808 = vunpack.c.l.b16 %v246
    %v809 = vunpack.c.l.b16 %v247
    %v810 = vunpack.c.l.b16 %v248
    %v811 = vunpack.c.l.b16 %v249
    %v812 = vunpack.c.l.b16 %v250
    %v813 = vunpack.c.l.b16 %v251
    %v814 = vunpack.c.l.b16 %v252
    %v815 = vunpack.c.l.b16 %v253
    %v816 = vunpack.c.l.b16 %v254
    %vm817 = vcmask 1041409
    %v818 = vsel %vm817, %v809, %v801
    %v819 = vsel %vm817, %v810, %v802
    %v820 = vsel %vm817, %v811, %v803
    %v821 = vsel %vm817, %v812, %v804
    %v822 = vsel %vm817, %v813, %v805
    %v823 = vsel %vm817, %v814, %v806
    %v824 = vsel %vm817, %v815, %v807
    %v825 = vsel %vm817, %v816, %v808
    %v826 = vpack.c.b16 %v818, %v818
    %v827 = vpack.c.b16 %v819, %v819
    %v828 = vpack.c.b16 %v820, %v820
    %v829 = vpack.c.b16 %v821, %v821
    %v830 = vpack.c.b16 %v822, %v822
    %v831 = vpack.c.b16 %v823, %v823
    %v832 = vpack.c.b16 %v824, %v824
    %v833 = vpack.c.b16 %v825, %v825
    %v1354 = vunpack.c.l.b16 %v255
    %v1355 = vunpack.c.h.b16 %v255
    %v1356 = vunpack.c.l.b16 %v256
    %v1357 = vunpack.c.h.b16 %v256
    %v1358 = vunpack.c.l.b16 %v257
    %v1359 = vunpack.c.h.b16 %v257
    %v1360 = vunpack.c.l.b16 %v258
    %v1361 = vunpack.c.h.b16 %v258
    %v1362 = vunpack.c.l.b16 %v259
    %v1363 = vunpack.c.h.b16 %v259
    %v1364 = vunpack.c.l.b16 %v260
    %v1365 = vunpack.c.h.b16 %v260
    %v1366 = vunpack.c.l.b16 %v261
    %v1367 = vunpack.c.h.b16 %v261
    %v1368 = vunpack.c.l.b16 %v262
    %v1369 = vunpack.c.h.b16 %v262
    %v1370 = vunpack.c.l.b16 %v263
    %v1371 = vunpack.c.h.b16 %v263
    %v1372 = vunpack.c.l.b16 %v264
    %v1373 = vunpack.c.h.b16 %v264
    %v1374 = vunpack.c.l.b16 %v265
    %v1375 = vunpack.c.h.b16 %v265
    %v1376 = vunpack.c.l.b16 %v266
    %v1377 = vunpack.c.h.b16 %v266
    %v1378 = vunpack.c.l.b16 %v267
    %v1379 = vunpack.c.h.b16 %v267
    %v1380 = vunpack.c.l.b16 %v268
    %v1381 = vunpack.c.h.b16 %v268
    %v1382 = vunpack.c.l.b16 %v269
    %v1383 = vunpack.c.h.b16 %v269
    %v1384 = vunpack.c.l.b16 %v270
    %v1385 = vunpack.c.h.b16 %v270
    %v1386 = vunpack.c.l.b16 %v271
    %v1387 = vunpack.c.h.b16 %v271
    %v1388 = vunpack.c.l.b16 %v272
    %v1389 = vunpack.c.h.b16 %v272
    %v1390 = vunpack.c.l.b16 %v273
    %v1391 = vunpack.c.h.b16 %v273
    %v1392 = vunpack.c.l.b16 %v274
    %v1393 = vunpack.c.h.b16 %v274
    %v1394 = vunpack.c.l.b16 %v275
    %v1395 = vunpack.c.h.b16 %v275
    %v1396 = vunpack.c.l.b16 %v276
    %v1397 = vunpack.c.h.b16 %v276
    %v1398 = vunpack.c.l.b16 %v277
    %v1399 = vunpack.c.h.b16 %v277
    %v1400 = vunpack.c.l.b16 %v278
    %v1401 = vunpack.c.h.b16 %v278
    %v1402 = vunpack.c.l.b16 %v279
    %v1403 = vunpack.c.h.b16 %v279
    %v1404 = vunpack.c.l.b16 %v280
    %v1405 = vunpack.c.h.b16 %v280
    %v1406 = vunpack.c.l.b16 %v281
    %v1407 = vunpack.c.h.b16 %v281
    %v1408 = vunpack.c.l.b16 %v282
    %v1409 = vunpack.c.h.b16 %v282
    %v1410 = vunpack.c.l.b16 %v283
    %v1411 = vunpack.c.h.b16 %v283
    %v1412 = vunpack.c.l.b16 %v284
    %v1413 = vunpack.c.h.b16 %v284
    %v1414 = vunpack.c.l.b16 %v285
    %v1415 = vunpack.c.h.b16 %v285
    %v1416 = vunpack.c.l.b16 %v286
    %v1417 = vunpack.c.h.b16 %v286
    %v1418 = vunpack.c.l.b16 %v287
    %v1419 = vunpack.c.h.b16 %v287
    %v1420 = vunpack.c.l.b16 %v288
    %v1421 = vunpack.c.h.b16 %v288
    %v1422 = vunpack.c.l.b16 %v289
    %v1423 = vunpack.c.h.b16 %v289
    %v1424 = vunpack.c.l.b16 %v290
    %v1425 = vunpack.c.h.b16 %v290
    %v1426 = vunpack.c.l.b16 %v291
    %v1427 = vunpack.c.h.b16 %v291
    %v1428 = vunpack.c.l.b16 %v292
    %v1429 = vunpack.c.h.b16 %v292
    %v1430 = vunpack.c.l.b16 %v293
    %v1431 = vunpack.c.h.b16 %v293
    %v1432 = vunpack.c.l.b16 %v294
    %v1433 = vunpack.c.h.b16 %v294
    %v1434 = vunpack.c.l.b16 %v295
    %v1435 = vunpack.c.h.b16 %v295
    %v1436 = vunpack.c.l.b16 %v296
    %v1437 = vunpack.c.h.b16 %v296
    %v1438 = vunpack.c.l.b16 %v297
    %v1439 = vunpack.c.h.b16 %v297
    %v1440 = vunpack.c.l.b16 %v298
    %v1441 = vunpack.c.h.b16 %v298
    %v1442 = vunpack.c.l.b16 %v299
    %v1443 = vunpack.c.h.b16 %v299
    %v1444 = vunpack.c.l.b16 %v300
    %v1445 = vunpack.c.h.b16 %v300
    %v1446 = vunpack.c.l.b16 %v301
    %v1447 = vunpack.c.h.b16 %v301
    %v1448 = vunpack.c.l.b16 %v302
    %v1449 = vunpack.c.h.b16 %v302
    %v1450 = vunpack.c.l.b16 %v303
    %v1451 = vunpack.c.h.b16 %v303
    %v1452 = vunpack.c.l.b16 %v304
    %v1453 = vunpack.c.h.b16 %v304
    %v1454 = vunpack.c.l.b16 %v305
    %v1455 = vunpack.c.h.b16 %v305
    %v1456 = vunpack.c.l.b16 %v306
    %v1457 = vunpack.c.h.b16 %v306
    %v1458 = vunpack.c.l.b16 %v307
    %v1459 = vunpack.c.h.b16 %v307
    %v1460 = vunpack.c.l.b16 %v308
    %v1461 = vunpack.c.h.b16 %v308
    %v1462 = vunpack.c.l.b16 %v309
    %v1463 = vunpack.c.h.b16 %v309
    %v1464 = vunpack.c.l.b16 %v310
    %v1465 = vunpack.c.h.b16 %v310
    %v1466 = vunpack.c.l.b16 %v311
    %v1467 = vunpack.c.h.b16 %v311
    %v1468 = vunpack.c.l.b16 %v312
    %v1469 = vunpack.c.h.b16 %v312
    %v1470 = vunpack.c.l.b16 %v313
    %v1471 = vunpack.c.h.b16 %v313
    %v1472 = vunpack.c.l.b16 %v314
    %v1473 = vunpack.c.h.b16 %v314
    %v1474 = vunpack.c.l.b16 %v315
    %v1475 = vunpack.c.h.b16 %v315
    %v1476 = vunpack.c.l.b16 %v316
    %v1477 = vunpack.c.h.b16 %v316
    %v1478 = vunpack.c.l.b16 %v317
    %v1479 = vunpack.c.h.b16 %v317
    %v1480 = vunpack.c.l.b16 %v318
    %v1481 = vunpack.c.h.b16 %v318
    %v1482 = vunpack.c.l.b16 %v319
    %v1483 = vunpack.c.h.b16 %v319
    %v1484 = vunpack.c.l.b16 %v320
    %v1485 = vunpack.c.h.b16 %v320
    %v1486 = vunpack.c.l.b16 %v321
    %v1487 = vunpack.c.h.b16 %v321
    %v1488 = vunpack.c.l.b16 %v322
    %v1489 = vunpack.c.h.b16 %v322
    %v1490 = vunpack.c.l.b16 %v323
    %v1491 = vunpack.c.h.b16 %v323
    %v1492 = vunpack.c.l.b16 %v324
    %v1493 = vunpack.c.h.b16 %v324
    %v1494 = vunpack.c.l.b16 %v325
    %v1495 = vunpack.c.h.b16 %v325
    %v1496 = vunpack.c.l.b16 %v326
    %v1497 = vunpack.c.h.b16 %v326
    %v1498 = vunpack.c.l.b16 %v327
    %v1499 = vunpack.c.h.b16 %v327
    %v1500 = vunpack.c.l.b16 %v328
    %v1501 = vunpack.c.h.b16 %v328
    %v1502 = vunpack.c.l.b16 %v329
    %v1503 = vunpack.c.h.b16 %v329
    %v1504 = vunpack.c.l.b16 %v330
    %v1505 = vunpack.c.h.b16 %v330
    %v1506 = vunpack.c.l.b16 %v331
    %v1507 = vunpack.c.h.b16 %v331
    %v1508 = vunpack.c.l.b16 %v332
    %v1509 = vunpack.c.h.b16 %v332
    %v1510 = vunpack.c.l.b16 %v333
    %v1511 = vunpack.c.h.b16 %v333
    %v1512 = vunpack.c.l.b16 %v334
    %v1513 = vunpack.c.h.b16 %v334
    %v1514 = vunpack.c.l.b16 %v335
    %v1515 = vunpack.c.h.b16 %v335
    %v1516 = vunpack.c.l.b16 %v336
    %v1517 = vunpack.c.h.b16 %v336
    %v1518 = vunpack.c.l.b16 %v337
    %v1519 = vunpack.c.h.b16 %v337
    %v1520 = vunpack.c.l.b16 %v338
    %v1521 = vunpack.c.h.b16 %v338
    %v1522 = vunpack.c.l.b16 %v339
    %v1523 = vunpack.c.h.b16 %v339
    %v1524 = vunpack.c.l.b16 %v340
    %v1525 = vunpack.c.h.b16 %v340
    %v1526 = vunpack.c.l.b16 %v341
    %v1527 = vunpack.c.h.b16 %v341
    %v1528 = vunpack.c.l.b16 %v342
    %v1529 = vunpack.c.h.b16 %v342
    %v1530 = vunpack.c.l.b16 %v343
    %v1531 = vunpack.c.h.b16 %v343
    %v1532 = vunpack.c.l.b16 %v344
    %v1533 = vunpack.c.h.b16 %v344
    %v1534 = vunpack.c.l.b16 %v345
    %v1535 = vunpack.c.h.b16 %v345
    %v1536 = vunpack.c.l.b16 %v346
    %v1537 = vunpack.c.h.b16 %v346
    %v1538 = vunpack.c.l.b16 %v347
    %v1539 = vunpack.c.h.b16 %v347
    %v1540 = vunpack.c.l.b16 %v348
    %v1541 = vunpack.c.h.b16 %v348
    %v1542 = vunpack.c.l.b16 %v349
    %v1543 = vunpack.c.h.b16 %v349
    %v1544 = vunpack.c.l.b16 %v350
    %v1545 = vunpack.c.h.b16 %v350
    %v1546 = vunpack.c.l.b16 %v351
    %v1547 = vunpack.c.h.b16 %v351
    %v1548 = vunpack.c.l.b16 %v352
    %v1549 = vunpack.c.h.b16 %v352
    %v1550 = vunpack.c.l.b16 %v353
    %v1551 = vunpack.c.h.b16 %v353
    %v1552 = vunpack.c.l.b16 %v354
    %v1553 = vunpack.c.h.b16 %v354
    %v1554 = vunpack.c.l.b16 %v355
    %v1555 = vunpack.c.h.b16 %v355
    %v1556 = vunpack.c.l.b16 %v356
    %v1557 = vunpack.c.h.b16 %v356
    %v1558 = vunpack.c.l.b16 %v357
    %v1559 = vunpack.c.h.b16 %v357
    %v1560 = vunpack.c.l.b16 %v358
    %v1561 = vunpack.c.h.b16 %v358
    %v1562 = vunpack.c.l.b16 %v359
    %v1563 = vunpack.c.h.b16 %v359
    %v1564 = vunpack.c.l.b16 %v360
    %v1565 = vunpack.c.h.b16 %v360
    %v1566 = vunpack.c.l.b16 %v361
    %v1567 = vunpack.c.h.b16 %v361
    %v1568 = vunpack.c.l.b16 %v362
    %v1569 = vunpack.c.h.b16 %v362
    %v1570 = vunpack.c.l.b16 %v363
    %v1571 = vunpack.c.h.b16 %v363
    %v1572 = vunpack.c.l.b16 %v364
    %v1573 = vunpack.c.h.b16 %v364
    %v1574 = vunpack.c.l.b16 %v365
    %v1575 = vunpack.c.h.b16 %v365
    %v1576 = vunpack.c.l.b16 %v366
    %v1577 = vunpack.c.h.b16 %v366
    %v1578 = vunpack.c.l.b16 %v367
    %v1579 = vunpack.c.h.b16 %v367
    %v1580 = vunpack.c.l.b16 %v368
    %v1581 = vunpack.c.h.b16 %v368
    %v1582 = vunpack.c.l.b16 %v369
    %v1583 = vunpack.c.h.b16 %v369
    %v1584 = vunpack.c.l.b16 %v370
    %v1585 = vunpack.c.h.b16 %v370
    %v1586 = vunpack.c.l.b16 %v371
    %v1587 = vunpack.c.h.b16 %v371
    %v1588 = vunpack.c.l.b16 %v372
    %v1589 = vunpack.c.h.b16 %v372
    %v1590 = vunpack.c.l.b16 %v373
    %v1591 = vunpack.c.h.b16 %v373
    %v1592 = vunpack.c.l.b16 %v374
    %v1593 = vunpack.c.h.b16 %v374
    %v1594 = vunpack.c.l.b16 %v375
    %v1595 = vunpack.c.h.b16 %v375
    %v1596 = vunpack.c.l.b16 %v376
    %v1597 = vunpack.c.h.b16 %v376
    %v1598 = vunpack.c.l.b16 %v377
    %v1599 = vunpack.c.h.b16 %v377
    %v1600 = vunpack.c.l.b16 %v378
    %v1601 = vunpack.c.h.b16 %v378
    %v1602 = vunpack.c.l.b16 %v379
    %v1603 = vunpack.c.h.b16 %v379
    %v1604 = vunpack.c.l.b16 %v380
    %v1605 = vunpack.c.h.b16 %v380
    %v1606 = vunpack.c.l.b16 %v381
    %v1607 = vunpack.c.h.b16 %v381
    %v1608 = vunpack.c.l.b16 %v382
    %v1609 = vunpack.c.h.b16 %v382
    %v1610 = vunpack.c.l.b16 %v383
    %v1611 = vunpack.c.h.b16 %v383
    %v1612 = vunpack.c.l.b16 %v384
    %v1613 = vunpack.c.h.b16 %v384
    %v1614 = vunpack.c.l.b16 %v385
    %v1615 = vunpack.c.h.b16 %v385
    %v1616 = vunpack.c.l.b16 %v386
    %v1617 = vunpack.c.h.b16 %v386
    %v1618 = vunpack.c.l.b16 %v387
    %v1619 = vunpack.c.h.b16 %v387
    %v1620 = vunpack.c.l.b16 %v388
    %v1621 = vunpack.c.h.b16 %v388
    %v1622 = vunpack.c.l.b16 %v389
    %v1623 = vunpack.c.h.b16 %v389
    %v1624 = vunpack.c.l.b16 %v390
    %v1625 = vunpack.c.h.b16 %v390
    %v1626 = vunpack.c.l.b16 %v391
    %v1627 = vunpack.c.h.b16 %v391
    %v1628 = vunpack.c.l.b16 %v392
    %v1629 = vunpack.c.h.b16 %v392
    %v1630 = vunpack.c.l.b16 %v393
    %v1631 = vunpack.c.h.b16 %v393
    %v1632 = vunpack.c.l.b16 %v394
    %v1633 = vunpack.c.h.b16 %v394
    %v1634 = vunpack.c.l.b16 %v395
    %v1635 = vunpack.c.h.b16 %v395
    %v1636 = vunpack.c.l.b16 %v396
    %v1637 = vunpack.c.h.b16 %v396
    %v1638 = vunpack.c.l.b16 %v397
    %v1639 = vunpack.c.h.b16 %v397
    %v1640 = vunpack.c.l.b16 %v398
    %v1641 = vunpack.c.h.b16 %v398
    %v1642 = vunpack.c.l.b16 %v399
    %v1643 = vunpack.c.h.b16 %v399
    %v1644 = vunpack.c.l.b16 %v400
    %v1645 = vunpack.c.h.b16 %v400
    %v1646 = vunpack.c.l.b16 %v401
    %v1647 = vunpack.c.h.b16 %v401
    %v1648 = vunpack.c.l.b16 %v402
    %v1649 = vunpack.c.h.b16 %v402
    %v1650 = vunpack.c.l.b16 %v403
    %v1651 = vunpack.c.h.b16 %v403
    %v1652 = vunpack.c.l.b16 %v404
    %v1653 = vunpack.c.h.b16 %v404
    %v1654 = vunpack.c.l.b16 %v405
    %v1655 = vunpack.c.h.b16 %v405
    %v1656 = vunpack.c.l.b16 %v406
    %v1657 = vunpack.c.h.b16 %v406
    %v1658 = vunpack.c.l.b16 %v407
    %v1659 = vunpack.c.h.b16 %v407
    %v1660 = vunpack.c.l.b16 %v408
    %v1661 = vunpack.c.h.b16 %v408
    %v1662 = vunpack.c.l.b16 %v409
    %v1663 = vunpack.c.h.b16 %v409
    %v1664 = vunpack.c.l.b16 %v410
    %v1665 = vunpack.c.h.b16 %v410
    %v1666 = vunpack.c.l.b16 %v411
    %v1667 = vunpack.c.h.b16 %v411
    %v1668 = vunpack.c.l.b16 %v412
    %v1669 = vunpack.c.h.b16 %v412
    %v1670 = vunpack.c.l.b16 %v413
    %v1671 = vunpack.c.h.b16 %v413
    %v1672 = vunpack.c.l.b16 %v414
    %v1673 = vunpack.c.h.b16 %v414
    %v1674 = vunpack.c.l.b16 %v415
    %v1675 = vunpack.c.h.b16 %v415
    %v1676 = vunpack.c.l.b16 %v416
    %v1677 = vunpack.c.h.b16 %v416
    %v1678 = vunpack.c.l.b16 %v417
    %v1679 = vunpack.c.h.b16 %v417
    %v1680 = vunpack.c.l.b16 %v418
    %v1681 = vunpack.c.h.b16 %v418
    %v1682 = vunpack.c.l.b16 %v419
    %v1683 = vunpack.c.h.b16 %v419
    %v1684 = vunpack.c.l.b16 %v420
    %v1685 = vunpack.c.h.b16 %v420
    %v1686 = vunpack.c.l.b16 %v421
    %v1687 = vunpack.c.h.b16 %v421
    %v1688 = vunpack.c.l.b16 %v422
    %v1689 = vunpack.c.h.b16 %v422
    %v1690 = vunpack.c.l.b16 %v423
    %v1691 = vunpack.c.h.b16 %v423
    %v1692 = vunpack.c.l.b16 %v424
    %v1693 = vunpack.c.h.b16 %v424
    %v1694 = vunpack.c.l.b16 %v425
    %v1695 = vunpack.c.h.b16 %v425
    %v1696 = vunpack.c.l.b16 %v426
    %v1697 = vunpack.c.h.b16 %v426
    %v1698 = vunpack.c.l.b16 %v427
    %v1699 = vunpack.c.h.b16 %v427
    %v1700 = vunpack.c.l.b16 %v428
    %v1701 = vunpack.c.h.b16 %v428
    %v1702 = vunpack.c.l.b16 %v429
    %v1703 = vunpack.c.h.b16 %v429
    %v1704 = vunpack.c.l.b16 %v430
    %v1705 = vunpack.c.h.b16 %v430
    %v1706 = vunpack.c.l.b16 %v431
    %v1707 = vunpack.c.h.b16 %v431
    %v1708 = vunpack.c.l.b16 %v432
    %v1709 = vunpack.c.h.b16 %v432
    %v1710 = vunpack.c.l.b16 %v433
    %v1711 = vunpack.c.h.b16 %v433
    %v1712 = vunpack.c.l.b16 %v434
    %v1713 = vunpack.c.h.b16 %v434
    %v1714 = vunpack.c.l.b16 %v435
    %v1715 = vunpack.c.h.b16 %v435
    %v1716 = vunpack.c.l.b16 %v436
    %v1717 = vunpack.c.h.b16 %v436
    %v1718 = vunpack.c.l.b16 %v437
    %v1719 = vunpack.c.h.b16 %v437
    %v1720 = vunpack.c.l.b16 %v438
    %v1721 = vunpack.c.h.b16 %v438
    %v1722 = vunpack.c.l.b16 %v439
    %v1723 = vunpack.c.h.b16 %v439
    %v1724 = vunpack.c.l.b16 %v440
    %v1725 = vunpack.c.h.b16 %v440
    %v1726 = vunpack.c.l.b16 %v441
    %v1727 = vunpack.c.h.b16 %v441
    %v1728 = vunpack.c.l.b16 %v442
    %v1729 = vunpack.c.h.b16 %v442
    %v1730 = vunpack.c.l.b16 %v443
    %v1731 = vunpack.c.h.b16 %v443
    %v1732 = vunpack.c.l.b16 %v444
    %v1733 = vunpack.c.h.b16 %v444
    %v1734 = vunpack.c.l.b16 %v445
    %v1735 = vunpack.c.h.b16 %v445
    %v1736 = vunpack.c.l.b16 %v446
    %v1737 = vunpack.c.h.b16 %v446
    %v1738 = vunpack.c.l.b16 %v447
    %v1739 = vunpack.c.h.b16 %v447
    %v1740 = vunpack.c.l.b16 %v448
    %v1741 = vunpack.c.h.b16 %v448
    %v1742 = vunpack.c.l.b16 %v449
    %v1743 = vunpack.c.h.b16 %v449
    %v1744 = vunpack.c.l.b16 %v450
    %v1745 = vunpack.c.h.b16 %v450
    %v1746 = vunpack.c.l.b16 %v451
    %v1747 = vunpack.c.h.b16 %v451
    %v1748 = vunpack.c.l.b16 %v452
    %v1749 = vunpack.c.h.b16 %v452
    %v1750 = vunpack.c.l.b16 %v453
    %v1751 = vunpack.c.h.b16 %v453
    %v1752 = vunpack.c.l.b16 %v454
    %v1753 = vunpack.c.h.b16 %v454
    %v1754 = vunpack.c.l.b16 %v455
    %v1755 = vunpack.c.h.b16 %v455
    %v1756 = vunpack.c.l.b16 %v456
    %v1757 = vunpack.c.h.b16 %v456
    %v1758 = vunpack.c.l.b16 %v457
    %v1759 = vunpack.c.h.b16 %v457
    %v1760 = vunpack.c.l.b16 %v458
    %v1761 = vunpack.c.h.b16 %v458
    %v1762 = vunpack.c.l.b16 %v459
    %v1763 = vunpack.c.h.b16 %v459
    %v1764 = vunpack.c.l.b16 %v460
    %v1765 = vunpack.c.h.b16 %v460
    %v1766 = vunpack.c.l.b16 %v461
    %v1767 = vunpack.c.h.b16 %v461
    %v1768 = vunpack.c.l.b16 %v462
    %v1769 = vunpack.c.h.b16 %v462
    %v1770 = vunpack.c.l.b16 %v463
    %v1771 = vunpack.c.h.b16 %v463
    %v1772 = vunpack.c.l.b16 %v464
    %v1773 = vunpack.c.h.b16 %v464
    %v1774 = vunpack.c.l.b16 %v465
    %v1775 = vunpack.c.h.b16 %v465
    %v1776 = vunpack.c.l.b16 %v466
    %v1777 = vunpack.c.h.b16 %v466
    %v1778 = vunpack.c.l.b16 %v467
    %v1779 = vunpack.c.h.b16 %v467
    %v1780 = vunpack.c.l.b16 %v468
    %v1781 = vunpack.c.h.b16 %v468
    %v1782 = vunpack.c.l.b16 %v469
    %v1783 = vunpack.c.h.b16 %v469
    %v1784 = vunpack.c.l.b16 %v470
    %v1785 = vunpack.c.h.b16 %v470
    %v1786 = vunpack.c.l.b16 %v471
    %v1787 = vunpack.c.h.b16 %v471
    %v1788 = vunpack.c.l.b16 %v472
    %v1789 = vunpack.c.h.b16 %v472
    %v1790 = vunpack.c.l.b16 %v473
    %v1791 = vunpack.c.h.b16 %v473
    %v1792 = vunpack.c.l.b16 %v474
    %v1793 = vunpack.c.h.b16 %v474
    %v1794 = vunpack.c.l.b16 %v475
    %v1795 = vunpack.c.h.b16 %v475
    %v1796 = vunpack.c.l.b16 %v476
    %v1797 = vunpack.c.h.b16 %v476
    %v1798 = vunpack.c.l.b16 %v477
    %v1799 = vunpack.c.h.b16 %v477
    %v1800 = vunpack.c.l.b16 %v478
    %v1801 = vunpack.c.h.b16 %v478
    %v1802 = vunpack.c.l.b16 %v479
    %v1803 = vunpack.c.h.b16 %v479
    %v1804 = vunpack.c.l.b16 %v480
    %v1805 = vunpack.c.h.b16 %v480
    %v1806 = vunpack.c.l.b16 %v481
    %v1807 = vunpack.c.h.b16 %v481
    %v1808 = vunpack.c.l.b16 %v482
    %v1809 = vunpack.c.h.b16 %v482
    %v1810 = vunpack.c.l.b16 %v483
    %v1811 = vunpack.c.h.b16 %v483
    %v1812 = vunpack.c.l.b16 %v484
    %v1813 = vunpack.c.h.b16 %v484
    %v1814 = vunpack.c.l.b16 %v485
    %v1815 = vunpack.c.h.b16 %v485
    %v1816 = vunpack.c.l.b16 %v486
    %v1817 = vunpack.c.h.b16 %v486
    %v1818 = vunpack.c.l.b16 %v487
    %v1819 = vunpack.c.h.b16 %v487
    %v1820 = vunpack.c.l.b16 %v488
    %v1821 = vunpack.c.h.b16 %v488
    %v1822 = vunpack.c.l.b16 %v489
    %v1823 = vunpack.c.h.b16 %v489
    %v1824 = vunpack.c.l.b16 %v490
    %v1825 = vunpack.c.h.b16 %v490
    %v1826 = vunpack.c.l.b16 %v491
    %v1827 = vunpack.c.h.b16 %v491
    %v1828 = vunpack.c.l.b16 %v492
    %v1829 = vunpack.c.h.b16 %v492
    %v1830 = vunpack.c.l.b16 %v493
    %v1831 = vunpack.c.h.b16 %v493
    %v1832 = vunpack.c.l.b16 %v494
    %v1833 = vunpack.c.h.b16 %v494
    %v1834 = vunpack.c.l.b16 %v495
    %v1835 = vunpack.c.h.b16 %v495
    %v1836 = vunpack.c.l.b16 %v496
    %v1837 = vunpack.c.h.b16 %v496
    %v1838 = vunpack.c.l.b16 %v497
    %v1839 = vunpack.c.h.b16 %v497
    %v1840 = vunpack.c.l.b16 %v498
    %v1841 = vunpack.c.h.b16 %v498
    %v1842 = vunpack.c.l.b16 %v499
    %v1843 = vunpack.c.h.b16 %v499
    %v1844 = vunpack.c.l.b16 %v500
    %v1845 = vunpack.c.h.b16 %v500
    %v1846 = vunpack.c.l.b16 %v501
    %v1847 = vunpack.c.h.b16 %v501
    %v1848 = vunpack.c.l.b16 %v502
    %v1849 = vunpack.c.h.b16 %v502
    %v1850 = vunpack.c.l.b16 %v503
    %v1851 = vunpack.c.h.b16 %v503
    %v1852 = vunpack.c.l.b16 %v504
    %v1853 = vunpack.c.h.b16 %v504
    %v1854 = vunpack.c.l.b16 %v505
    %v1855 = vunpack.c.h.b16 %v505
    %v1856 = vunpack.c.l.b16 %v506
    %v1857 = vunpack.c.h.b16 %v506
    %v1858 = vunpack.c.l.b16 %v507
    %v1859 = vunpack.c.h.b16 %v507
    %v1860 = vunpack.c.l.b16 %v508
    %v1861 = vunpack.c.h.b16 %v508
    %v1862 = vunpack.c.l.b16 %v509
    %v1863 = vunpack.c.h.b16 %v509
    %v1864 = vunpack.c.l.b16 %v510
    %v1865 = vunpack.c.h.b16 %v510
    %v1866 = vunpack.c.l.b16 %v511
    %v1867 = vunpack.c.h.b16 %v511
    %v1868 = vunpack.c.l.b16 %v512
    %v1869 = vunpack.c.h.b16 %v512
    %v1870 = vunpack.c.l.b16 %v513
    %v1871 = vunpack.c.h.b16 %v513
    %v1872 = vunpack.c.l.b16 %v514
    %v1873 = vunpack.c.h.b16 %v514
    %v1874 = vunpack.c.l.b16 %v515
    %v1875 = vunpack.c.h.b16 %v515
    %v1876 = vunpack.c.l.b16 %v516
    %v1877 = vunpack.c.h.b16 %v516
    %v1878 = vunpack.c.l.b16 %v517
    %v1879 = vunpack.c.h.b16 %v517
    %v1880 = vunpack.c.l.b16 %v518
    %v1881 = vunpack.c.h.b16 %v518
    %v1882 = vunpack.c.l.b16 %v519
    %v1883 = vunpack.c.h.b16 %v519
    %v1884 = vunpack.c.l.b16 %v520
    %v1885 = vunpack.c.h.b16 %v520
    %v1886 = vunpack.c.l.b16 %v521
    %v1887 = vunpack.c.h.b16 %v521
    %v1888 = vunpack.c.l.b16 %v522
    %v1889 = vunpack.c.h.b16 %v522
    %v1890 = vunpack.c.l.b16 %v523
    %v1891 = vunpack.c.h.b16 %v523
    %v1892 = vunpack.c.l.b16 %v524
    %v1893 = vunpack.c.h.b16 %v524
    %v1894 = vunpack.c.l.b16 %v525
    %v1895 = vunpack.c.h.b16 %v525
    %v1896 = vunpack.c.l.b16 %v526
    %v1897 = vunpack.c.h.b16 %v526
    %v1898 = vunpack.c.l.b16 %v527
    %v1899 = vunpack.c.h.b16 %v527
    %v1900 = vunpack.c.l.b16 %v528
    %v1901 = vunpack.c.h.b16 %v528
    %v1902 = vunpack.c.l.b16 %v529
    %v1903 = vunpack.c.h.b16 %v529
    %v1904 = vunpack.c.l.b16 %v530
    %v1905 = vunpack.c.h.b16 %v530
    %v1906 = vunpack.c.l.b16 %v531
    %v1907 = vunpack.c.h.b16 %v531
    %v1908 = vunpack.c.l.b16 %v532
    %v1909 = vunpack.c.h.b16 %v532
    %v1910 = vunpack.c.l.b16 %v533
    %v1911 = vunpack.c.h.b16 %v533
    %v1912 = vunpack.c.l.b16 %v534
    %v1913 = vunpack.c.h.b16 %v534
    %v1914 = vunpack.c.l.b16 %v535
    %v1915 = vunpack.c.h.b16 %v535
    %v1916 = vunpack.c.l.b16 %v536
    %v1917 = vunpack.c.h.b16 %v536
    %v1918 = vunpack.c.l.b16 %v537
    %v1919 = vunpack.c.h.b16 %v537
    %v1920 = vunpack.c.l.b16 %v538
    %v1921 = vunpack.c.h.b16 %v538
    %v1922 = vunpack.c.l.b16 %v539
    %v1923 = vunpack.c.h.b16 %v539
    %v1924 = vunpack.c.l.b16 %v540
    %v1925 = vunpack.c.h.b16 %v540
    %v1926 = vunpack.c.l.b16 %v541
    %v1927 = vunpack.c.h.b16 %v541
    %v1928 = vunpack.c.l.b16 %v542
    %v1929 = vunpack.c.h.b16 %v542
    %v1930 = vunpack.c.l.b16 %v543
    %v1931 = vunpack.c.h.b16 %v543
    %v1932 = vunpack.c.l.b16 %v544
    %v1933 = vunpack.c.h.b16 %v544
    %v1934 = vunpack.c.l.b16 %v545
    %v1935 = vunpack.c.h.b16 %v545
    %v1936 = vunpack.c.l.b16 %v546
    %v1937 = vunpack.c.h.b16 %v546
    %v1938 = vunpack.c.l.b16 %v547
    %v1939 = vunpack.c.h.b16 %v547
    %v1940 = vunpack.c.l.b16 %v548
    %v1941 = vunpack.c.h.b16 %v548
    %v1942 = vunpack.c.l.b16 %v549
    %v1943 = vunpack.c.h.b16 %v549
    %v1944 = vunpack.c.l.b16 %v550
    %v1945 = vunpack.c.h.b16 %v550
    %v1946 = vunpack.c.l.b16 %v551
    %v1947 = vunpack.c.h.b16 %v551
    %v1948 = vunpack.c.l.b16 %v552
    %v1949 = vunpack.c.h.b16 %v552
    %v1950 = vunpack.c.l.b16 %v553
    %v1951 = vunpack.c.h.b16 %v553
    %v1952 = vunpack.c.l.b16 %v554
    %v1953 = vunpack.c.h.b16 %v554
    %v1954 = vunpack.c.l.b16 %v555
    %v1955 = vunpack.c.h.b16 %v555
    %v1956 = vunpack.c.l.b16 %v556
    %v1957 = vunpack.c.h.b16 %v556
    %v1958 = vunpack.c.l.b16 %v557
    %v1959 = vunpack.c.h.b16 %v557
    %v1960 = vunpack.c.l.b16 %v558
    %v1961 = vunpack.c.h.b16 %v558
    %v1962 = vunpack.c.l.b16 %v559
    %v1963 = vunpack.c.h.b16 %v559
    %v1964 = vunpack.c.l.b16 %v560
    %v1965 = vunpack.c.h.b16 %v560
    %v1966 = vunpack.c.l.b16 %v561
    %v1967 = vunpack.c.h.b16 %v561
    %v1968 = vunpack.c.l.b16 %v562
    %v1969 = vunpack.c.h.b16 %v562
    %v1970 = vunpack.c.l.b16 %v563
    %v1971 = vunpack.c.h.b16 %v563
    %v1972 = vunpack.c.l.b16 %v564
    %v1973 = vunpack.c.h.b16 %v564
    %v1974 = vunpack.c.l.b16 %v565
    %v1975 = vunpack.c.h.b16 %v565
    %v1976 = vunpack.c.l.b16 %v566
    %v1977 = vunpack.c.h.b16 %v566
    %v1978 = vunpack.c.l.b16 %v567
    %v1979 = vunpack.c.h.b16 %v567
    %v1980 = vunpack.c.l.b16 %v568
    %v1981 = vunpack.c.h.b16 %v568
    %v1982 = vunpack.c.l.b16 %v569
    %v1983 = vunpack.c.h.b16 %v569
    %v1984 = vunpack.c.l.b16 %v570
    %v1985 = vunpack.c.h.b16 %v570
    %v1986 = vunpack.c.l.b16 %v571
    %v1987 = vunpack.c.h.b16 %v571
    %v1988 = vunpack.c.l.b16 %v572
    %v1989 = vunpack.c.h.b16 %v572
    %v1990 = vunpack.c.l.b16 %v573
    %v1991 = vunpack.c.h.b16 %v573
    %v1992 = vunpack.c.l.b16 %v574
    %v1993 = vunpack.c.h.b16 %v574
    %v1994 = vunpack.c.l.b16 %v575
    %v1995 = vunpack.c.h.b16 %v575
    %v1996 = vunpack.c.l.b16 %v576
    %v1997 = vunpack.c.h.b16 %v576
    %v1998 = vunpack.c.l.b16 %v577
    %v1999 = vunpack.c.h.b16 %v577
    %v2000 = vunpack.c.l.b16 %v578
    %v2001 = vunpack.c.h.b16 %v578
    %v2002 = vunpack.c.l.b16 %v579
    %v2003 = vunpack.c.h.b16 %v579
    %v2004 = vunpack.c.l.b16 %v580
    %v2005 = vunpack.c.h.b16 %v580
    %v2006 = vunpack.c.l.b16 %v581
    %v2007 = vunpack.c.h.b16 %v581
    %v2008 = vunpack.c.l.b16 %v582
    %v2009 = vunpack.c.h.b16 %v582
    %v2010 = vunpack.c.l.b16 %v583
    %v2011 = vunpack.c.h.b16 %v583
    %v2012 = vunpack.c.l.b16 %v584
    %v2013 = vunpack.c.h.b16 %v584
    %v2014 = vunpack.c.l.b16 %v585
    %v2015 = vunpack.c.h.b16 %v585
    %v2016 = vunpack.c.l.b16 %v586
    %v2017 = vunpack.c.h.b16 %v586
    %v2018 = vunpack.c.l.b16 %v587
    %v2019 = vunpack.c.h.b16 %v587
    %v2020 = vunpack.c.l.b16 %v588
    %v2021 = vunpack.c.h.b16 %v588
    %v2022 = vunpack.c.l.b16 %v589
    %v2023 = vunpack.c.h.b16 %v589
    %v2024 = vunpack.c.l.b16 %v590
    %v2025 = vunpack.c.h.b16 %v590
    %v2026 = vunpack.c.l.b16 %v591
    %v2027 = vunpack.c.h.b16 %v591
    %v2028 = vunpack.c.l.b16 %v592
    %v2029 = vunpack.c.h.b16 %v592
    %v2030 = vunpack.c.l.b16 %v593
    %v2031 = vunpack.c.h.b16 %v593
    %v2032 = vunpack.c.l.b16 %v594
    %v2033 = vunpack.c.h.b16 %v594
    %v2034 = vunpack.c.l.b16 %v595
    %v2035 = vunpack.c.h.b16 %v595
    %v2036 = vunpack.c.l.b16 %v596
    %v2037 = vunpack.c.h.b16 %v596
    %v2038 = vunpack.c.l.b16 %v597
    %v2039 = vunpack.c.h.b16 %v597
    %v2040 = vunpack.c.l.b16 %v598
    %v2041 = vunpack.c.h.b16 %v598
    %v2042 = vunpack.c.l.b16 %v599
    %v2043 = vunpack.c.h.b16 %v599
    %v2044 = vunpack.c.l.b16 %v600
    %v2045 = vunpack.c.h.b16 %v600
    %v2046 = vunpack.c.l.b16 %v601
    %v2047 = vunpack.c.h.b16 %v601
    %v2048 = vunpack.c.l.b16 %v602
    %v2049 = vunpack.c.h.b16 %v602
    %v2050 = vunpack.c.l.b16 %v603
    %v2051 = vunpack.c.h.b16 %v603
    %v2052 = vunpack.c.l.b16 %v604
    %v2053 = vunpack.c.h.b16 %v604
    %v2054 = vunpack.c.l.b16 %v605
    %v2055 = vunpack.c.h.b16 %v605
    %v2056 = vunpack.c.l.b16 %v606
    %v2057 = vunpack.c.h.b16 %v606
    %v2058 = vunpack.c.l.b16 %v607
    %v2059 = vunpack.c.h.b16 %v607
    %v2060 = vunpack.c.l.b16 %v608
    %v2061 = vunpack.c.h.b16 %v608
    %v2062 = vunpack.c.l.b16 %v609
    %v2063 = vunpack.c.h.b16 %v609
    %v2064 = vunpack.c.l.b16 %v610
    %v2065 = vunpack.c.h.b16 %v610
    %v2066 = vunpack.c.l.b16 %v611
    %v2067 = vunpack.c.h.b16 %v611
    %v2068 = vunpack.c.l.b16 %v612
    %v2069 = vunpack.c.h.b16 %v612
    %v2070 = vunpack.c.l.b16 %v613
    %v2071 = vunpack.c.h.b16 %v613
    %v2072 = vunpack.c.l.b16 %v614
    %v2073 = vunpack.c.h.b16 %v614
    %v2074 = vunpack.c.l.b16 %v615
    %v2075 = vunpack.c.h.b16 %v615
    %v2076 = vunpack.c.l.b16 %v616
    %v2077 = vunpack.c.h.b16 %v616
    %v2078 = vunpack.c.l.b16 %v617
    %v2079 = vunpack.c.h.b16 %v617
    %v2080 = vunpack.c.l.b16 %v618
    %v2081 = vunpack.c.h.b16 %v618
    %v2082 = vunpack.c.l.b16 %v619
    %v2083 = vunpack.c.h.b16 %v619
    %v2084 = vunpack.c.l.b16 %v620
    %v2085 = vunpack.c.h.b16 %v620
    %v2086 = vunpack.c.l.b16 %v621
    %v2087 = vunpack.c.h.b16 %v621
    %v2088 = vunpack.c.l.b16 %v622
    %v2089 = vunpack.c.h.b16 %v622
    %v2090 = vunpack.c.l.b16 %v623
    %v2091 = vunpack.c.h.b16 %v623
    %v2092 = vunpack.c.l.b16 %v624
    %v2093 = vunpack.c.h.b16 %v624
    %v2094 = vunpack.c.l.b16 %v625
    %v2095 = vunpack.c.h.b16 %v625
    %v2096 = vunpack.c.l.b16 %v626
    %v2097 = vunpack.c.h.b16 %v626
    %v2098 = vunpack.c.l.b16 %v627
    %v2099 = vunpack.c.h.b16 %v627
    %v2100 = vunpack.c.l.b16 %v628
    %v2101 = vunpack.c.h.b16 %v628
    %v2102 = vunpack.c.l.b16 %v629
    %v2103 = vunpack.c.h.b16 %v629
    %v2104 = vunpack.c.l.b16 %v630
    %v2105 = vunpack.c.h.b16 %v630
    %v2106 = vunpack.c.l.b16 %v631
    %v2107 = vunpack.c.h.b16 %v631
    %v2108 = vunpack.c.l.b16 %v632
    %v2109 = vunpack.c.h.b16 %v632
    %v2110 = vunpack.c.l.b16 %v633
    %v2111 = vunpack.c.h.b16 %v633
    %v2112 = vunpack.c.l.b16 %v634
    %v2113 = vunpack.c.h.b16 %v634
    %v2114 = vunpack.c.l.b16 %v635
    %v2115 = vunpack.c.h.b16 %v635
    %v2116 = vunpack.c.l.b16 %v636
    %v2117 = vunpack.c.h.b16 %v636
    %v2118 = vunpack.c.l.b16 %v637
    %v2119 = vunpack.c.h.b16 %v637
    %v2120 = vunpack.c.l.b16 %v638
    %v2121 = vunpack.c.h.b16 %v638
    %v2122 = vunpack.c.l.b16 %v639
    %v2123 = vunpack.c.h.b16 %v639
    %v2124 = vunpack.c.l.b16 %v640
    %v2125 = vunpack.c.h.b16 %v640
    %v2126 = vunpack.c.l.b16 %v641
    %v2127 = vunpack.c.h.b16 %v641
    %v2128 = vunpack.c.l.b16 %v642
    %v2129 = vunpack.c.h.b16 %v642
    %v2130 = vunpack.c.l.b16 %v643
    %v2131 = vunpack.c.h.b16 %v643
    %v2132 = vunpack.c.l.b16 %v644
    %v2133 = vunpack.c.h.b16 %v644
    %v2134 = vunpack.c.l.b16 %v645
    %v2135 = vunpack.c.h.b16 %v645
    %v2136 = vunpack.c.l.b16 %v646
    %v2137 = vunpack.c.h.b16 %v646
    %v2138 = vunpack.c.l.b16 %v647
    %v2139 = vunpack.c.h.b16 %v647
    %v2140 = vunpack.c.l.b16 %v648
    %v2141 = vunpack.c.h.b16 %v648
    %v2142 = vunpack.c.l.b16 %v649
    %v2143 = vunpack.c.h.b16 %v649
    %v2144 = vunpack.c.l.b16 %v650
    %v2145 = vunpack.c.h.b16 %v650
    %v2146 = vunpack.c.l.b16 %v651
    %v2147 = vunpack.c.h.b16 %v651
    %v2148 = vunpack.c.l.b16 %v652
    %v2149 = vunpack.c.h.b16 %v652
    %v2150 = vunpack.c.l.b16 %v653
    %v2151 = vunpack.c.h.b16 %v653
    %v2152 = vunpack.c.l.b16 %v654
    %v2153 = vunpack.c.h.b16 %v654
    %v2154 = vunpack.c.l.b16 %v655
    %v2155 = vunpack.c.h.b16 %v655
    %v2156 = vunpack.c.l.b16 %v656
    %v2157 = vunpack.c.h.b16 %v656
    %v2158 = vunpack.c.l.b16 %v657
    %v2159 = vunpack.c.h.b16 %v657
    %v2160 = vunpack.c.l.b16 %v658
    %v2161 = vunpack.c.h.b16 %v658
    %v2162 = vunpack.c.l.b16 %v659
    %v2163 = vunpack.c.h.b16 %v659
    %v2164 = vunpack.c.l.b16 %v660
    %v2165 = vunpack.c.h.b16 %v660
    %v2166 = vunpack.c.l.b16 %v661
    %v2167 = vunpack.c.h.b16 %v661
    %v2168 = vunpack.c.l.b16 %v662
    %v2169 = vunpack.c.h.b16 %v662
    %v2170 = vunpack.c.l.b16 %v663
    %v2171 = vunpack.c.h.b16 %v663
    %v2172 = vunpack.c.l.b16 %v664
    %v2173 = vunpack.c.h.b16 %v664
    %v2174 = vunpack.c.l.b16 %v665
    %v2175 = vunpack.c.h.b16 %v665
    %v2176 = vunpack.c.l.b16 %v666
    %v2177 = vunpack.c.h.b16 %v666
    %v2178 = vunpack.c.l.b16 %v667
    %v2179 = vunpack.c.h.b16 %v667
    %v2180 = vunpack.c.l.b16 %v668
    %v2181 = vunpack.c.h.b16 %v668
    %v2182 = vunpack.c.l.b16 %v669
    %v2183 = vunpack.c.h.b16 %v669
    %v2184 = vunpack.c.l.b16 %v670
    %v2185 = vunpack.c.h.b16 %v670
    %v2186 = vunpack.c.l.b16 %v671
    %v2187 = vunpack.c.h.b16 %v671
    %v2188 = vunpack.c.l.b16 %v672
    %v2189 = vunpack.c.h.b16 %v672
    %v2190 = vunpack.c.l.b16 %v673
    %v2191 = vunpack.c.h.b16 %v673
    %v2192 = vunpack.c.l.b16 %v674
    %v2193 = vunpack.c.h.b16 %v674
    %v2194 = vunpack.c.l.b16 %v675
    %v2195 = vunpack.c.h.b16 %v675
    %v2196 = vunpack.c.l.b16 %v676
    %v2197 = vunpack.c.h.b16 %v676
    %v2198 = vunpack.c.l.b16 %v677
    %v2199 = vunpack.c.h.b16 %v677
    %v2200 = vunpack.c.l.b16 %v678
    %v2201 = vunpack.c.h.b16 %v678
    %v2202 = vunpack.c.l.b16 %v679
    %v2203 = vunpack.c.h.b16 %v679
    %v2204 = vunpack.c.l.b16 %v680
    %v2205 = vunpack.c.h.b16 %v680
    %v2206 = vunpack.c.l.b16 %v681
    %v2207 = vunpack.c.h.b16 %v681
    %v2208 = vunpack.c.l.b16 %v682
    %v2209 = vunpack.c.h.b16 %v682
    %v2210 = vunpack.c.l.b16 %v683
    %v2211 = vunpack.c.h.b16 %v683
    %v2212 = vunpack.c.l.b16 %v684
    %v2213 = vunpack.c.h.b16 %v684
    %v2214 = vunpack.c.l.b16 %v685
    %v2215 = vunpack.c.h.b16 %v685
    %v2216 = vunpack.c.l.b16 %v686
    %v2217 = vunpack.c.h.b16 %v686
    %v2218 = vunpack.c.l.b16 %v687
    %v2219 = vunpack.c.h.b16 %v687
    %v2220 = vunpack.c.l.b16 %v688
    %v2221 = vunpack.c.h.b16 %v688
    %v2222 = vunpack.c.l.b16 %v689
    %v2223 = vunpack.c.h.b16 %v689
    %v2224 = vunpack.c.l.b16 %v690
    %v2225 = vunpack.c.h.b16 %v690
    %v2226 = vunpack.c.l.b16 %v691
    %v2227 = vunpack.c.h.b16 %v691
    %v2228 = vunpack.c.l.b16 %v692
    %v2229 = vunpack.c.h.b16 %v692
    %v2230 = vunpack.c.l.b16 %v693
    %v2231 = vunpack.c.h.b16 %v693
    %v2232 = vunpack.c.l.b16 %v694
    %v2233 = vunpack.c.h.b16 %v694
    %v2234 = vunpack.c.l.b16 %v695
    %v2235 = vunpack.c.h.b16 %v695
    %v2236 = vunpack.c.l.b16 %v696
    %v2237 = vunpack.c.h.b16 %v696
    %v2238 = vunpack.c.l.b16 %v697
    %v2239 = vunpack.c.h.b16 %v697
    %v2240 = vunpack.c.l.b16 %v698
    %v2241 = vunpack.c.h.b16 %v698
    %v2242 = vunpack.c.l.b16 %v699
    %v2243 = vunpack.c.h.b16 %v699
    %v2244 = vunpack.c.l.b16 %v700
    %v2245 = vunpack.c.h.b16 %v700
    %v2246 = vunpack.c.l.b16 %v701
    %v2247 = vunpack.c.h.b16 %v701
    %v2248 = vunpack.c.l.b16 %v702
    %v2249 = vunpack.c.h.b16 %v702
    %v2250 = vunpack.c.l.b16 %v703
    %v2251 = vunpack.c.h.b16 %v703
    %v2252 = vunpack.c.l.b16 %v704
    %v2253 = vunpack.c.h.b16 %v704
    %v2254 = vunpack.c.l.b16 %v705
    %v2255 = vunpack.c.h.b16 %v705
    %v2256 = vunpack.c.l.b16 %v706
    %v2257 = vunpack.c.h.b16 %v706
    %v2258 = vunpack.c.l.b16 %v707
    %v2259 = vunpack.c.h.b16 %v707
    %v2260 = vunpack.c.l.b16 %v708
    %v2261 = vunpack.c.h.b16 %v708
    %v2262 = vunpack.c.l.b16 %v709
    %v2263 = vunpack.c.h.b16 %v709
    %v2264 = vunpack.c.l.b16 %v710
    %v2265 = vunpack.c.h.b16 %v710
    %v2266 = vunpack.c.l.b16 %v711
    %v2267 = vunpack.c.h.b16 %v711
    %v2268 = vunpack.c.l.b16 %v712
    %v2269 = vunpack.c.h.b16 %v712
    %v2270 = vunpack.c.l.b16 %v713
    %v2271 = vunpack.c.h.b16 %v713
    %v2272 = vunpack.c.l.b16 %v714
    %v2273 = vunpack.c.h.b16 %v714
    %v2274 = vunpack.c.l.b16 %v715
    %v2275 = vunpack.c.h.b16 %v715
    %v2276 = vunpack.c.l.b16 %v716
    %v2277 = vunpack.c.h.b16 %v716
    %v2278 = vunpack.c.l.b16 %v717
    %v2279 = vunpack.c.h.b16 %v717
    %v2280 = vunpack.c.l.b16 %v718
    %v2281 = vunpack.c.h.b16 %v718
    %v2282 = vunpack.c.l.b16 %v719
    %v2283 = vunpack.c.h.b16 %v719
    %v2284 = vunpack.c.l.b16 %v720
    %v2285 = vunpack.c.h.b16 %v720
    %v2286 = vunpack.c.l.b16 %v721
    %v2287 = vunpack.c.h.b16 %v721
    %v2288 = vunpack.c.l.b16 %v722
    %v2289 = vunpack.c.h.b16 %v722
    %v2290 = vunpack.c.l.b16 %v723
    %v2291 = vunpack.c.h.b16 %v723
    %v2292 = vunpack.c.l.b16 %v724
    %v2293 = vunpack.c.h.b16 %v724
    %v2294 = vunpack.c.l.b16 %v725
    %v2295 = vunpack.c.h.b16 %v725
    %v2296 = vunpack.c.l.b16 %v726
    %v2297 = vunpack.c.h.b16 %v726
    %v2298 = vunpack.c.l.b16 %v727
    %v2299 = vunpack.c.h.b16 %v727
    %v2300 = vunpack.c.l.b16 %v728
    %v2301 = vunpack.c.h.b16 %v728
    %v2302 = vunpack.c.l.b16 %v729
    %v2303 = vunpack.c.h.b16 %v729
    %v2304 = vunpack.c.l.b16 %v730
    %v2305 = vunpack.c.h.b16 %v730
    %v2306 = vunpack.c.l.b16 %v731
    %v2307 = vunpack.c.h.b16 %v731
    %v2308 = vunpack.c.l.b16 %v732
    %v2309 = vunpack.c.h.b16 %v732
    %v2310 = vunpack.c.l.b16 %v733
    %v2311 = vunpack.c.h.b16 %v733
    %v2312 = vunpack.c.l.b16 %v734
    %v2313 = vunpack.c.h.b16 %v734
    %v2314 = vunpack.c.l.b16 %v735
    %v2315 = vunpack.c.h.b16 %v735
    %v2316 = vunpack.c.l.b16 %v736
    %v2317 = vunpack.c.h.b16 %v736
    %v2318 = vunpack.c.l.b16 %v737
    %v2319 = vunpack.c.h.b16 %v737
    %v2320 = vunpack.c.l.b16 %v738
    %v2321 = vunpack.c.h.b16 %v738
    %v2322 = vunpack.c.l.b16 %v739
    %v2323 = vunpack.c.h.b16 %v739
    %v2324 = vunpack.c.l.b16 %v740
    %v2325 = vunpack.c.h.b16 %v740
    %v2326 = vunpack.c.l.b16 %v741
    %v2327 = vunpack.c.h.b16 %v741
    %v2328 = vunpack.c.l.b16 %v742
    %v2329 = vunpack.c.h.b16 %v742
    %v2330 = vunpack.c.l.b16 %v743
    %v2331 = vunpack.c.h.b16 %v743
    %v2332 = vunpack.c.l.b16 %v744
    %v2333 = vunpack.c.h.b16 %v744
    %v2334 = vunpack.c.l.b16 %v745
    %v2335 = vunpack.c.h.b16 %v745
    %v2336 = vunpack.c.l.b16 %v746
    %v2337 = vunpack.c.h.b16 %v746
    %v2338 = vunpack.c.l.b16 %v747
    %v2339 = vunpack.c.h.b16 %v747
    %v2340 = vunpack.c.l.b16 %v748
    %v2341 = vunpack.c.h.b16 %v748
    %v2342 = vunpack.c.l.b16 %v749
    %v2343 = vunpack.c.h.b16 %v749
    %v2344 = vunpack.c.l.b16 %v750
    %v2345 = vunpack.c.h.b16 %v750
    %v2346 = vunpack.c.l.b16 %v751
    %v2347 = vunpack.c.h.b16 %v751
    %v2348 = vunpack.c.l.b16 %v752
    %v2349 = vunpack.c.h.b16 %v752
    %v2350 = vunpack.c.l.b16 %v753
    %v2351 = vunpack.c.h.b16 %v753
    %v2352 = vunpack.c.l.b16 %v754
    %v2353 = vunpack.c.h.b16 %v754
    %v2354 = vunpack.c.l.b16 %v755
    %v2355 = vunpack.c.h.b16 %v755
    %v2356 = vunpack.c.l.b16 %v756
    %v2357 = vunpack.c.h.b16 %v756
    %v2358 = vunpack.c.l.b16 %v757
    %v2359 = vunpack.c.h.b16 %v757
    %v2360 = vunpack.c.l.b16 %v758
    %v2361 = vunpack.c.h.b16 %v758
    %v2362 = vunpack.c.l.b16 %v759
    %v2363 = vunpack.c.h.b16 %v759
    %v2364 = vunpack.c.l.b16 %v760
    %v2365 = vunpack.c.h.b16 %v760
    %v2366 = vunpack.c.l.b16 %v761
    %v2367 = vunpack.c.h.b16 %v761
    %v2368 = vunpack.c.l.b16 %v762
    %v2369 = vunpack.c.h.b16 %v762
    %v2370 = vunpack.c.l.b16 %v763
    %v2371 = vunpack.c.h.b16 %v763
    %v2372 = vunpack.c.l.b16 %v764
    %v2373 = vunpack.c.h.b16 %v764
    %v2374 = vunpack.c.l.b16 %v765
    %v2375 = vunpack.c.h.b16 %v765
    %v2376 = vunpack.c.l.b16 %v766
    %v2377 = vunpack.c.h.b16 %v766
    %v2378 = vpack.c.b16 %v1362, %v1354
    %v2379 = vpack.c.b16 %v1363, %v1355
    %v2380 = vpack.c.b16 %v1364, %v1356
    %v2381 = vpack.c.b16 %v1365, %v1357
    %v2382 = vpack.c.b16 %v1366, %v1358
    %v2383 = vpack.c.b16 %v1367, %v1359
    %v2384 = vpack.c.b16 %v1368, %v1360
    %v2385 = vpack.c.b16 %v1369, %v1361
    %v2386 = vpack.c.b16 %v1378, %v1370
    %v2387 = vpack.c.b16 %v1379, %v1371
    %v2388 = vpack.c.b16 %v1380, %v1372
    %v2389 = vpack.c.b16 %v1381, %v1373
    %v2390 = vpack.c.b16 %v1382, %v1374
    %v2391 = vpack.c.b16 %v1383, %v1375
    %v2392 = vpack.c.b16 %v1384, %v1376
    %v2393 = vpack.c.b16 %v1385, %v1377
    %v2394 = vpack.c.b16 %v1394, %v1386
    %v2395 = vpack.c.b16 %v1395, %v1387
    %v2396 = vpack.c.b16 %v1396, %v1388
    %v2397 = vpack.c.b16 %v1397, %v1389
    %v2398 = vpack.c.b16 %v1398, %v1390
    %v2399 = vpack.c.b16 %v1399, %v1391
    %v2400 = vpack.c.b16 %v1400, %v1392
    %v2401 = vpack.c.b16 %v1401, %v1393
    %v2402 = vpack.c.b16 %v1410, %v1402
    %v2403 = vpack.c.b16 %v1411, %v1403
    %v2404 = vpack.c.b16 %v1412, %v1404
    %v2405 = vpack.c.b16 %v1413, %v1405
    %v2406 = vpack.c.b16 %v1414, %v1406
    %v2407 = vpack.c.b16 %v1415, %v1407
    %v2408 = vpack.c.b16 %v1416, %v1408
    %v2409 = vpack.c.b16 %v1417, %v1409
    %v2410 = vpack.c.b16 %v1426, %v1418
    %v2411 = vpack.c.b16 %v1427, %v1419
    %v2412 = vpack.c.b16 %v1428, %v1420
    %v2413 = vpack.c.b16 %v1429, %v1421
    %v2414 = vpack.c.b16 %v1430, %v1422
    %v2415 = vpack.c.b16 %v1431, %v1423
    %v2416 = vpack.c.b16 %v1432, %v1424
    %v2417 = vpack.c.b16 %v1433, %v1425
    %v2418 = vpack.c.b16 %v1442, %v1434
    %v2419 = vpack.c.b16 %v1443, %v1435
    %v2420 = vpack.c.b16 %v1444, %v1436
    %v2421 = vpack.c.b16 %v1445, %v1437
    %v2422 = vpack.c.b16 %v1446, %v1438
    %v2423 = vpack.c.b16 %v1447, %v1439
    %v2424 = vpack.c.b16 %v1448, %v1440
    %v2425 = vpack.c.b16 %v1449, %v1441
    %v2426 = vpack.c.b16 %v1458, %v1450
    %v2427 = vpack.c.b16 %v1459, %v1451
    %v2428 = vpack.c.b16 %v1460, %v1452
    %v2429 = vpack.c.b16 %v1461, %v1453
    %v2430 = vpack.c.b16 %v1462, %v1454
    %v2431 = vpack.c.b16 %v1463, %v1455
    %v2432 = vpack.c.b16 %v1464, %v1456
    %v2433 = vpack.c.b16 %v1465, %v1457
    %v2434 = vpack.c.b16 %v1474, %v1466
    %v2435 = vpack.c.b16 %v1475, %v1467
    %v2436 = vpack.c.b16 %v1476, %v1468
    %v2437 = vpack.c.b16 %v1477, %v1469
    %v2438 = vpack.c.b16 %v1478, %v1470
    %v2439 = vpack.c.b16 %v1479, %v1471
    %v2440 = vpack.c.b16 %v1480, %v1472
    %v2441 = vpack.c.b16 %v1481, %v1473
    %v2442 = vpack.c.b16 %v1490, %v1482
    %v2443 = vpack.c.b16 %v1491, %v1483
    %v2444 = vpack.c.b16 %v1492, %v1484
    %v2445 = vpack.c.b16 %v1493, %v1485
    %v2446 = vpack.c.b16 %v1494, %v1486
    %v2447 = vpack.c.b16 %v1495, %v1487
    %v2448 = vpack.c.b16 %v1496, %v1488
    %v2449 = vpack.c.b16 %v1497, %v1489
    %v2450 = vpack.c.b16 %v1506, %v1498
    %v2451 = vpack.c.b16 %v1507, %v1499
    %v2452 = vpack.c.b16 %v1508, %v1500
    %v2453 = vpack.c.b16 %v1509, %v1501
    %v2454 = vpack.c.b16 %v1510, %v1502
    %v2455 = vpack.c.b16 %v1511, %v1503
    %v2456 = vpack.c.b16 %v1512, %v1504
    %v2457 = vpack.c.b16 %v1513, %v1505
    %v2458 = vpack.c.b16 %v1522, %v1514
    %v2459 = vpack.c.b16 %v1523, %v1515
    %v2460 = vpack.c.b16 %v1524, %v1516
    %v2461 = vpack.c.b16 %v1525, %v1517
    %v2462 = vpack.c.b16 %v1526, %v1518
    %v2463 = vpack.c.b16 %v1527, %v1519
    %v2464 = vpack.c.b16 %v1528, %v1520
    %v2465 = vpack.c.b16 %v1529, %v1521
    %v2466 = vpack.c.b16 %v1538, %v1530
    %v2467 = vpack.c.b16 %v1539, %v1531
    %v2468 = vpack.c.b16 %v1540, %v1532
    %v2469 = vpack.c.b16 %v1541, %v1533
    %v2470 = vpack.c.b16 %v1542, %v1534
    %v2471 = vpack.c.b16 %v1543, %v1535
    %v2472 = vpack.c.b16 %v1544, %v1536
    %v2473 = vpack.c.b16 %v1545, %v1537
    %v2474 = vpack.c.b16 %v1554, %v1546
    %v2475 = vpack.c.b16 %v1555, %v1547
    %v2476 = vpack.c.b16 %v1556, %v1548
    %v2477 = vpack.c.b16 %v1557, %v1549
    %v2478 = vpack.c.b16 %v1558, %v1550
    %v2479 = vpack.c.b16 %v1559, %v1551
    %v2480 = vpack.c.b16 %v1560, %v1552
    %v2481 = vpack.c.b16 %v1561, %v1553
    %v2482 = vpack.c.b16 %v1570, %v1562
    %v2483 = vpack.c.b16 %v1571, %v1563
    %v2484 = vpack.c.b16 %v1572, %v1564
    %v2485 = vpack.c.b16 %v1573, %v1565
    %v2486 = vpack.c.b16 %v1574, %v1566
    %v2487 = vpack.c.b16 %v1575, %v1567
    %v2488 = vpack.c.b16 %v1576, %v1568
    %v2489 = vpack.c.b16 %v1577, %v1569
    %v2490 = vpack.c.b16 %v1586, %v1578
    %v2491 = vpack.c.b16 %v1587, %v1579
    %v2492 = vpack.c.b16 %v1588, %v1580
    %v2493 = vpack.c.b16 %v1589, %v1581
    %v2494 = vpack.c.b16 %v1590, %v1582
    %v2495 = vpack.c.b16 %v1591, %v1583
    %v2496 = vpack.c.b16 %v1592, %v1584
    %v2497 = vpack.c.b16 %v1593, %v1585
    %v2498 = vpack.c.b16 %v1602, %v1594
    %v2499 = vpack.c.b16 %v1603, %v1595
    %v2500 = vpack.c.b16 %v1604, %v1596
    %v2501 = vpack.c.b16 %v1605, %v1597
    %v2502 = vpack.c.b16 %v1606, %v1598
    %v2503 = vpack.c.b16 %v1607, %v1599
    %v2504 = vpack.c.b16 %v1608, %v1600
    %v2505 = vpack.c.b16 %v1609, %v1601
    %v2506 = vpack.c.b16 %v1618, %v1610
    %v2507 = vpack.c.b16 %v1619, %v1611
    %v2508 = vpack.c.b16 %v1620, %v1612
    %v2509 = vpack.c.b16 %v1621, %v1613
    %v2510 = vpack.c.b16 %v1622, %v1614
    %v2511 = vpack.c.b16 %v1623, %v1615
    %v2512 = vpack.c.b16 %v1624, %v1616
    %v2513 = vpack.c.b16 %v1625, %v1617
    %v2514 = vpack.c.b16 %v1634, %v1626
    %v2515 = vpack.c.b16 %v1635, %v1627
    %v2516 = vpack.c.b16 %v1636, %v1628
    %v2517 = vpack.c.b16 %v1637, %v1629
    %v2518 = vpack.c.b16 %v1638, %v1630
    %v2519 = vpack.c.b16 %v1639, %v1631
    %v2520 = vpack.c.b16 %v1640, %v1632
    %v2521 = vpack.c.b16 %v1641, %v1633
    %v2522 = vpack.c.b16 %v1650, %v1642
    %v2523 = vpack.c.b16 %v1651, %v1643
    %v2524 = vpack.c.b16 %v1652, %v1644
    %v2525 = vpack.c.b16 %v1653, %v1645
    %v2526 = vpack.c.b16 %v1654, %v1646
    %v2527 = vpack.c.b16 %v1655, %v1647
    %v2528 = vpack.c.b16 %v1656, %v1648
    %v2529 = vpack.c.b16 %v1657, %v1649
    %v2530 = vpack.c.b16 %v1666, %v1658
    %v2531 = vpack.c.b16 %v1667, %v1659
    %v2532 = vpack.c.b16 %v1668, %v1660
    %v2533 = vpack.c.b16 %v1669, %v1661
    %v2534 = vpack.c.b16 %v1670, %v1662
    %v2535 = vpack.c.b16 %v1671, %v1663
    %v2536 = vpack.c.b16 %v1672, %v1664
    %v2537 = vpack.c.b16 %v1673, %v1665
    %v2538 = vpack.c.b16 %v1682, %v1674
    %v2539 = vpack.c.b16 %v1683, %v1675
    %v2540 = vpack.c.b16 %v1684, %v1676
    %v2541 = vpack.c.b16 %v1685, %v1677
    %v2542 = vpack.c.b16 %v1686, %v1678
    %v2543 = vpack.c.b16 %v1687, %v1679
    %v2544 = vpack.c.b16 %v1688, %v1680
    %v2545 = vpack.c.b16 %v1689, %v1681
    %v2546 = vpack.c.b16 %v1698, %v1690
    %v2547 = vpack.c.b16 %v1699, %v1691
    %v2548 = vpack.c.b16 %v1700, %v1692
    %v2549 = vpack.c.b16 %v1701, %v1693
    %v2550 = vpack.c.b16 %v1702, %v1694
    %v2551 = vpack.c.b16 %v1703, %v1695
    %v2552 = vpack.c.b16 %v1704, %v1696
    %v2553 = vpack.c.b16 %v1705, %v1697
    %v2554 = vpack.c.b16 %v1714, %v1706
    %v2555 = vpack.c.b16 %v1715, %v1707
    %v2556 = vpack.c.b16 %v1716, %v1708
    %v2557 = vpack.c.b16 %v1717, %v1709
    %v2558 = vpack.c.b16 %v1718, %v1710
    %v2559 = vpack.c.b16 %v1719, %v1711
    %v2560 = vpack.c.b16 %v1720, %v1712
    %v2561 = vpack.c.b16 %v1721, %v1713
    %v2562 = vpack.c.b16 %v1730, %v1722
    %v2563 = vpack.c.b16 %v1731, %v1723
    %v2564 = vpack.c.b16 %v1732, %v1724
    %v2565 = vpack.c.b16 %v1733, %v1725
    %v2566 = vpack.c.b16 %v1734, %v1726
    %v2567 = vpack.c.b16 %v1735, %v1727
    %v2568 = vpack.c.b16 %v1736, %v1728
    %v2569 = vpack.c.b16 %v1737, %v1729
    %v2570 = vpack.c.b16 %v1746, %v1738
    %v2571 = vpack.c.b16 %v1747, %v1739
    %v2572 = vpack.c.b16 %v1748, %v1740
    %v2573 = vpack.c.b16 %v1749, %v1741
    %v2574 = vpack.c.b16 %v1750, %v1742
    %v2575 = vpack.c.b16 %v1751, %v1743
    %v2576 = vpack.c.b16 %v1752, %v1744
    %v2577 = vpack.c.b16 %v1753, %v1745
    %v2578 = vpack.c.b16 %v1762, %v1754
    %v2579 = vpack.c.b16 %v1763, %v1755
    %v2580 = vpack.c.b16 %v1764, %v1756
    %v2581 = vpack.c.b16 %v1765, %v1757
    %v2582 = vpack.c.b16 %v1766, %v1758
    %v2583 = vpack.c.b16 %v1767, %v1759
    %v2584 = vpack.c.b16 %v1768, %v1760
    %v2585 = vpack.c.b16 %v1769, %v1761
    %v2586 = vpack.c.b16 %v1778, %v1770
    %v2587 = vpack.c.b16 %v1779, %v1771
    %v2588 = vpack.c.b16 %v1780, %v1772
    %v2589 = vpack.c.b16 %v1781, %v1773
    %v2590 = vpack.c.b16 %v1782, %v1774
    %v2591 = vpack.c.b16 %v1783, %v1775
    %v2592 = vpack.c.b16 %v1784, %v1776
    %v2593 = vpack.c.b16 %v1785, %v1777
    %v2594 = vpack.c.b16 %v1794, %v1786
    %v2595 = vpack.c.b16 %v1795, %v1787
    %v2596 = vpack.c.b16 %v1796, %v1788
    %v2597 = vpack.c.b16 %v1797, %v1789
    %v2598 = vpack.c.b16 %v1798, %v1790
    %v2599 = vpack.c.b16 %v1799, %v1791
    %v2600 = vpack.c.b16 %v1800, %v1792
    %v2601 = vpack.c.b16 %v1801, %v1793
    %v2602 = vpack.c.b16 %v1810, %v1802
    %v2603 = vpack.c.b16 %v1811, %v1803
    %v2604 = vpack.c.b16 %v1812, %v1804
    %v2605 = vpack.c.b16 %v1813, %v1805
    %v2606 = vpack.c.b16 %v1814, %v1806
    %v2607 = vpack.c.b16 %v1815, %v1807
    %v2608 = vpack.c.b16 %v1816, %v1808
    %v2609 = vpack.c.b16 %v1817, %v1809
    %v2610 = vpack.c.b16 %v1826, %v1818
    %v2611 = vpack.c.b16 %v1827, %v1819
    %v2612 = vpack.c.b16 %v1828, %v1820
    %v2613 = vpack.c.b16 %v1829, %v1821
    %v2614 = vpack.c.b16 %v1830, %v1822
    %v2615 = vpack.c.b16 %v1831, %v1823
    %v2616 = vpack.c.b16 %v1832, %v1824
    %v2617 = vpack.c.b16 %v1833, %v1825
    %v2618 = vpack.c.b16 %v1842, %v1834
    %v2619 = vpack.c.b16 %v1843, %v1835
    %v2620 = vpack.c.b16 %v1844, %v1836
    %v2621 = vpack.c.b16 %v1845, %v1837
    %v2622 = vpack.c.b16 %v1846, %v1838
    %v2623 = vpack.c.b16 %v1847, %v1839
    %v2624 = vpack.c.b16 %v1848, %v1840
    %v2625 = vpack.c.b16 %v1849, %v1841
    %v2626 = vpack.c.b16 %v1858, %v1850
    %v2627 = vpack.c.b16 %v1859, %v1851
    %v2628 = vpack.c.b16 %v1860, %v1852
    %v2629 = vpack.c.b16 %v1861, %v1853
    %v2630 = vpack.c.b16 %v1862, %v1854
    %v2631 = vpack.c.b16 %v1863, %v1855
    %v2632 = vpack.c.b16 %v1864, %v1856
    %v2633 = vpack.c.b16 %v1865, %v1857
    %v2634 = vpack.c.b16 %v1874, %v1866
    %v2635 = vpack.c.b16 %v1875, %v1867
    %v2636 = vpack.c.b16 %v1876, %v1868
    %v2637 = vpack.c.b16 %v1877, %v1869
    %v2638 = vpack.c.b16 %v1878, %v1870
    %v2639 = vpack.c.b16 %v1879, %v1871
    %v2640 = vpack.c.b16 %v1880, %v1872
    %v2641 = vpack.c.b16 %v1881, %v1873
    %v2642 = vpack.c.b16 %v1890, %v1882
    %v2643 = vpack.c.b16 %v1891, %v1883
    %v2644 = vpack.c.b16 %v1892, %v1884
    %v2645 = vpack.c.b16 %v1893, %v1885
    %v2646 = vpack.c.b16 %v1894, %v1886
    %v2647 = vpack.c.b16 %v1895, %v1887
    %v2648 = vpack.c.b16 %v1896, %v1888
    %v2649 = vpack.c.b16 %v1897, %v1889
    %v2650 = vpack.c.b16 %v1906, %v1898
    %v2651 = vpack.c.b16 %v1907, %v1899
    %v2652 = vpack.c.b16 %v1908, %v1900
    %v2653 = vpack.c.b16 %v1909, %v1901
    %v2654 = vpack.c.b16 %v1910, %v1902
    %v2655 = vpack.c.b16 %v1911, %v1903
    %v2656 = vpack.c.b16 %v1912, %v1904
    %v2657 = vpack.c.b16 %v1913, %v1905
    %v2658 = vpack.c.b16 %v1922, %v1914
    %v2659 = vpack.c.b16 %v1923, %v1915
    %v2660 = vpack.c.b16 %v1924, %v1916
    %v2661 = vpack.c.b16 %v1925, %v1917
    %v2662 = vpack.c.b16 %v1926, %v1918
    %v2663 = vpack.c.b16 %v1927, %v1919
    %v2664 = vpack.c.b16 %v1928, %v1920
    %v2665 = vpack.c.b16 %v1929, %v1921
    %v2666 = vpack.c.b16 %v1938, %v1930
    %v2667 = vpack.c.b16 %v1939, %v1931
    %v2668 = vpack.c.b16 %v1940, %v1932
    %v2669 = vpack.c.b16 %v1941, %v1933
    %v2670 = vpack.c.b16 %v1942, %v1934
    %v2671 = vpack.c.b16 %v1943, %v1935
    %v2672 = vpack.c.b16 %v1944, %v1936
    %v2673 = vpack.c.b16 %v1945, %v1937
    %v2674 = vpack.c.b16 %v1954, %v1946
    %v2675 = vpack.c.b16 %v1955, %v1947
    %v2676 = vpack.c.b16 %v1956, %v1948
    %v2677 = vpack.c.b16 %v1957, %v1949
    %v2678 = vpack.c.b16 %v1958, %v1950
    %v2679 = vpack.c.b16 %v1959, %v1951
    %v2680 = vpack.c.b16 %v1960, %v1952
    %v2681 = vpack.c.b16 %v1961, %v1953
    %v2682 = vpack.c.b16 %v1970, %v1962
    %v2683 = vpack.c.b16 %v1971, %v1963
    %v2684 = vpack.c.b16 %v1972, %v1964
    %v2685 = vpack.c.b16 %v1973, %v1965
    %v2686 = vpack.c.b16 %v1974, %v1966
    %v2687 = vpack.c.b16 %v1975, %v1967
    %v2688 = vpack.c.b16 %v1976, %v1968
    %v2689 = vpack.c.b16 %v1977, %v1969
    %v2690 = vpack.c.b16 %v1986, %v1978
    %v2691 = vpack.c.b16 %v1987, %v1979
    %v2692 = vpack.c.b16 %v1988, %v1980
    %v2693 = vpack.c.b16 %v1989, %v1981
    %v2694 = vpack.c.b16 %v1990, %v1982
    %v2695 = vpack.c.b16 %v1991, %v1983
    %v2696 = vpack.c.b16 %v1992, %v1984
    %v2697 = vpack.c.b16 %v1993, %v1985
    %v2698 = vpack.c.b16 %v2002, %v1994
    %v2699 = vpack.c.b16 %v2003, %v1995
    %v2700 = vpack.c.b16 %v2004, %v1996
    %v2701 = vpack.c.b16 %v2005, %v1997
    %v2702 = vpack.c.b16 %v2006, %v1998
    %v2703 = vpack.c.b16 %v2007, %v1999
    %v2704 = vpack.c.b16 %v2008, %v2000
    %v2705 = vpack.c.b16 %v2009, %v2001
    %v2706 = vpack.c.b16 %v2018, %v2010
    %v2707 = vpack.c.b16 %v2019, %v2011
    %v2708 = vpack.c.b16 %v2020, %v2012
    %v2709 = vpack.c.b16 %v2021, %v2013
    %v2710 = vpack.c.b16 %v2022, %v2014
    %v2711 = vpack.c.b16 %v2023, %v2015
    %v2712 = vpack.c.b16 %v2024, %v2016
    %v2713 = vpack.c.b16 %v2025, %v2017
    %v2714 = vpack.c.b16 %v2034, %v2026
    %v2715 = vpack.c.b16 %v2035, %v2027
    %v2716 = vpack.c.b16 %v2036, %v2028
    %v2717 = vpack.c.b16 %v2037, %v2029
    %v2718 = vpack.c.b16 %v2038, %v2030
    %v2719 = vpack.c.b16 %v2039, %v2031
    %v2720 = vpack.c.b16 %v2040, %v2032
    %v2721 = vpack.c.b16 %v2041, %v2033
    %v2722 = vpack.c.b16 %v2050, %v2042
    %v2723 = vpack.c.b16 %v2051, %v2043
    %v2724 = vpack.c.b16 %v2052, %v2044
    %v2725 = vpack.c.b16 %v2053, %v2045
    %v2726 = vpack.c.b16 %v2054, %v2046
    %v2727 = vpack.c.b16 %v2055, %v2047
    %v2728 = vpack.c.b16 %v2056, %v2048
    %v2729 = vpack.c.b16 %v2057, %v2049
    %v2730 = vpack.c.b16 %v2066, %v2058
    %v2731 = vpack.c.b16 %v2067, %v2059
    %v2732 = vpack.c.b16 %v2068, %v2060
    %v2733 = vpack.c.b16 %v2069, %v2061
    %v2734 = vpack.c.b16 %v2070, %v2062
    %v2735 = vpack.c.b16 %v2071, %v2063
    %v2736 = vpack.c.b16 %v2072, %v2064
    %v2737 = vpack.c.b16 %v2073, %v2065
    %v2738 = vpack.c.b16 %v2082, %v2074
    %v2739 = vpack.c.b16 %v2083, %v2075
    %v2740 = vpack.c.b16 %v2084, %v2076
    %v2741 = vpack.c.b16 %v2085, %v2077
    %v2742 = vpack.c.b16 %v2086, %v2078
    %v2743 = vpack.c.b16 %v2087, %v2079
    %v2744 = vpack.c.b16 %v2088, %v2080
    %v2745 = vpack.c.b16 %v2089, %v2081
    %v2746 = vpack.c.b16 %v2098, %v2090
    %v2747 = vpack.c.b16 %v2099, %v2091
    %v2748 = vpack.c.b16 %v2100, %v2092
    %v2749 = vpack.c.b16 %v2101, %v2093
    %v2750 = vpack.c.b16 %v2102, %v2094
    %v2751 = vpack.c.b16 %v2103, %v2095
    %v2752 = vpack.c.b16 %v2104, %v2096
    %v2753 = vpack.c.b16 %v2105, %v2097
    %v2754 = vpack.c.b16 %v2114, %v2106
    %v2755 = vpack.c.b16 %v2115, %v2107
    %v2756 = vpack.c.b16 %v2116, %v2108
    %v2757 = vpack.c.b16 %v2117, %v2109
    %v2758 = vpack.c.b16 %v2118, %v2110
    %v2759 = vpack.c.b16 %v2119, %v2111
    %v2760 = vpack.c.b16 %v2120, %v2112
    %v2761 = vpack.c.b16 %v2121, %v2113
    %v2762 = vpack.c.b16 %v2130, %v2122
    %v2763 = vpack.c.b16 %v2131, %v2123
    %v2764 = vpack.c.b16 %v2132, %v2124
    %v2765 = vpack.c.b16 %v2133, %v2125
    %v2766 = vpack.c.b16 %v2134, %v2126
    %v2767 = vpack.c.b16 %v2135, %v2127
    %v2768 = vpack.c.b16 %v2136, %v2128
    %v2769 = vpack.c.b16 %v2137, %v2129
    %v2770 = vpack.c.b16 %v2146, %v2138
    %v2771 = vpack.c.b16 %v2147, %v2139
    %v2772 = vpack.c.b16 %v2148, %v2140
    %v2773 = vpack.c.b16 %v2149, %v2141
    %v2774 = vpack.c.b16 %v2150, %v2142
    %v2775 = vpack.c.b16 %v2151, %v2143
    %v2776 = vpack.c.b16 %v2152, %v2144
    %v2777 = vpack.c.b16 %v2153, %v2145
    %v2778 = vpack.c.b16 %v2162, %v2154
    %v2779 = vpack.c.b16 %v2163, %v2155
    %v2780 = vpack.c.b16 %v2164, %v2156
    %v2781 = vpack.c.b16 %v2165, %v2157
    %v2782 = vpack.c.b16 %v2166, %v2158
    %v2783 = vpack.c.b16 %v2167, %v2159
    %v2784 = vpack.c.b16 %v2168, %v2160
    %v2785 = vpack.c.b16 %v2169, %v2161
    %v2786 = vpack.c.b16 %v2178, %v2170
    %v2787 = vpack.c.b16 %v2179, %v2171
    %v2788 = vpack.c.b16 %v2180, %v2172
    %v2789 = vpack.c.b16 %v2181, %v2173
    %v2790 = vpack.c.b16 %v2182, %v2174
    %v2791 = vpack.c.b16 %v2183, %v2175
    %v2792 = vpack.c.b16 %v2184, %v2176
    %v2793 = vpack.c.b16 %v2185, %v2177
    %v2794 = vpack.c.b16 %v2194, %v2186
    %v2795 = vpack.c.b16 %v2195, %v2187
    %v2796 = vpack.c.b16 %v2196, %v2188
    %v2797 = vpack.c.b16 %v2197, %v2189
    %v2798 = vpack.c.b16 %v2198, %v2190
    %v2799 = vpack.c.b16 %v2199, %v2191
    %v2800 = vpack.c.b16 %v2200, %v2192
    %v2801 = vpack.c.b16 %v2201, %v2193
    %v2802 = vpack.c.b16 %v2210, %v2202
    %v2803 = vpack.c.b16 %v2211, %v2203
    %v2804 = vpack.c.b16 %v2212, %v2204
    %v2805 = vpack.c.b16 %v2213, %v2205
    %v2806 = vpack.c.b16 %v2214, %v2206
    %v2807 = vpack.c.b16 %v2215, %v2207
    %v2808 = vpack.c.b16 %v2216, %v2208
    %v2809 = vpack.c.b16 %v2217, %v2209
    %v2810 = vpack.c.b16 %v2226, %v2218
    %v2811 = vpack.c.b16 %v2227, %v2219
    %v2812 = vpack.c.b16 %v2228, %v2220
    %v2813 = vpack.c.b16 %v2229, %v2221
    %v2814 = vpack.c.b16 %v2230, %v2222
    %v2815 = vpack.c.b16 %v2231, %v2223
    %v2816 = vpack.c.b16 %v2232, %v2224
    %v2817 = vpack.c.b16 %v2233, %v2225
    %v2818 = vpack.c.b16 %v2242, %v2234
    %v2819 = vpack.c.b16 %v2243, %v2235
    %v2820 = vpack.c.b16 %v2244, %v2236
    %v2821 = vpack.c.b16 %v2245, %v2237
    %v2822 = vpack.c.b16 %v2246, %v2238
    %v2823 = vpack.c.b16 %v2247, %v2239
    %v2824 = vpack.c.b16 %v2248, %v2240
    %v2825 = vpack.c.b16 %v2249, %v2241
    %v2826 = vpack.c.b16 %v2258, %v2250
    %v2827 = vpack.c.b16 %v2259, %v2251
    %v2828 = vpack.c.b16 %v2260, %v2252
    %v2829 = vpack.c.b16 %v2261, %v2253
    %v2830 = vpack.c.b16 %v2262, %v2254
    %v2831 = vpack.c.b16 %v2263, %v2255
    %v2832 = vpack.c.b16 %v2264, %v2256
    %v2833 = vpack.c.b16 %v2265, %v2257
    %v2834 = vpack.c.b16 %v2274, %v2266
    %v2835 = vpack.c.b16 %v2275, %v2267
    %v2836 = vpack.c.b16 %v2276, %v2268
    %v2837 = vpack.c.b16 %v2277, %v2269
    %v2838 = vpack.c.b16 %v2278, %v2270
    %v2839 = vpack.c.b16 %v2279, %v2271
    %v2840 = vpack.c.b16 %v2280, %v2272
    %v2841 = vpack.c.b16 %v2281, %v2273
    %v2842 = vpack.c.b16 %v2290, %v2282
    %v2843 = vpack.c.b16 %v2291, %v2283
    %v2844 = vpack.c.b16 %v2292, %v2284
    %v2845 = vpack.c.b16 %v2293, %v2285
    %v2846 = vpack.c.b16 %v2294, %v2286
    %v2847 = vpack.c.b16 %v2295, %v2287
    %v2848 = vpack.c.b16 %v2296, %v2288
    %v2849 = vpack.c.b16 %v2297, %v2289
    %v2850 = vpack.c.b16 %v2306, %v2298
    %v2851 = vpack.c.b16 %v2307, %v2299
    %v2852 = vpack.c.b16 %v2308, %v2300
    %v2853 = vpack.c.b16 %v2309, %v2301
    %v2854 = vpack.c.b16 %v2310, %v2302
    %v2855 = vpack.c.b16 %v2311, %v2303
    %v2856 = vpack.c.b16 %v2312, %v2304
    %v2857 = vpack.c.b16 %v2313, %v2305
    %v2858 = vpack.c.b16 %v2322, %v2314
    %v2859 = vpack.c.b16 %v2323, %v2315
    %v2860 = vpack.c.b16 %v2324, %v2316
    %v2861 = vpack.c.b16 %v2325, %v2317
    %v2862 = vpack.c.b16 %v2326, %v2318
    %v2863 = vpack.c.b16 %v2327, %v2319
    %v2864 = vpack.c.b16 %v2328, %v2320
    %v2865 = vpack.c.b16 %v2329, %v2321
    %v2866 = vpack.c.b16 %v2338, %v2330
    %v2867 = vpack.c.b16 %v2339, %v2331
    %v2868 = vpack.c.b16 %v2340, %v2332
    %v2869 = vpack.c.b16 %v2341, %v2333
    %v2870 = vpack.c.b16 %v2342, %v2334
    %v2871 = vpack.c.b16 %v2343, %v2335
    %v2872 = vpack.c.b16 %v2344, %v2336
    %v2873 = vpack.c.b16 %v2345, %v2337
    %v2874 = vpack.c.b16 %v2354, %v2346
    %v2875 = vpack.c.b16 %v2355, %v2347
    %v2876 = vpack.c.b16 %v2356, %v2348
    %v2877 = vpack.c.b16 %v2357, %v2349
    %v2878 = vpack.c.b16 %v2358, %v2350
    %v2879 = vpack.c.b16 %v2359, %v2351
    %v2880 = vpack.c.b16 %v2360, %v2352
    %v2881 = vpack.c.b16 %v2361, %v2353
    %v2882 = vpack.c.b16 %v2370, %v2362
    %v2883 = vpack.c.b16 %v2371, %v2363
    %v2884 = vpack.c.b16 %v2372, %v2364
    %v2885 = vpack.c.b16 %v2373, %v2365
    %v2886 = vpack.c.b16 %v2374, %v2366
    %v2887 = vpack.c.b16 %v2375, %v2367
    %v2888 = vpack.c.b16 %v2376, %v2368
    %v2889 = vpack.c.b16 %v2377, %v2369
    %3402 = vmatpush.bf16.msra.mxu0 %v2434
    %3403 = vmatpush.bf16.msra.mxu0 %v2426
    %3404 = vmatpush.bf16.msra.mxu0 %v2418
    %3405 = vmatpush.bf16.msra.mxu0 %v2410
    %3406 = vmatpush.bf16.msra.mxu0 %v2402
    %3407 = vmatpush.bf16.msra.mxu0 %v2394
    %3408 = vmatpush.bf16.msra.mxu0 %v2386
    %3409 = vmatpush.bf16.msra.mxu0 %v2378
    %3410 = vmatmul.bf16.gmra.mxu0 %v826
    %v3411 = vpop.f32.mrf.mxu0
    %v3412 = vadd.f32 %v769, %v3411
    %v3413 = vpop.f32.mrf.mxu0
    %3414 = vdwg.mxu0
    %3415 = vmatpush.bf16.msra.mxu0 %v2498
    %3416 = vmatpush.bf16.msra.mxu0 %v2490
    %3417 = vmatpush.bf16.msra.mxu0 %v2482
    %3418 = vmatpush.bf16.msra.mxu0 %v2474
    %3419 = vmatpush.bf16.msra.mxu0 %v2466
    %3420 = vmatpush.bf16.msra.mxu0 %v2458
    %3421 = vmatpush.bf16.msra.mxu0 %v2450
    %3422 = vmatpush.bf16.msra.mxu0 %v2442
    %3423 = vmatmul.bf16.gmra.mxu0 %v827
    %v3424 = vpop.f32.mrf.mxu0
    %v3425 = vadd.f32 %v3412, %v3424
    %v3426 = vpop.f32.mrf.mxu0
    %3427 = vdwg.mxu0
    %3428 = vmatpush.bf16.msra.mxu0 %v2562
    %3429 = vmatpush.bf16.msra.mxu0 %v2554
    %3430 = vmatpush.bf16.msra.mxu0 %v2546
    %3431 = vmatpush.bf16.msra.mxu0 %v2538
    %3432 = vmatpush.bf16.msra.mxu0 %v2530
    %3433 = vmatpush.bf16.msra.mxu0 %v2522
    %3434 = vmatpush.bf16.msra.mxu0 %v2514
    %3435 = vmatpush.bf16.msra.mxu0 %v2506
    %3436 = vmatmul.bf16.gmra.mxu0 %v828
    %v3437 = vpop.f32.mrf.mxu0
    %v3438 = vadd.f32 %v3425, %v3437
    %v3439 = vpop.f32.mrf.mxu0
    %3440 = vdwg.mxu0
    %3441 = vmatpush.bf16.msra.mxu0 %v2626
    %3442 = vmatpush.bf16.msra.mxu0 %v2618
    %3443 = vmatpush.bf16.msra.mxu0 %v2610
    %3444 = vmatpush.bf16.msra.mxu0 %v2602
    %3445 = vmatpush.bf16.msra.mxu0 %v2594
    %3446 = vmatpush.bf16.msra.mxu0 %v2586
    %3447 = vmatpush.bf16.msra.mxu0 %v2578
    %3448 = vmatpush.bf16.msra.mxu0 %v2570
    %3449 = vmatmul.bf16.gmra.mxu0 %v829
    %v3450 = vpop.f32.mrf.mxu0
    %v3451 = vadd.f32 %v3438, %v3450
    %v3452 = vpop.f32.mrf.mxu0
    %3453 = vdwg.mxu0
    %3454 = vmatpush.bf16.msra.mxu0 %v2690
    %3455 = vmatpush.bf16.msra.mxu0 %v2682
    %3456 = vmatpush.bf16.msra.mxu0 %v2674
    %3457 = vmatpush.bf16.msra.mxu0 %v2666
    %3458 = vmatpush.bf16.msra.mxu0 %v2658
    %3459 = vmatpush.bf16.msra.mxu0 %v2650
    %3460 = vmatpush.bf16.msra.mxu0 %v2642
    %3461 = vmatpush.bf16.msra.mxu0 %v2634
    %3462 = vmatmul.bf16.gmra.mxu0 %v830
    %v3463 = vpop.f32.mrf.mxu0
    %v3464 = vadd.f32 %v3451, %v3463
    %v3465 = vpop.f32.mrf.mxu0
    %3466 = vdwg.mxu0
    %3467 = vmatpush.bf16.msra.mxu0 %v2754
    %3468 = vmatpush.bf16.msra.mxu0 %v2746
    %3469 = vmatpush.bf16.msra.mxu0 %v2738
    %3470 = vmatpush.bf16.msra.mxu0 %v2730
    %3471 = vmatpush.bf16.msra.mxu0 %v2722
    %3472 = vmatpush.bf16.msra.mxu0 %v2714
    %3473 = vmatpush.bf16.msra.mxu0 %v2706
    %3474 = vmatpush.bf16.msra.mxu0 %v2698
    %3475 = vmatmul.bf16.gmra.mxu0 %v831
    %v3476 = vpop.f32.mrf.mxu0
    %v3477 = vadd.f32 %v3464, %v3476
    %v3478 = vpop.f32.mrf.mxu0
    %3479 = vdwg.mxu0
    %3480 = vmatpush.bf16.msra.mxu0 %v2818
    %3481 = vmatpush.bf16.msra.mxu0 %v2810
    %3482 = vmatpush.bf16.msra.mxu0 %v2802
    %3483 = vmatpush.bf16.msra.mxu0 %v2794
    %3484 = vmatpush.bf16.msra.mxu0 %v2786
    %3485 = vmatpush.bf16.msra.mxu0 %v2778
    %3486 = vmatpush.bf16.msra.mxu0 %v2770
    %3487 = vmatpush.bf16.msra.mxu0 %v2762
    %3488 = vmatmul.bf16.gmra.mxu0 %v832
    %v3489 = vpop.f32.mrf.mxu0
    %v3490 = vadd.f32 %v3477, %v3489
    %v3491 = vpop.f32.mrf.mxu0
    %3492 = vdwg.mxu0
    %3493 = vmatpush.bf16.msra.mxu0 %v2882
    %3494 = vmatpush.bf16.msra.mxu0 %v2874
    %3495 = vmatpush.bf16.msra.mxu0 %v2866
    %3496 = vmatpush.bf16.msra.mxu0 %v2858
    %3497 = vmatpush.bf16.msra.mxu0 %v2850
    %3498 = vmatpush.bf16.msra.mxu0 %v2842
    %3499 = vmatpush.bf16.msra.mxu0 %v2834
    %3500 = vmatpush.bf16.msra.mxu0 %v2826
    %3501 = vmatmul.bf16.gmra.mxu0 %v833
    %v3502 = vpop.f32.mrf.mxu0
    %v3503 = vadd.f32 %v3490, %v3502
    %v3504 = vpop.f32.mrf.mxu0
    %3505 = vdwg.mxu0
    %3506 = vmatpush.bf16.msra.mxu0 %v2435
    %3507 = vmatpush.bf16.msra.mxu0 %v2427
    %3508 = vmatpush.bf16.msra.mxu0 %v2419
    %3509 = vmatpush.bf16.msra.mxu0 %v2411
    %3510 = vmatpush.bf16.msra.mxu0 %v2403
    %3511 = vmatpush.bf16.msra.mxu0 %v2395
    %3512 = vmatpush.bf16.msra.mxu0 %v2387
    %3513 = vmatpush.bf16.msra.mxu0 %v2379
    %3514 = vmatmul.bf16.gmra.mxu0 %v826
    %v3515 = vpop.f32.mrf.mxu0
    %v3516 = vadd.f32 %v770, %v3515
    %v3517 = vpop.f32.mrf.mxu0
    %3518 = vdwg.mxu0
    %3519 = vmatpush.bf16.msra.mxu0 %v2499
    %3520 = vmatpush.bf16.msra.mxu0 %v2491
    %3521 = vmatpush.bf16.msra.mxu0 %v2483
    %3522 = vmatpush.bf16.msra.mxu0 %v2475
    %3523 = vmatpush.bf16.msra.mxu0 %v2467
    %3524 = vmatpush.bf16.msra.mxu0 %v2459
    %3525 = vmatpush.bf16.msra.mxu0 %v2451
    %3526 = vmatpush.bf16.msra.mxu0 %v2443
    %3527 = vmatmul.bf16.gmra.mxu0 %v827
    %v3528 = vpop.f32.mrf.mxu0
    %v3529 = vadd.f32 %v3516, %v3528
    %v3530 = vpop.f32.mrf.mxu0
    %3531 = vdwg.mxu0
    %3532 = vmatpush.bf16.msra.mxu0 %v2563
    %3533 = vmatpush.bf16.msra.mxu0 %v2555
    %3534 = vmatpush.bf16.msra.mxu0 %v2547
    %3535 = vmatpush.bf16.msra.mxu0 %v2539
    %3536 = vmatpush.bf16.msra.mxu0 %v2531
    %3537 = vmatpush.bf16.msra.mxu0 %v2523
    %3538 = vmatpush.bf16.msra.mxu0 %v2515
    %3539 = vmatpush.bf16.msra.mxu0 %v2507
    %3540 = vmatmul.bf16.gmra.mxu0 %v828
    %v3541 = vpop.f32.mrf.mxu0
    %v3542 = vadd.f32 %v3529, %v3541
    %v3543 = vpop.f32.mrf.mxu0
    %3544 = vdwg.mxu0
    %3545 = vmatpush.bf16.msra.mxu0 %v2627
    %3546 = vmatpush.bf16.msra.mxu0 %v2619
    %3547 = vmatpush.bf16.msra.mxu0 %v2611
    %3548 = vmatpush.bf16.msra.mxu0 %v2603
    %3549 = vmatpush.bf16.msra.mxu0 %v2595
    %3550 = vmatpush.bf16.msra.mxu0 %v2587
    %3551 = vmatpush.bf16.msra.mxu0 %v2579
    %3552 = vmatpush.bf16.msra.mxu0 %v2571
    %3553 = vmatmul.bf16.gmra.mxu0 %v829
    %v3554 = vpop.f32.mrf.mxu0
    %v3555 = vadd.f32 %v3542, %v3554
    %v3556 = vpop.f32.mrf.mxu0
    %3557 = vdwg.mxu0
    %3558 = vmatpush.bf16.msra.mxu0 %v2691
    %3559 = vmatpush.bf16.msra.mxu0 %v2683
    %3560 = vmatpush.bf16.msra.mxu0 %v2675
    %3561 = vmatpush.bf16.msra.mxu0 %v2667
    %3562 = vmatpush.bf16.msra.mxu0 %v2659
    %3563 = vmatpush.bf16.msra.mxu0 %v2651
    %3564 = vmatpush.bf16.msra.mxu0 %v2643
    %3565 = vmatpush.bf16.msra.mxu0 %v2635
    %3566 = vmatmul.bf16.gmra.mxu0 %v830
    %v3567 = vpop.f32.mrf.mxu0
    %v3568 = vadd.f32 %v3555, %v3567
    %v3569 = vpop.f32.mrf.mxu0
    %3570 = vdwg.mxu0
    %3571 = vmatpush.bf16.msra.mxu0 %v2755
    %3572 = vmatpush.bf16.msra.mxu0 %v2747
    %3573 = vmatpush.bf16.msra.mxu0 %v2739
    %3574 = vmatpush.bf16.msra.mxu0 %v2731
    %3575 = vmatpush.bf16.msra.mxu0 %v2723
    %3576 = vmatpush.bf16.msra.mxu0 %v2715
    %3577 = vmatpush.bf16.msra.mxu0 %v2707
    %3578 = vmatpush.bf16.msra.mxu0 %v2699
    %3579 = vmatmul.bf16.gmra.mxu0 %v831
    %v3580 = vpop.f32.mrf.mxu0
    %v3581 = vadd.f32 %v3568, %v3580
    %v3582 = vpop.f32.mrf.mxu0
    %3583 = vdwg.mxu0
    %3584 = vmatpush.bf16.msra.mxu0 %v2819
    %3585 = vmatpush.bf16.msra.mxu0 %v2811
    %3586 = vmatpush.bf16.msra.mxu0 %v2803
    %3587 = vmatpush.bf16.msra.mxu0 %v2795
    %3588 = vmatpush.bf16.msra.mxu0 %v2787
    %3589 = vmatpush.bf16.msra.mxu0 %v2779
    %3590 = vmatpush.bf16.msra.mxu0 %v2771
    %3591 = vmatpush.bf16.msra.mxu0 %v2763
    %3592 = vmatmul.bf16.gmra.mxu0 %v832
    %v3593 = vpop.f32.mrf.mxu0
    %v3594 = vadd.f32 %v3581, %v3593
    %v3595 = vpop.f32.mrf.mxu0
    %3596 = vdwg.mxu0
    %3597 = vmatpush.bf16.msra.mxu0 %v2883
    %3598 = vmatpush.bf16.msra.mxu0 %v2875
    %3599 = vmatpush.bf16.msra.mxu0 %v2867
    %3600 = vmatpush.bf16.msra.mxu0 %v2859
    %3601 = vmatpush.bf16.msra.mxu0 %v2851
    %3602 = vmatpush.bf16.msra.mxu0 %v2843
    %3603 = vmatpush.bf16.msra.mxu0 %v2835
    %3604 = vmatpush.bf16.msra.mxu0 %v2827
    %3605 = vmatmul.bf16.gmra.mxu0 %v833
    %v3606 = vpop.f32.mrf.mxu0
    %v3607 = vadd.f32 %v3594, %v3606
    %v3608 = vpop.f32.mrf.mxu0
    %3609 = vdwg.mxu0
    %3610 = vmatpush.bf16.msra.mxu0 %v2436
    %3611 = vmatpush.bf16.msra.mxu0 %v2428
    %3612 = vmatpush.bf16.msra.mxu0 %v2420
    %3613 = vmatpush.bf16.msra.mxu0 %v2412
    %3614 = vmatpush.bf16.msra.mxu0 %v2404
    %3615 = vmatpush.bf16.msra.mxu0 %v2396
    %3616 = vmatpush.bf16.msra.mxu0 %v2388
    %3617 = vmatpush.bf16.msra.mxu0 %v2380
    %3618 = vmatmul.bf16.gmra.mxu0 %v826
    %v3619 = vpop.f32.mrf.mxu0
    %v3620 = vadd.f32 %v771, %v3619
    %v3621 = vpop.f32.mrf.mxu0
    %3622 = vdwg.mxu0
    %3623 = vmatpush.bf16.msra.mxu0 %v2500
    %3624 = vmatpush.bf16.msra.mxu0 %v2492
    %3625 = vmatpush.bf16.msra.mxu0 %v2484
    %3626 = vmatpush.bf16.msra.mxu0 %v2476
    %3627 = vmatpush.bf16.msra.mxu0 %v2468
    %3628 = vmatpush.bf16.msra.mxu0 %v2460
    %3629 = vmatpush.bf16.msra.mxu0 %v2452
    %3630 = vmatpush.bf16.msra.mxu0 %v2444
    %3631 = vmatmul.bf16.gmra.mxu0 %v827
    %v3632 = vpop.f32.mrf.mxu0
    %v3633 = vadd.f32 %v3620, %v3632
    %v3634 = vpop.f32.mrf.mxu0
    %3635 = vdwg.mxu0
    %3636 = vmatpush.bf16.msra.mxu0 %v2564
    %3637 = vmatpush.bf16.msra.mxu0 %v2556
    %3638 = vmatpush.bf16.msra.mxu0 %v2548
    %3639 = vmatpush.bf16.msra.mxu0 %v2540
    %3640 = vmatpush.bf16.msra.mxu0 %v2532
    %3641 = vmatpush.bf16.msra.mxu0 %v2524
    %3642 = vmatpush.bf16.msra.mxu0 %v2516
    %3643 = vmatpush.bf16.msra.mxu0 %v2508
    %3644 = vmatmul.bf16.gmra.mxu0 %v828
    %v3645 = vpop.f32.mrf.mxu0
    %v3646 = vadd.f32 %v3633, %v3645
    %v3647 = vpop.f32.mrf.mxu0
    %3648 = vdwg.mxu0
    %3649 = vmatpush.bf16.msra.mxu0 %v2628
    %3650 = vmatpush.bf16.msra.mxu0 %v2620
    %3651 = vmatpush.bf16.msra.mxu0 %v2612
    %3652 = vmatpush.bf16.msra.mxu0 %v2604
    %3653 = vmatpush.bf16.msra.mxu0 %v2596
    %3654 = vmatpush.bf16.msra.mxu0 %v2588
    %3655 = vmatpush.bf16.msra.mxu0 %v2580
    %3656 = vmatpush.bf16.msra.mxu0 %v2572
    %3657 = vmatmul.bf16.gmra.mxu0 %v829
    %v3658 = vpop.f32.mrf.mxu0
    %v3659 = vadd.f32 %v3646, %v3658
    %v3660 = vpop.f32.mrf.mxu0
    %3661 = vdwg.mxu0
    %3662 = vmatpush.bf16.msra.mxu0 %v2692
    %3663 = vmatpush.bf16.msra.mxu0 %v2684
    %3664 = vmatpush.bf16.msra.mxu0 %v2676
    %3665 = vmatpush.bf16.msra.mxu0 %v2668
    %3666 = vmatpush.bf16.msra.mxu0 %v2660
    %3667 = vmatpush.bf16.msra.mxu0 %v2652
    %3668 = vmatpush.bf16.msra.mxu0 %v2644
    %3669 = vmatpush.bf16.msra.mxu0 %v2636
    %3670 = vmatmul.bf16.gmra.mxu0 %v830
    %v3671 = vpop.f32.mrf.mxu0
    %v3672 = vadd.f32 %v3659, %v3671
    %v3673 = vpop.f32.mrf.mxu0
    %3674 = vdwg.mxu0
    %3675 = vmatpush.bf16.msra.mxu0 %v2756
    %3676 = vmatpush.bf16.msra.mxu0 %v2748
    %3677 = vmatpush.bf16.msra.mxu0 %v2740
    %3678 = vmatpush.bf16.msra.mxu0 %v2732
    %3679 = vmatpush.bf16.msra.mxu0 %v2724
    %3680 = vmatpush.bf16.msra.mxu0 %v2716
    %3681 = vmatpush.bf16.msra.mxu0 %v2708
    %3682 = vmatpush.bf16.msra.mxu0 %v2700
    %3683 = vmatmul.bf16.gmra.mxu0 %v831
    %v3684 = vpop.f32.mrf.mxu0
    %v3685 = vadd.f32 %v3672, %v3684
    %v3686 = vpop.f32.mrf.mxu0
    %3687 = vdwg.mxu0
    %3688 = vmatpush.bf16.msra.mxu0 %v2820
    %3689 = vmatpush.bf16.msra.mxu0 %v2812
    %3690 = vmatpush.bf16.msra.mxu0 %v2804
    %3691 = vmatpush.bf16.msra.mxu0 %v2796
    %3692 = vmatpush.bf16.msra.mxu0 %v2788
    %3693 = vmatpush.bf16.msra.mxu0 %v2780
    %3694 = vmatpush.bf16.msra.mxu0 %v2772
    %3695 = vmatpush.bf16.msra.mxu0 %v2764
    %3696 = vmatmul.bf16.gmra.mxu0 %v832
    %v3697 = vpop.f32.mrf.mxu0
    %v3698 = vadd.f32 %v3685, %v3697
    %v3699 = vpop.f32.mrf.mxu0
    %3700 = vdwg.mxu0
    %3701 = vmatpush.bf16.msra.mxu0 %v2884
    %3702 = vmatpush.bf16.msra.mxu0 %v2876
    %3703 = vmatpush.bf16.msra.mxu0 %v2868
    %3704 = vmatpush.bf16.msra.mxu0 %v2860
    %3705 = vmatpush.bf16.msra.mxu0 %v2852
    %3706 = vmatpush.bf16.msra.mxu0 %v2844
    %3707 = vmatpush.bf16.msra.mxu0 %v2836
    %3708 = vmatpush.bf16.msra.mxu0 %v2828
    %3709 = vmatmul.bf16.gmra.mxu0 %v833
    %v3710 = vpop.f32.mrf.mxu0
    %v3711 = vadd.f32 %v3698, %v3710
    %v3712 = vpop.f32.mrf.mxu0
    %3713 = vdwg.mxu0
    %3714 = vmatpush.bf16.msra.mxu0 %v2437
    %3715 = vmatpush.bf16.msra.mxu0 %v2429
    %3716 = vmatpush.bf16.msra.mxu0 %v2421
    %3717 = vmatpush.bf16.msra.mxu0 %v2413
    %3718 = vmatpush.bf16.msra.mxu0 %v2405
    %3719 = vmatpush.bf16.msra.mxu0 %v2397
    %3720 = vmatpush.bf16.msra.mxu0 %v2389
    %3721 = vmatpush.bf16.msra.mxu0 %v2381
    %3722 = vmatmul.bf16.gmra.mxu0 %v826
    %v3723 = vpop.f32.mrf.mxu0
    %v3724 = vadd.f32 %v772, %v3723
    %v3725 = vpop.f32.mrf.mxu0
    %3726 = vdwg.mxu0
    %3727 = vmatpush.bf16.msra.mxu0 %v2501
    %3728 = vmatpush.bf16.msra.mxu0 %v2493
    %3729 = vmatpush.bf16.msra.mxu0 %v2485
    %3730 = vmatpush.bf16.msra.mxu0 %v2477
    %3731 = vmatpush.bf16.msra.mxu0 %v2469
    %3732 = vmatpush.bf16.msra.mxu0 %v2461
    %3733 = vmatpush.bf16.msra.mxu0 %v2453
    %3734 = vmatpush.bf16.msra.mxu0 %v2445
    %3735 = vmatmul.bf16.gmra.mxu0 %v827
    %v3736 = vpop.f32.mrf.mxu0
    %v3737 = vadd.f32 %v3724, %v3736
    %v3738 = vpop.f32.mrf.mxu0
    %3739 = vdwg.mxu0
    %3740 = vmatpush.bf16.msra.mxu0 %v2565
    %3741 = vmatpush.bf16.msra.mxu0 %v2557
    %3742 = vmatpush.bf16.msra.mxu0 %v2549
    %3743 = vmatpush.bf16.msra.mxu0 %v2541
    %3744 = vmatpush.bf16.msra.mxu0 %v2533
    %3745 = vmatpush.bf16.msra.mxu0 %v2525
    %3746 = vmatpush.bf16.msra.mxu0 %v2517
    %3747 = vmatpush.bf16.msra.mxu0 %v2509
    %3748 = vmatmul.bf16.gmra.mxu0 %v828
    %v3749 = vpop.f32.mrf.mxu0
    %v3750 = vadd.f32 %v3737, %v3749
    %v3751 = vpop.f32.mrf.mxu0
    %3752 = vdwg.mxu0
    %3753 = vmatpush.bf16.msra.mxu0 %v2629
    %3754 = vmatpush.bf16.msra.mxu0 %v2621
    %3755 = vmatpush.bf16.msra.mxu0 %v2613
    %3756 = vmatpush.bf16.msra.mxu0 %v2605
    %3757 = vmatpush.bf16.msra.mxu0 %v2597
    %3758 = vmatpush.bf16.msra.mxu0 %v2589
    %3759 = vmatpush.bf16.msra.mxu0 %v2581
    %3760 = vmatpush.bf16.msra.mxu0 %v2573
    %3761 = vmatmul.bf16.gmra.mxu0 %v829
    %v3762 = vpop.f32.mrf.mxu0
    %v3763 = vadd.f32 %v3750, %v3762
    %v3764 = vpop.f32.mrf.mxu0
    %3765 = vdwg.mxu0
    %3766 = vmatpush.bf16.msra.mxu0 %v2693
    %3767 = vmatpush.bf16.msra.mxu0 %v2685
    %3768 = vmatpush.bf16.msra.mxu0 %v2677
    %3769 = vmatpush.bf16.msra.mxu0 %v2669
    %3770 = vmatpush.bf16.msra.mxu0 %v2661
    %3771 = vmatpush.bf16.msra.mxu0 %v2653
    %3772 = vmatpush.bf16.msra.mxu0 %v2645
    %3773 = vmatpush.bf16.msra.mxu0 %v2637
    %3774 = vmatmul.bf16.gmra.mxu0 %v830
    %v3775 = vpop.f32.mrf.mxu0
    %v3776 = vadd.f32 %v3763, %v3775
    %v3777 = vpop.f32.mrf.mxu0
    %3778 = vdwg.mxu0
    %3779 = vmatpush.bf16.msra.mxu0 %v2757
    %3780 = vmatpush.bf16.msra.mxu0 %v2749
    %3781 = vmatpush.bf16.msra.mxu0 %v2741
    %3782 = vmatpush.bf16.msra.mxu0 %v2733
    %3783 = vmatpush.bf16.msra.mxu0 %v2725
    %3784 = vmatpush.bf16.msra.mxu0 %v2717
    %3785 = vmatpush.bf16.msra.mxu0 %v2709
    %3786 = vmatpush.bf16.msra.mxu0 %v2701
    %3787 = vmatmul.bf16.gmra.mxu0 %v831
    %v3788 = vpop.f32.mrf.mxu0
    %v3789 = vadd.f32 %v3776, %v3788
    %v3790 = vpop.f32.mrf.mxu0
    %3791 = vdwg.mxu0
    %3792 = vmatpush.bf16.msra.mxu0 %v2821
    %3793 = vmatpush.bf16.msra.mxu0 %v2813
    %3794 = vmatpush.bf16.msra.mxu0 %v2805
    %3795 = vmatpush.bf16.msra.mxu0 %v2797
    %3796 = vmatpush.bf16.msra.mxu0 %v2789
    %3797 = vmatpush.bf16.msra.mxu0 %v2781
    %3798 = vmatpush.bf16.msra.mxu0 %v2773
    %3799 = vmatpush.bf16.msra.mxu0 %v2765
    %3800 = vmatmul.bf16.gmra.mxu0 %v832
    %v3801 = vpop.f32.mrf.mxu0
    %v3802 = vadd.f32 %v3789, %v3801
    %v3803 = vpop.f32.mrf.mxu0
    %3804 = vdwg.mxu0
    %3805 = vmatpush.bf16.msra.mxu0 %v2885
    %3806 = vmatpush.bf16.msra.mxu0 %v2877
    %3807 = vmatpush.bf16.msra.mxu0 %v2869
    %3808 = vmatpush.bf16.msra.mxu0 %v2861
    %3809 = vmatpush.bf16.msra.mxu0 %v2853
    %3810 = vmatpush.bf16.msra.mxu0 %v2845
    %3811 = vmatpush.bf16.msra.mxu0 %v2837
    %3812 = vmatpush.bf16.msra.mxu0 %v2829
    %3813 = vmatmul.bf16.gmra.mxu0 %v833
    %v3814 = vpop.f32.mrf.mxu0
    %v3815 = vadd.f32 %v3802, %v3814
    %v3816 = vpop.f32.mrf.mxu0
    %3817 = vdwg.mxu0
    %3818 = vmatpush.bf16.msra.mxu0 %v2438
    %3819 = vmatpush.bf16.msra.mxu0 %v2430
    %3820 = vmatpush.bf16.msra.mxu0 %v2422
    %3821 = vmatpush.bf16.msra.mxu0 %v2414
    %3822 = vmatpush.bf16.msra.mxu0 %v2406
    %3823 = vmatpush.bf16.msra.mxu0 %v2398
    %3824 = vmatpush.bf16.msra.mxu0 %v2390
    %3825 = vmatpush.bf16.msra.mxu0 %v2382
    %3826 = vmatmul.bf16.gmra.mxu0 %v826
    %v3827 = vpop.f32.mrf.mxu0
    %v3828 = vadd.f32 %v773, %v3827
    %v3829 = vpop.f32.mrf.mxu0
    %3830 = vdwg.mxu0
    %3831 = vmatpush.bf16.msra.mxu0 %v2502
    %3832 = vmatpush.bf16.msra.mxu0 %v2494
    %3833 = vmatpush.bf16.msra.mxu0 %v2486
    %3834 = vmatpush.bf16.msra.mxu0 %v2478
    %3835 = vmatpush.bf16.msra.mxu0 %v2470
    %3836 = vmatpush.bf16.msra.mxu0 %v2462
    %3837 = vmatpush.bf16.msra.mxu0 %v2454
    %3838 = vmatpush.bf16.msra.mxu0 %v2446
    %3839 = vmatmul.bf16.gmra.mxu0 %v827
    %v3840 = vpop.f32.mrf.mxu0
    %v3841 = vadd.f32 %v3828, %v3840
    %v3842 = vpop.f32.mrf.mxu0
    %3843 = vdwg.mxu0
    %3844 = vmatpush.bf16.msra.mxu0 %v2566
    %3845 = vmatpush.bf16.msra.mxu0 %v2558
    %3846 = vmatpush.bf16.msra.mxu0 %v2550
    %3847 = vmatpush.bf16.msra.mxu0 %v2542
    %3848 = vmatpush.bf16.msra.mxu0 %v2534
    %3849 = vmatpush.bf16.msra.mxu0 %v2526
    %3850 = vmatpush.bf16.msra.mxu0 %v2518
    %3851 = vmatpush.bf16.msra.mxu0 %v2510
    %3852 = vmatmul.bf16.gmra.mxu0 %v828
    %v3853 = vpop.f32.mrf.mxu0
    %v3854 = vadd.f32 %v3841, %v3853
    %v3855 = vpop.f32.mrf.mxu0
    %3856 = vdwg.mxu0
    %3857 = vmatpush.bf16.msra.mxu0 %v2630
    %3858 = vmatpush.bf16.msra.mxu0 %v2622
    %3859 = vmatpush.bf16.msra.mxu0 %v2614
    %3860 = vmatpush.bf16.msra.mxu0 %v2606
    %3861 = vmatpush.bf16.msra.mxu0 %v2598
    %3862 = vmatpush.bf16.msra.mxu0 %v2590
    %3863 = vmatpush.bf16.msra.mxu0 %v2582
    %3864 = vmatpush.bf16.msra.mxu0 %v2574
    %3865 = vmatmul.bf16.gmra.mxu0 %v829
    %v3866 = vpop.f32.mrf.mxu0
    %v3867 = vadd.f32 %v3854, %v3866
    %v3868 = vpop.f32.mrf.mxu0
    %3869 = vdwg.mxu0
    %3870 = vmatpush.bf16.msra.mxu0 %v2694
    %3871 = vmatpush.bf16.msra.mxu0 %v2686
    %3872 = vmatpush.bf16.msra.mxu0 %v2678
    %3873 = vmatpush.bf16.msra.mxu0 %v2670
    %3874 = vmatpush.bf16.msra.mxu0 %v2662
    %3875 = vmatpush.bf16.msra.mxu0 %v2654
    %3876 = vmatpush.bf16.msra.mxu0 %v2646
    %3877 = vmatpush.bf16.msra.mxu0 %v2638
    %3878 = vmatmul.bf16.gmra.mxu0 %v830
    %v3879 = vpop.f32.mrf.mxu0
    %v3880 = vadd.f32 %v3867, %v3879
    %v3881 = vpop.f32.mrf.mxu0
    %3882 = vdwg.mxu0
    %3883 = vmatpush.bf16.msra.mxu0 %v2758
    %3884 = vmatpush.bf16.msra.mxu0 %v2750
    %3885 = vmatpush.bf16.msra.mxu0 %v2742
    %3886 = vmatpush.bf16.msra.mxu0 %v2734
    %3887 = vmatpush.bf16.msra.mxu0 %v2726
    %3888 = vmatpush.bf16.msra.mxu0 %v2718
    %3889 = vmatpush.bf16.msra.mxu0 %v2710
    %3890 = vmatpush.bf16.msra.mxu0 %v2702
    %3891 = vmatmul.bf16.gmra.mxu0 %v831
    %v3892 = vpop.f32.mrf.mxu0
    %v3893 = vadd.f32 %v3880, %v3892
    %v3894 = vpop.f32.mrf.mxu0
    %3895 = vdwg.mxu0
    %3896 = vmatpush.bf16.msra.mxu0 %v2822
    %3897 = vmatpush.bf16.msra.mxu0 %v2814
    %3898 = vmatpush.bf16.msra.mxu0 %v2806
    %3899 = vmatpush.bf16.msra.mxu0 %v2798
    %3900 = vmatpush.bf16.msra.mxu0 %v2790
    %3901 = vmatpush.bf16.msra.mxu0 %v2782
    %3902 = vmatpush.bf16.msra.mxu0 %v2774
    %3903 = vmatpush.bf16.msra.mxu0 %v2766
    %3904 = vmatmul.bf16.gmra.mxu0 %v832
    %v3905 = vpop.f32.mrf.mxu0
    %v3906 = vadd.f32 %v3893, %v3905
    %v3907 = vpop.f32.mrf.mxu0
    %3908 = vdwg.mxu0
    %3909 = vmatpush.bf16.msra.mxu0 %v2886
    %3910 = vmatpush.bf16.msra.mxu0 %v2878
    %3911 = vmatpush.bf16.msra.mxu0 %v2870
    %3912 = vmatpush.bf16.msra.mxu0 %v2862
    %3913 = vmatpush.bf16.msra.mxu0 %v2854
    %3914 = vmatpush.bf16.msra.mxu0 %v2846
    %3915 = vmatpush.bf16.msra.mxu0 %v2838
    %3916 = vmatpush.bf16.msra.mxu0 %v2830
    %3917 = vmatmul.bf16.gmra.mxu0 %v833
    %v3918 = vpop.f32.mrf.mxu0
    %v3919 = vadd.f32 %v3906, %v3918
    %v3920 = vpop.f32.mrf.mxu0
    %3921 = vdwg.mxu0
    %3922 = vmatpush.bf16.msra.mxu0 %v2439
    %3923 = vmatpush.bf16.msra.mxu0 %v2431
    %3924 = vmatpush.bf16.msra.mxu0 %v2423
    %3925 = vmatpush.bf16.msra.mxu0 %v2415
    %3926 = vmatpush.bf16.msra.mxu0 %v2407
    %3927 = vmatpush.bf16.msra.mxu0 %v2399
    %3928 = vmatpush.bf16.msra.mxu0 %v2391
    %3929 = vmatpush.bf16.msra.mxu0 %v2383
    %3930 = vmatmul.bf16.gmra.mxu0 %v826
    %v3931 = vpop.f32.mrf.mxu0
    %v3932 = vadd.f32 %v774, %v3931
    %v3933 = vpop.f32.mrf.mxu0
    %3934 = vdwg.mxu0
    %3935 = vmatpush.bf16.msra.mxu0 %v2503
    %3936 = vmatpush.bf16.msra.mxu0 %v2495
    %3937 = vmatpush.bf16.msra.mxu0 %v2487
    %3938 = vmatpush.bf16.msra.mxu0 %v2479
    %3939 = vmatpush.bf16.msra.mxu0 %v2471
    %3940 = vmatpush.bf16.msra.mxu0 %v2463
    %3941 = vmatpush.bf16.msra.mxu0 %v2455
    %3942 = vmatpush.bf16.msra.mxu0 %v2447
    %3943 = vmatmul.bf16.gmra.mxu0 %v827
    %v3944 = vpop.f32.mrf.mxu0
    %v3945 = vadd.f32 %v3932, %v3944
    %v3946 = vpop.f32.mrf.mxu0
    %3947 = vdwg.mxu0
    %3948 = vmatpush.bf16.msra.mxu0 %v2567
    %3949 = vmatpush.bf16.msra.mxu0 %v2559
    %3950 = vmatpush.bf16.msra.mxu0 %v2551
    %3951 = vmatpush.bf16.msra.mxu0 %v2543
    %3952 = vmatpush.bf16.msra.mxu0 %v2535
    %3953 = vmatpush.bf16.msra.mxu0 %v2527
    %3954 = vmatpush.bf16.msra.mxu0 %v2519
    %3955 = vmatpush.bf16.msra.mxu0 %v2511
    %3956 = vmatmul.bf16.gmra.mxu0 %v828
    %v3957 = vpop.f32.mrf.mxu0
    %v3958 = vadd.f32 %v3945, %v3957
    %v3959 = vpop.f32.mrf.mxu0
    %3960 = vdwg.mxu0
    %3961 = vmatpush.bf16.msra.mxu0 %v2631
    %3962 = vmatpush.bf16.msra.mxu0 %v2623
    %3963 = vmatpush.bf16.msra.mxu0 %v2615
    %3964 = vmatpush.bf16.msra.mxu0 %v2607
    %3965 = vmatpush.bf16.msra.mxu0 %v2599
    %3966 = vmatpush.bf16.msra.mxu0 %v2591
    %3967 = vmatpush.bf16.msra.mxu0 %v2583
    %3968 = vmatpush.bf16.msra.mxu0 %v2575
    %3969 = vmatmul.bf16.gmra.mxu0 %v829
    %v3970 = vpop.f32.mrf.mxu0
    %v3971 = vadd.f32 %v3958, %v3970
    %v3972 = vpop.f32.mrf.mxu0
    %3973 = vdwg.mxu0
    %3974 = vmatpush.bf16.msra.mxu0 %v2695
    %3975 = vmatpush.bf16.msra.mxu0 %v2687
    %3976 = vmatpush.bf16.msra.mxu0 %v2679
    %3977 = vmatpush.bf16.msra.mxu0 %v2671
    %3978 = vmatpush.bf16.msra.mxu0 %v2663
    %3979 = vmatpush.bf16.msra.mxu0 %v2655
    %3980 = vmatpush.bf16.msra.mxu0 %v2647
    %3981 = vmatpush.bf16.msra.mxu0 %v2639
    %3982 = vmatmul.bf16.gmra.mxu0 %v830
    %v3983 = vpop.f32.mrf.mxu0
    %v3984 = vadd.f32 %v3971, %v3983
    %v3985 = vpop.f32.mrf.mxu0
    %3986 = vdwg.mxu0
    %3987 = vmatpush.bf16.msra.mxu0 %v2759
    %3988 = vmatpush.bf16.msra.mxu0 %v2751
    %3989 = vmatpush.bf16.msra.mxu0 %v2743
    %3990 = vmatpush.bf16.msra.mxu0 %v2735
    %3991 = vmatpush.bf16.msra.mxu0 %v2727
    %3992 = vmatpush.bf16.msra.mxu0 %v2719
    %3993 = vmatpush.bf16.msra.mxu0 %v2711
    %3994 = vmatpush.bf16.msra.mxu0 %v2703
    %3995 = vmatmul.bf16.gmra.mxu0 %v831
    %v3996 = vpop.f32.mrf.mxu0
    %v3997 = vadd.f32 %v3984, %v3996
    %v3998 = vpop.f32.mrf.mxu0
    %3999 = vdwg.mxu0
    %4000 = vmatpush.bf16.msra.mxu0 %v2823
    %4001 = vmatpush.bf16.msra.mxu0 %v2815
    %4002 = vmatpush.bf16.msra.mxu0 %v2807
    %4003 = vmatpush.bf16.msra.mxu0 %v2799
    %4004 = vmatpush.bf16.msra.mxu0 %v2791
    %4005 = vmatpush.bf16.msra.mxu0 %v2783
    %4006 = vmatpush.bf16.msra.mxu0 %v2775
    %4007 = vmatpush.bf16.msra.mxu0 %v2767
    %4008 = vmatmul.bf16.gmra.mxu0 %v832
    %v4009 = vpop.f32.mrf.mxu0
    %v4010 = vadd.f32 %v3997, %v4009
    %v4011 = vpop.f32.mrf.mxu0
    %4012 = vdwg.mxu0
    %4013 = vmatpush.bf16.msra.mxu0 %v2887
    %4014 = vmatpush.bf16.msra.mxu0 %v2879
    %4015 = vmatpush.bf16.msra.mxu0 %v2871
    %4016 = vmatpush.bf16.msra.mxu0 %v2863
    %4017 = vmatpush.bf16.msra.mxu0 %v2855
    %4018 = vmatpush.bf16.msra.mxu0 %v2847
    %4019 = vmatpush.bf16.msra.mxu0 %v2839
    %4020 = vmatpush.bf16.msra.mxu0 %v2831
    %4021 = vmatmul.bf16.gmra.mxu0 %v833
    %v4022 = vpop.f32.mrf.mxu0
    %v4023 = vadd.f32 %v4010, %v4022
    %v4024 = vpop.f32.mrf.mxu0
    %4025 = vdwg.mxu0
    %4026 = vmatpush.bf16.msra.mxu0 %v2440
    %4027 = vmatpush.bf16.msra.mxu0 %v2432
    %4028 = vmatpush.bf16.msra.mxu0 %v2424
    %4029 = vmatpush.bf16.msra.mxu0 %v2416
    %4030 = vmatpush.bf16.msra.mxu0 %v2408
    %4031 = vmatpush.bf16.msra.mxu0 %v2400
    %4032 = vmatpush.bf16.msra.mxu0 %v2392
    %4033 = vmatpush.bf16.msra.mxu0 %v2384
    %4034 = vmatmul.bf16.gmra.mxu0 %v826
    %v4035 = vpop.f32.mrf.mxu0
    %v4036 = vadd.f32 %v775, %v4035
    %v4037 = vpop.f32.mrf.mxu0
    %4038 = vdwg.mxu0
    %4039 = vmatpush.bf16.msra.mxu0 %v2504
    %4040 = vmatpush.bf16.msra.mxu0 %v2496
    %4041 = vmatpush.bf16.msra.mxu0 %v2488
    %4042 = vmatpush.bf16.msra.mxu0 %v2480
    %4043 = vmatpush.bf16.msra.mxu0 %v2472
    %4044 = vmatpush.bf16.msra.mxu0 %v2464
    %4045 = vmatpush.bf16.msra.mxu0 %v2456
    %4046 = vmatpush.bf16.msra.mxu0 %v2448
    %4047 = vmatmul.bf16.gmra.mxu0 %v827
    %v4048 = vpop.f32.mrf.mxu0
    %v4049 = vadd.f32 %v4036, %v4048
    %v4050 = vpop.f32.mrf.mxu0
    %4051 = vdwg.mxu0
    %4052 = vmatpush.bf16.msra.mxu0 %v2568
    %4053 = vmatpush.bf16.msra.mxu0 %v2560
    %4054 = vmatpush.bf16.msra.mxu0 %v2552
    %4055 = vmatpush.bf16.msra.mxu0 %v2544
    %4056 = vmatpush.bf16.msra.mxu0 %v2536
    %4057 = vmatpush.bf16.msra.mxu0 %v2528
    %4058 = vmatpush.bf16.msra.mxu0 %v2520
    %4059 = vmatpush.bf16.msra.mxu0 %v2512
    %4060 = vmatmul.bf16.gmra.mxu0 %v828
    %v4061 = vpop.f32.mrf.mxu0
    %v4062 = vadd.f32 %v4049, %v4061
    %v4063 = vpop.f32.mrf.mxu0
    %4064 = vdwg.mxu0
    %4065 = vmatpush.bf16.msra.mxu0 %v2632
    %4066 = vmatpush.bf16.msra.mxu0 %v2624
    %4067 = vmatpush.bf16.msra.mxu0 %v2616
    %4068 = vmatpush.bf16.msra.mxu0 %v2608
    %4069 = vmatpush.bf16.msra.mxu0 %v2600
    %4070 = vmatpush.bf16.msra.mxu0 %v2592
    %4071 = vmatpush.bf16.msra.mxu0 %v2584
    %4072 = vmatpush.bf16.msra.mxu0 %v2576
    %4073 = vmatmul.bf16.gmra.mxu0 %v829
    %v4074 = vpop.f32.mrf.mxu0
    %v4075 = vadd.f32 %v4062, %v4074
    %v4076 = vpop.f32.mrf.mxu0
    %4077 = vdwg.mxu0
    %4078 = vmatpush.bf16.msra.mxu0 %v2696
    %4079 = vmatpush.bf16.msra.mxu0 %v2688
    %4080 = vmatpush.bf16.msra.mxu0 %v2680
    %4081 = vmatpush.bf16.msra.mxu0 %v2672
    %4082 = vmatpush.bf16.msra.mxu0 %v2664
    %4083 = vmatpush.bf16.msra.mxu0 %v2656
    %4084 = vmatpush.bf16.msra.mxu0 %v2648
    %4085 = vmatpush.bf16.msra.mxu0 %v2640
    %4086 = vmatmul.bf16.gmra.mxu0 %v830
    %v4087 = vpop.f32.mrf.mxu0
    %v4088 = vadd.f32 %v4075, %v4087
    %v4089 = vpop.f32.mrf.mxu0
    %4090 = vdwg.mxu0
    %4091 = vmatpush.bf16.msra.mxu0 %v2760
    %4092 = vmatpush.bf16.msra.mxu0 %v2752
    %4093 = vmatpush.bf16.msra.mxu0 %v2744
    %4094 = vmatpush.bf16.msra.mxu0 %v2736
    %4095 = vmatpush.bf16.msra.mxu0 %v2728
    %4096 = vmatpush.bf16.msra.mxu0 %v2720
    %4097 = vmatpush.bf16.msra.mxu0 %v2712
    %4098 = vmatpush.bf16.msra.mxu0 %v2704
    %4099 = vmatmul.bf16.gmra.mxu0 %v831
    %v4100 = vpop.f32.mrf.mxu0
    %v4101 = vadd.f32 %v4088, %v4100
    %v4102 = vpop.f32.mrf.mxu0
    %4103 = vdwg.mxu0
    %4104 = vmatpush.bf16.msra.mxu0 %v2824
    %4105 = vmatpush.bf16.msra.mxu0 %v2816
    %4106 = vmatpush.bf16.msra.mxu0 %v2808
    %4107 = vmatpush.bf16.msra.mxu0 %v2800
    %4108 = vmatpush.bf16.msra.mxu0 %v2792
    %4109 = vmatpush.bf16.msra.mxu0 %v2784
    %4110 = vmatpush.bf16.msra.mxu0 %v2776
    %4111 = vmatpush.bf16.msra.mxu0 %v2768
    %4112 = vmatmul.bf16.gmra.mxu0 %v832
    %v4113 = vpop.f32.mrf.mxu0
    %v4114 = vadd.f32 %v4101, %v4113
    %v4115 = vpop.f32.mrf.mxu0
    %4116 = vdwg.mxu0
    %4117 = vmatpush.bf16.msra.mxu0 %v2888
    %4118 = vmatpush.bf16.msra.mxu0 %v2880
    %4119 = vmatpush.bf16.msra.mxu0 %v2872
    %4120 = vmatpush.bf16.msra.mxu0 %v2864
    %4121 = vmatpush.bf16.msra.mxu0 %v2856
    %4122 = vmatpush.bf16.msra.mxu0 %v2848
    %4123 = vmatpush.bf16.msra.mxu0 %v2840
    %4124 = vmatpush.bf16.msra.mxu0 %v2832
    %4125 = vmatmul.bf16.gmra.mxu0 %v833
    %v4126 = vpop.f32.mrf.mxu0
    %v4127 = vadd.f32 %v4114, %v4126
    %v4128 = vpop.f32.mrf.mxu0
    %4129 = vdwg.mxu0
    %4130 = vmatpush.bf16.msra.mxu0 %v2441
    %4131 = vmatpush.bf16.msra.mxu0 %v2433
    %4132 = vmatpush.bf16.msra.mxu0 %v2425
    %4133 = vmatpush.bf16.msra.mxu0 %v2417
    %4134 = vmatpush.bf16.msra.mxu0 %v2409
    %4135 = vmatpush.bf16.msra.mxu0 %v2401
    %4136 = vmatpush.bf16.msra.mxu0 %v2393
    %4137 = vmatpush.bf16.msra.mxu0 %v2385
    %4138 = vmatmul.bf16.gmra.mxu0 %v826
    %v4139 = vpop.f32.mrf.mxu0
    %v4140 = vadd.f32 %v776, %v4139
    %v4141 = vpop.f32.mrf.mxu0
    %4142 = vdwg.mxu0
    %4143 = vmatpush.bf16.msra.mxu0 %v2505
    %4144 = vmatpush.bf16.msra.mxu0 %v2497
    %4145 = vmatpush.bf16.msra.mxu0 %v2489
    %4146 = vmatpush.bf16.msra.mxu0 %v2481
    %4147 = vmatpush.bf16.msra.mxu0 %v2473
    %4148 = vmatpush.bf16.msra.mxu0 %v2465
    %4149 = vmatpush.bf16.msra.mxu0 %v2457
    %4150 = vmatpush.bf16.msra.mxu0 %v2449
    %4151 = vmatmul.bf16.gmra.mxu0 %v827
    %v4152 = vpop.f32.mrf.mxu0
    %v4153 = vadd.f32 %v4140, %v4152
    %v4154 = vpop.f32.mrf.mxu0
    %4155 = vdwg.mxu0
    %4156 = vmatpush.bf16.msra.mxu0 %v2569
    %4157 = vmatpush.bf16.msra.mxu0 %v2561
    %4158 = vmatpush.bf16.msra.mxu0 %v2553
    %4159 = vmatpush.bf16.msra.mxu0 %v2545
    %4160 = vmatpush.bf16.msra.mxu0 %v2537
    %4161 = vmatpush.bf16.msra.mxu0 %v2529
    %4162 = vmatpush.bf16.msra.mxu0 %v2521
    %4163 = vmatpush.bf16.msra.mxu0 %v2513
    %4164 = vmatmul.bf16.gmra.mxu0 %v828
    %v4165 = vpop.f32.mrf.mxu0
    %v4166 = vadd.f32 %v4153, %v4165
    %v4167 = vpop.f32.mrf.mxu0
    %4168 = vdwg.mxu0
    %4169 = vmatpush.bf16.msra.mxu0 %v2633
    %4170 = vmatpush.bf16.msra.mxu0 %v2625
    %4171 = vmatpush.bf16.msra.mxu0 %v2617
    %4172 = vmatpush.bf16.msra.mxu0 %v2609
    %4173 = vmatpush.bf16.msra.mxu0 %v2601
    %4174 = vmatpush.bf16.msra.mxu0 %v2593
    %4175 = vmatpush.bf16.msra.mxu0 %v2585
    %4176 = vmatpush.bf16.msra.mxu0 %v2577
    %4177 = vmatmul.bf16.gmra.mxu0 %v829
    %v4178 = vpop.f32.mrf.mxu0
    %v4179 = vadd.f32 %v4166, %v4178
    %v4180 = vpop.f32.mrf.mxu0
    %4181 = vdwg.mxu0
    %4182 = vmatpush.bf16.msra.mxu0 %v2697
    %4183 = vmatpush.bf16.msra.mxu0 %v2689
    %4184 = vmatpush.bf16.msra.mxu0 %v2681
    %4185 = vmatpush.bf16.msra.mxu0 %v2673
    %4186 = vmatpush.bf16.msra.mxu0 %v2665
    %4187 = vmatpush.bf16.msra.mxu0 %v2657
    %4188 = vmatpush.bf16.msra.mxu0 %v2649
    %4189 = vmatpush.bf16.msra.mxu0 %v2641
    %4190 = vmatmul.bf16.gmra.mxu0 %v830
    %v4191 = vpop.f32.mrf.mxu0
    %v4192 = vadd.f32 %v4179, %v4191
    %v4193 = vpop.f32.mrf.mxu0
    %4194 = vdwg.mxu0
    %4195 = vmatpush.bf16.msra.mxu0 %v2761
    %4196 = vmatpush.bf16.msra.mxu0 %v2753
    %4197 = vmatpush.bf16.msra.mxu0 %v2745
    %4198 = vmatpush.bf16.msra.mxu0 %v2737
    %4199 = vmatpush.bf16.msra.mxu0 %v2729
    %4200 = vmatpush.bf16.msra.mxu0 %v2721
    %4201 = vmatpush.bf16.msra.mxu0 %v2713
    %4202 = vmatpush.bf16.msra.mxu0 %v2705
    %4203 = vmatmul.bf16.gmra.mxu0 %v831
    %v4204 = vpop.f32.mrf.mxu0
    %v4205 = vadd.f32 %v4192, %v4204
    %v4206 = vpop.f32.mrf.mxu0
    %4207 = vdwg.mxu0
    %4208 = vmatpush.bf16.msra.mxu0 %v2825
    %4209 = vmatpush.bf16.msra.mxu0 %v2817
    %4210 = vmatpush.bf16.msra.mxu0 %v2809
    %4211 = vmatpush.bf16.msra.mxu0 %v2801
    %4212 = vmatpush.bf16.msra.mxu0 %v2793
    %4213 = vmatpush.bf16.msra.mxu0 %v2785
    %4214 = vmatpush.bf16.msra.mxu0 %v2777
    %4215 = vmatpush.bf16.msra.mxu0 %v2769
    %4216 = vmatmul.bf16.gmra.mxu0 %v832
    %v4217 = vpop.f32.mrf.mxu0
    %v4218 = vadd.f32 %v4205, %v4217
    %v4219 = vpop.f32.mrf.mxu0
    %4220 = vdwg.mxu0
    %4221 = vmatpush.bf16.msra.mxu0 %v2889
    %4222 = vmatpush.bf16.msra.mxu0 %v2881
    %4223 = vmatpush.bf16.msra.mxu0 %v2873
    %4224 = vmatpush.bf16.msra.mxu0 %v2865
    %4225 = vmatpush.bf16.msra.mxu0 %v2857
    %4226 = vmatpush.bf16.msra.mxu0 %v2849
    %4227 = vmatpush.bf16.msra.mxu0 %v2841
    %4228 = vmatpush.bf16.msra.mxu0 %v2833
    %4229 = vmatmul.bf16.gmra.mxu0 %v833
    %v4230 = vpop.f32.mrf.mxu0
    %v4231 = vadd.f32 %v4218, %v4230
    %v4232 = vpop.f32.mrf.mxu0
    %4233 = vdwg.mxu0
    %v4234 = vmax.f32 %v3503, 0.0
    %v4235 = vmax.f32 %v3607, 0.0
    %v4236 = vmax.f32 %v3711, 0.0
    %v4237 = vmax.f32 %v3815, 0.0
    %v4238 = vmax.f32 %v3919, 0.0
    %v4239 = vmax.f32 %v4023, 0.0
    %v4240 = vmax.f32 %v4127, 0.0
    %v4241 = vmax.f32 %v4231, 0.0
    %v4242 = vpack.c.bf16 %v4234, %v4234
    %v4243 = vpack.c.bf16 %v4235, %v4235
    %v4244 = vpack.c.bf16 %v4236, %v4236
    %v4245 = vpack.c.bf16 %v4237, %v4237
    %v4246 = vpack.c.bf16 %v4238, %v4238
    %v4247 = vpack.c.bf16 %v4239, %v4239
    %v4248 = vpack.c.bf16 %v4240, %v4240
    %v4249 = vpack.c.bf16 %v4241, %v4241
    %v4250 = vld [vmem:[#allocation8] sm:$0xf]
    %v4251 = vld [vmem:[#allocation8 + $0x4] sm:$0xf]
    %v4252 = vld [vmem:[#allocation8 + $0x8] sm:$0xf]
    %v4253 = vld [vmem:[#allocation8 + $0xc] sm:$0xf]
    %v4254 = vld [vmem:[#allocation8 + $0x10] sm:$0xf]
    %v4255 = vld [vmem:[#allocation8 + $0x14] sm:$0xf]
    %v4256 = vld [vmem:[#allocation8 + $0x18] sm:$0xf]
    %v4257 = vld [vmem:[#allocation8 + $0x1c] sm:$0xf]
    %v4258 = vld [vmem:[#allocation8 + $0x20] sm:$0xf]
    %v4259 = vld [vmem:[#allocation8 + $0x24] sm:$0xf]
    %v4260 = vld [vmem:[#allocation8 + $0x28] sm:$0xf]
    %v4261 = vld [vmem:[#allocation8 + $0x2c] sm:$0xf]
    %v4262 = vld [vmem:[#allocation8 + $0x30] sm:$0xf]
    %v4263 = vld [vmem:[#allocation8 + $0x34] sm:$0xf]
    %v4264 = vld [vmem:[#allocation8 + $0x38] sm:$0xf]
    %v4265 = vld [vmem:[#allocation8 + $0x3c] sm:$0xf]
    %v4266 = vld [vmem:[#allocation8 + $0x40] sm:$0xf]
    %v4267 = vld [vmem:[#allocation8 + $0x44] sm:$0xf]
    %v4268 = vld [vmem:[#allocation8 + $0x48] sm:$0xf]
    %v4269 = vld [vmem:[#allocation8 + $0x4c] sm:$0xf]
    %v4270 = vld [vmem:[#allocation8 + $0x50] sm:$0xf]
    %v4271 = vld [vmem:[#allocation8 + $0x54] sm:$0xf]
    %v4272 = vld [vmem:[#allocation8 + $0x58] sm:$0xf]
    %v4273 = vld [vmem:[#allocation8 + $0x5c] sm:$0xf]
    %v4274 = vld [vmem:[#allocation8 + $0x60] sm:$0xf]
    %v4275 = vld [vmem:[#allocation8 + $0x64] sm:$0xf]
    %v4276 = vld [vmem:[#allocation8 + $0x68] sm:$0xf]
    %v4277 = vld [vmem:[#allocation8 + $0x6c] sm:$0xf]
    %v4278 = vld [vmem:[#allocation8 + $0x70] sm:$0xf]
    %v4279 = vld [vmem:[#allocation8 + $0x74] sm:$0xf]
    %v4280 = vld [vmem:[#allocation8 + $0x78] sm:$0xf]
    %v4281 = vld [vmem:[#allocation8 + $0x7c] sm:$0xf]
    %v4282 = vld [vmem:[#allocation8 + $0x80] sm:$0xf]
    %v4283 = vld [vmem:[#allocation8 + $0x84] sm:$0xf]
    %v4284 = vld [vmem:[#allocation8 + $0x88] sm:$0xf]
    %v4285 = vld [vmem:[#allocation8 + $0x8c] sm:$0xf]
    %v4286 = vld [vmem:[#allocation8 + $0x90] sm:$0xf]
    %v4287 = vld [vmem:[#allocation8 + $0x94] sm:$0xf]
    %v4288 = vld [vmem:[#allocation8 + $0x98] sm:$0xf]
    %v4289 = vld [vmem:[#allocation8 + $0x9c] sm:$0xf]
    %v4290 = vld [vmem:[#allocation8 + $0xa0] sm:$0xf]
    %v4291 = vld [vmem:[#allocation8 + $0xa4] sm:$0xf]
    %v4292 = vld [vmem:[#allocation8 + $0xa8] sm:$0xf]
    %v4293 = vld [vmem:[#allocation8 + $0xac] sm:$0xf]
    %v4294 = vld [vmem:[#allocation8 + $0xb0] sm:$0xf]
    %v4295 = vld [vmem:[#allocation8 + $0xb4] sm:$0xf]
    %v4296 = vld [vmem:[#allocation8 + $0xb8] sm:$0xf]
    %v4297 = vld [vmem:[#allocation8 + $0xbc] sm:$0xf]
    %v4298 = vld [vmem:[#allocation8 + $0xc0] sm:$0xf]
    %v4299 = vld [vmem:[#allocation8 + $0xc4] sm:$0xf]
    %v4300 = vld [vmem:[#allocation8 + $0xc8] sm:$0xf]
    %v4301 = vld [vmem:[#allocation8 + $0xcc] sm:$0xf]
    %v4302 = vld [vmem:[#allocation8 + $0xd0] sm:$0xf]
    %v4303 = vld [vmem:[#allocation8 + $0xd4] sm:$0xf]
    %v4304 = vld [vmem:[#allocation8 + $0xd8] sm:$0xf]
    %v4305 = vld [vmem:[#allocation8 + $0xdc] sm:$0xf]
    %v4306 = vld [vmem:[#allocation8 + $0xe0] sm:$0xf]
    %v4307 = vld [vmem:[#allocation8 + $0xe4] sm:$0xf]
    %v4308 = vld [vmem:[#allocation8 + $0xe8] sm:$0xf]
    %v4309 = vld [vmem:[#allocation8 + $0xec] sm:$0xf]
    %v4310 = vld [vmem:[#allocation8 + $0xf0] sm:$0xf]
    %v4311 = vld [vmem:[#allocation8 + $0xf4] sm:$0xf]
    %v4312 = vld [vmem:[#allocation8 + $0xf8] sm:$0xf]
    %v4313 = vld [vmem:[#allocation8 + $0xfc] sm:$0xf]
    %v4314 = vld [vmem:[#allocation8 + $0x100] sm:$0xf]
    %v4315 = vld [vmem:[#allocation8 + $0x104] sm:$0xf]
    %v4316 = vld [vmem:[#allocation8 + $0x108] sm:$0xf]
    %v4317 = vld [vmem:[#allocation8 + $0x10c] sm:$0xf]
    %v4318 = vld [vmem:[#allocation8 + $0x110] sm:$0xf]
    %v4319 = vld [vmem:[#allocation8 + $0x114] sm:$0xf]
    %v4320 = vld [vmem:[#allocation8 + $0x118] sm:$0xf]
    %v4321 = vld [vmem:[#allocation8 + $0x11c] sm:$0xf]
    %v4322 = vld [vmem:[#allocation8 + $0x120] sm:$0xf]
    %v4323 = vld [vmem:[#allocation8 + $0x124] sm:$0xf]
    %v4324 = vld [vmem:[#allocation8 + $0x128] sm:$0xf]
    %v4325 = vld [vmem:[#allocation8 + $0x12c] sm:$0xf]
    %v4326 = vld [vmem:[#allocation8 + $0x130] sm:$0xf]
    %v4327 = vld [vmem:[#allocation8 + $0x134] sm:$0xf]
    %v4328 = vld [vmem:[#allocation8 + $0x138] sm:$0xf]
    %v4329 = vld [vmem:[#allocation8 + $0x13c] sm:$0xf]
    %v4330 = vld [vmem:[#allocation8 + $0x140] sm:$0xf]
    %v4331 = vld [vmem:[#allocation8 + $0x144] sm:$0xf]
    %v4332 = vld [vmem:[#allocation8 + $0x148] sm:$0xf]
    %v4333 = vld [vmem:[#allocation8 + $0x14c] sm:$0xf]
    %v4334 = vld [vmem:[#allocation8 + $0x150] sm:$0xf]
    %v4335 = vld [vmem:[#allocation8 + $0x154] sm:$0xf]
    %v4336 = vld [vmem:[#allocation8 + $0x158] sm:$0xf]
    %v4337 = vld [vmem:[#allocation8 + $0x15c] sm:$0xf]
    %v4338 = vld [vmem:[#allocation8 + $0x160] sm:$0xf]
    %v4339 = vld [vmem:[#allocation8 + $0x164] sm:$0xf]
    %v4340 = vld [vmem:[#allocation8 + $0x168] sm:$0xf]
    %v4341 = vld [vmem:[#allocation8 + $0x16c] sm:$0xf]
    %v4342 = vld [vmem:[#allocation8 + $0x170] sm:$0xf]
    %v4343 = vld [vmem:[#allocation8 + $0x174] sm:$0xf]
    %v4344 = vld [vmem:[#allocation8 + $0x178] sm:$0xf]
    %v4345 = vld [vmem:[#allocation8 + $0x17c] sm:$0xf]
    %v4346 = vld [vmem:[#allocation8 + $0x180] sm:$0xf]
    %v4347 = vld [vmem:[#allocation8 + $0x184] sm:$0xf]
    %v4348 = vld [vmem:[#allocation8 + $0x188] sm:$0xf]
    %v4349 = vld [vmem:[#allocation8 + $0x18c] sm:$0xf]
    %v4350 = vld [vmem:[#allocation8 + $0x190] sm:$0xf]
    %v4351 = vld [vmem:[#allocation8 + $0x194] sm:$0xf]
    %v4352 = vld [vmem:[#allocation8 + $0x198] sm:$0xf]
    %v4353 = vld [vmem:[#allocation8 + $0x19c] sm:$0xf]
    %v4354 = vld [vmem:[#allocation8 + $0x1a0] sm:$0xf]
    %v4355 = vld [vmem:[#allocation8 + $0x1a4] sm:$0xf]
    %v4356 = vld [vmem:[#allocation8 + $0x1a8] sm:$0xf]
    %v4357 = vld [vmem:[#allocation8 + $0x1ac] sm:$0xf]
    %v4358 = vld [vmem:[#allocation8 + $0x1b0] sm:$0xf]
    %v4359 = vld [vmem:[#allocation8 + $0x1b4] sm:$0xf]
    %v4360 = vld [vmem:[#allocation8 + $0x1b8] sm:$0xf]
    %v4361 = vld [vmem:[#allocation8 + $0x1bc] sm:$0xf]
    %v4362 = vld [vmem:[#allocation8 + $0x1c0] sm:$0xf]
    %v4363 = vld [vmem:[#allocation8 + $0x1c4] sm:$0xf]
    %v4364 = vld [vmem:[#allocation8 + $0x1c8] sm:$0xf]
    %v4365 = vld [vmem:[#allocation8 + $0x1cc] sm:$0xf]
    %v4366 = vld [vmem:[#allocation8 + $0x1d0] sm:$0xf]
    %v4367 = vld [vmem:[#allocation8 + $0x1d4] sm:$0xf]
    %v4368 = vld [vmem:[#allocation8 + $0x1d8] sm:$0xf]
    %v4369 = vld [vmem:[#allocation8 + $0x1dc] sm:$0xf]
    %v4370 = vld [vmem:[#allocation8 + $0x1e0] sm:$0xf]
    %v4371 = vld [vmem:[#allocation8 + $0x1e4] sm:$0xf]
    %v4372 = vld [vmem:[#allocation8 + $0x1e8] sm:$0xf]
    %v4373 = vld [vmem:[#allocation8 + $0x1ec] sm:$0xf]
    %v4374 = vld [vmem:[#allocation8 + $0x1f0] sm:$0xf]
    %v4375 = vld [vmem:[#allocation8 + $0x1f4] sm:$0xf]
    %v4376 = vld [vmem:[#allocation8 + $0x1f8] sm:$0xf]
    %v4377 = vld [vmem:[#allocation8 + $0x1fc] sm:$0xf]
    %v4378 = vld [vmem:[#allocation10] sm:$0x1]
    %v4380 = vperm.slane %v4378, 0
    %v4510 = vunpack.c.l.b16 %v4250
    %v4511 = vunpack.c.l.b16 %v4251
    %v4512 = vunpack.c.l.b16 %v4252
    %v4513 = vunpack.c.l.b16 %v4253
    %v4514 = vunpack.c.l.b16 %v4254
    %v4515 = vunpack.c.l.b16 %v4255
    %v4516 = vunpack.c.l.b16 %v4256
    %v4517 = vunpack.c.l.b16 %v4257
    %v4518 = vunpack.c.l.b16 %v4258
    %v4519 = vunpack.c.l.b16 %v4259
    %v4520 = vunpack.c.l.b16 %v4260
    %v4521 = vunpack.c.l.b16 %v4261
    %v4522 = vunpack.c.l.b16 %v4262
    %v4523 = vunpack.c.l.b16 %v4263
    %v4524 = vunpack.c.l.b16 %v4264
    %v4525 = vunpack.c.l.b16 %v4265
    %v4526 = vunpack.c.l.b16 %v4266
    %v4527 = vunpack.c.l.b16 %v4267
    %v4528 = vunpack.c.l.b16 %v4268
    %v4529 = vunpack.c.l.b16 %v4269
    %v4530 = vunpack.c.l.b16 %v4270
    %v4531 = vunpack.c.l.b16 %v4271
    %v4532 = vunpack.c.l.b16 %v4272
    %v4533 = vunpack.c.l.b16 %v4273
    %v4534 = vunpack.c.l.b16 %v4274
    %v4535 = vunpack.c.l.b16 %v4275
    %v4536 = vunpack.c.l.b16 %v4276
    %v4537 = vunpack.c.l.b16 %v4277
    %v4538 = vunpack.c.l.b16 %v4278
    %v4539 = vunpack.c.l.b16 %v4279
    %v4540 = vunpack.c.l.b16 %v4280
    %v4541 = vunpack.c.l.b16 %v4281
    %v4542 = vunpack.c.l.b16 %v4282
    %v4543 = vunpack.c.l.b16 %v4283
    %v4544 = vunpack.c.l.b16 %v4284
    %v4545 = vunpack.c.l.b16 %v4285
    %v4546 = vunpack.c.l.b16 %v4286
    %v4547 = vunpack.c.l.b16 %v4287
    %v4548 = vunpack.c.l.b16 %v4288
    %v4549 = vunpack.c.l.b16 %v4289
    %v4550 = vunpack.c.l.b16 %v4290
    %v4551 = vunpack.c.l.b16 %v4291
    %v4552 = vunpack.c.l.b16 %v4292
    %v4553 = vunpack.c.l.b16 %v4293
    %v4554 = vunpack.c.l.b16 %v4294
    %v4555 = vunpack.c.l.b16 %v4295
    %v4556 = vunpack.c.l.b16 %v4296
    %v4557 = vunpack.c.l.b16 %v4297
    %v4558 = vunpack.c.l.b16 %v4298
    %v4559 = vunpack.c.l.b16 %v4299
    %v4560 = vunpack.c.l.b16 %v4300
    %v4561 = vunpack.c.l.b16 %v4301
    %v4562 = vunpack.c.l.b16 %v4302
    %v4563 = vunpack.c.l.b16 %v4303
    %v4564 = vunpack.c.l.b16 %v4304
    %v4565 = vunpack.c.l.b16 %v4305
    %v4566 = vunpack.c.l.b16 %v4306
    %v4567 = vunpack.c.l.b16 %v4307
    %v4568 = vunpack.c.l.b16 %v4308
    %v4569 = vunpack.c.l.b16 %v4309
    %v4570 = vunpack.c.l.b16 %v4310
    %v4571 = vunpack.c.l.b16 %v4311
    %v4572 = vunpack.c.l.b16 %v4312
    %v4573 = vunpack.c.l.b16 %v4313
    %v4574 = vunpack.c.l.b16 %v4314
    %v4575 = vunpack.c.l.b16 %v4315
    %v4576 = vunpack.c.l.b16 %v4316
    %v4577 = vunpack.c.l.b16 %v4317
    %v4578 = vunpack.c.l.b16 %v4318
    %v4579 = vunpack.c.l.b16 %v4319
    %v4580 = vunpack.c.l.b16 %v4320
    %v4581 = vunpack.c.l.b16 %v4321
    %v4582 = vunpack.c.l.b16 %v4322
    %v4583 = vunpack.c.l.b16 %v4323
    %v4584 = vunpack.c.l.b16 %v4324
    %v4585 = vunpack.c.l.b16 %v4325
    %v4586 = vunpack.c.l.b16 %v4326
    %v4587 = vunpack.c.l.b16 %v4327
    %v4588 = vunpack.c.l.b16 %v4328
    %v4589 = vunpack.c.l.b16 %v4329
    %v4590 = vunpack.c.l.b16 %v4330
    %v4591 = vunpack.c.l.b16 %v4331
    %v4592 = vunpack.c.l.b16 %v4332
    %v4593 = vunpack.c.l.b16 %v4333
    %v4594 = vunpack.c.l.b16 %v4334
    %v4595 = vunpack.c.l.b16 %v4335
    %v4596 = vunpack.c.l.b16 %v4336
    %v4597 = vunpack.c.l.b16 %v4337
    %v4598 = vunpack.c.l.b16 %v4338
    %v4599 = vunpack.c.l.b16 %v4339
    %v4600 = vunpack.c.l.b16 %v4340
    %v4601 = vunpack.c.l.b16 %v4341
    %v4602 = vunpack.c.l.b16 %v4342
    %v4603 = vunpack.c.l.b16 %v4343
    %v4604 = vunpack.c.l.b16 %v4344
    %v4605 = vunpack.c.l.b16 %v4345
    %v4606 = vunpack.c.l.b16 %v4346
    %v4607 = vunpack.c.l.b16 %v4347
    %v4608 = vunpack.c.l.b16 %v4348
    %v4609 = vunpack.c.l.b16 %v4349
    %v4610 = vunpack.c.l.b16 %v4350
    %v4611 = vunpack.c.l.b16 %v4351
    %v4612 = vunpack.c.l.b16 %v4352
    %v4613 = vunpack.c.l.b16 %v4353
    %v4614 = vunpack.c.l.b16 %v4354
    %v4615 = vunpack.c.l.b16 %v4355
    %v4616 = vunpack.c.l.b16 %v4356
    %v4617 = vunpack.c.l.b16 %v4357
    %v4618 = vunpack.c.l.b16 %v4358
    %v4619 = vunpack.c.l.b16 %v4359
    %v4620 = vunpack.c.l.b16 %v4360
    %v4621 = vunpack.c.l.b16 %v4361
    %v4622 = vunpack.c.l.b16 %v4362
    %v4623 = vunpack.c.l.b16 %v4363
    %v4624 = vunpack.c.l.b16 %v4364
    %v4625 = vunpack.c.l.b16 %v4365
    %v4626 = vunpack.c.l.b16 %v4366
    %v4627 = vunpack.c.l.b16 %v4367
    %v4628 = vunpack.c.l.b16 %v4368
    %v4629 = vunpack.c.l.b16 %v4369
    %v4630 = vunpack.c.l.b16 %v4370
    %v4631 = vunpack.c.l.b16 %v4371
    %v4632 = vunpack.c.l.b16 %v4372
    %v4633 = vunpack.c.l.b16 %v4373
    %v4634 = vunpack.c.l.b16 %v4374
    %v4635 = vunpack.c.l.b16 %v4375
    %v4636 = vunpack.c.l.b16 %v4376
    %v4637 = vunpack.c.l.b16 %v4377
    %v4638 = vpack.c.b16 %v4511, %v4510
    %v4639 = vpack.c.b16 %v4513, %v4512
    %v4640 = vpack.c.b16 %v4515, %v4514
    %v4641 = vpack.c.b16 %v4517, %v4516
    %v4642 = vpack.c.b16 %v4519, %v4518
    %v4643 = vpack.c.b16 %v4521, %v4520
    %v4644 = vpack.c.b16 %v4523, %v4522
    %v4645 = vpack.c.b16 %v4525, %v4524
    %v4646 = vpack.c.b16 %v4527, %v4526
    %v4647 = vpack.c.b16 %v4529, %v4528
    %v4648 = vpack.c.b16 %v4531, %v4530
    %v4649 = vpack.c.b16 %v4533, %v4532
    %v4650 = vpack.c.b16 %v4535, %v4534
    %v4651 = vpack.c.b16 %v4537, %v4536
    %v4652 = vpack.c.b16 %v4539, %v4538
    %v4653 = vpack.c.b16 %v4541, %v4540
    %v4654 = vpack.c.b16 %v4543, %v4542
    %v4655 = vpack.c.b16 %v4545, %v4544
    %v4656 = vpack.c.b16 %v4547, %v4546
    %v4657 = vpack.c.b16 %v4549, %v4548
    %v4658 = vpack.c.b16 %v4551, %v4550
    %v4659 = vpack.c.b16 %v4553, %v4552
    %v4660 = vpack.c.b16 %v4555, %v4554
    %v4661 = vpack.c.b16 %v4557, %v4556
    %v4662 = vpack.c.b16 %v4559, %v4558
    %v4663 = vpack.c.b16 %v4561, %v4560
    %v4664 = vpack.c.b16 %v4563, %v4562
    %v4665 = vpack.c.b16 %v4565, %v4564
    %v4666 = vpack.c.b16 %v4567, %v4566
    %v4667 = vpack.c.b16 %v4569, %v4568
    %v4668 = vpack.c.b16 %v4571, %v4570
    %v4669 = vpack.c.b16 %v4573, %v4572
    %v4670 = vpack.c.b16 %v4575, %v4574
    %v4671 = vpack.c.b16 %v4577, %v4576
    %v4672 = vpack.c.b16 %v4579, %v4578
    %v4673 = vpack.c.b16 %v4581, %v4580
    %v4674 = vpack.c.b16 %v4583, %v4582
    %v4675 = vpack.c.b16 %v4585, %v4584
    %v4676 = vpack.c.b16 %v4587, %v4586
    %v4677 = vpack.c.b16 %v4589, %v4588
    %v4678 = vpack.c.b16 %v4591, %v4590
    %v4679 = vpack.c.b16 %v4593, %v4592
    %v4680 = vpack.c.b16 %v4595, %v4594
    %v4681 = vpack.c.b16 %v4597, %v4596
    %v4682 = vpack.c.b16 %v4599, %v4598
    %v4683 = vpack.c.b16 %v4601, %v4600
    %v4684 = vpack.c.b16 %v4603, %v4602
    %v4685 = vpack.c.b16 %v4605, %v4604
    %v4686 = vpack.c.b16 %v4607, %v4606
    %v4687 = vpack.c.b16 %v4609, %v4608
    %v4688 = vpack.c.b16 %v4611, %v4610
    %v4689 = vpack.c.b16 %v4613, %v4612
    %v4690 = vpack.c.b16 %v4615, %v4614
    %v4691 = vpack.c.b16 %v4617, %v4616
    %v4692 = vpack.c.b16 %v4619, %v4618
    %v4693 = vpack.c.b16 %v4621, %v4620
    %v4694 = vpack.c.b16 %v4623, %v4622
    %v4695 = vpack.c.b16 %v4625, %v4624
    %v4696 = vpack.c.b16 %v4627, %v4626
    %v4697 = vpack.c.b16 %v4629, %v4628
    %v4698 = vpack.c.b16 %v4631, %v4630
    %v4699 = vpack.c.b16 %v4633, %v4632
    %v4700 = vpack.c.b16 %v4635, %v4634
    %v4701 = vpack.c.b16 %v4637, %v4636
    %4766 = vmatpush.bf16.msra.mxu0 %v4645
    %4767 = vmatpush.bf16.msra.mxu0 %v4644
    %4768 = vmatpush.bf16.msra.mxu0 %v4643
    %4769 = vmatpush.bf16.msra.mxu0 %v4642
    %4770 = vmatpush.bf16.msra.mxu0 %v4641
    %4771 = vmatpush.bf16.msra.mxu0 %v4640
    %4772 = vmatpush.bf16.msra.mxu0 %v4639
    %4773 = vmatpush.bf16.msra.mxu0 %v4638
    %4774 = vmatmul.bf16.gmra.mxu0 %v4242
    %v4775 = vpop.f32.mrf.mxu0
    %v4776 = vadd.f32 %v4380, %v4775
    %v4777 = vpop.f32.mrf.mxu0
    %4778 = vdwg.mxu0
    %4779 = vmatpush.bf16.msra.mxu0 %v4653
    %4780 = vmatpush.bf16.msra.mxu0 %v4652
    %4781 = vmatpush.bf16.msra.mxu0 %v4651
    %4782 = vmatpush.bf16.msra.mxu0 %v4650
    %4783 = vmatpush.bf16.msra.mxu0 %v4649
    %4784 = vmatpush.bf16.msra.mxu0 %v4648
    %4785 = vmatpush.bf16.msra.mxu0 %v4647
    %4786 = vmatpush.bf16.msra.mxu0 %v4646
    %4787 = vmatmul.bf16.gmra.mxu0 %v4243
    %v4788 = vpop.f32.mrf.mxu0
    %v4789 = vadd.f32 %v4776, %v4788
    %v4790 = vpop.f32.mrf.mxu0
    %4791 = vdwg.mxu0
    %4792 = vmatpush.bf16.msra.mxu0 %v4661
    %4793 = vmatpush.bf16.msra.mxu0 %v4660
    %4794 = vmatpush.bf16.msra.mxu0 %v4659
    %4795 = vmatpush.bf16.msra.mxu0 %v4658
    %4796 = vmatpush.bf16.msra.mxu0 %v4657
    %4797 = vmatpush.bf16.msra.mxu0 %v4656
    %4798 = vmatpush.bf16.msra.mxu0 %v4655
    %4799 = vmatpush.bf16.msra.mxu0 %v4654
    %4800 = vmatmul.bf16.gmra.mxu0 %v4244
    %v4801 = vpop.f32.mrf.mxu0
    %v4802 = vadd.f32 %v4789, %v4801
    %v4803 = vpop.f32.mrf.mxu0
    %4804 = vdwg.mxu0
    %4805 = vmatpush.bf16.msra.mxu0 %v4669
    %4806 = vmatpush.bf16.msra.mxu0 %v4668
    %4807 = vmatpush.bf16.msra.mxu0 %v4667
    %4808 = vmatpush.bf16.msra.mxu0 %v4666
    %4809 = vmatpush.bf16.msra.mxu0 %v4665
    %4810 = vmatpush.bf16.msra.mxu0 %v4664
    %4811 = vmatpush.bf16.msra.mxu0 %v4663
    %4812 = vmatpush.bf16.msra.mxu0 %v4662
    %4813 = vmatmul.bf16.gmra.mxu0 %v4245
    %v4814 = vpop.f32.mrf.mxu0
    %v4815 = vadd.f32 %v4802, %v4814
    %v4816 = vpop.f32.mrf.mxu0
    %4817 = vdwg.mxu0
    %4818 = vmatpush.bf16.msra.mxu0 %v4677
    %4819 = vmatpush.bf16.msra.mxu0 %v4676
    %4820 = vmatpush.bf16.msra.mxu0 %v4675
    %4821 = vmatpush.bf16.msra.mxu0 %v4674
    %4822 = vmatpush.bf16.msra.mxu0 %v4673
    %4823 = vmatpush.bf16.msra.mxu0 %v4672
    %4824 = vmatpush.bf16.msra.mxu0 %v4671
    %4825 = vmatpush.bf16.msra.mxu0 %v4670
    %4826 = vmatmul.bf16.gmra.mxu0 %v4246
    %v4827 = vpop.f32.mrf.mxu0
    %v4828 = vadd.f32 %v4815, %v4827
    %v4829 = vpop.f32.mrf.mxu0
    %4830 = vdwg.mxu0
    %4831 = vmatpush.bf16.msra.mxu0 %v4685
    %4832 = vmatpush.bf16.msra.mxu0 %v4684
    %4833 = vmatpush.bf16.msra.mxu0 %v4683
    %4834 = vmatpush.bf16.msra.mxu0 %v4682
    %4835 = vmatpush.bf16.msra.mxu0 %v4681
    %4836 = vmatpush.bf16.msra.mxu0 %v4680
    %4837 = vmatpush.bf16.msra.mxu0 %v4679
    %4838 = vmatpush.bf16.msra.mxu0 %v4678
    %4839 = vmatmul.bf16.gmra.mxu0 %v4247
    %v4840 = vpop.f32.mrf.mxu0
    %v4841 = vadd.f32 %v4828, %v4840
    %v4842 = vpop.f32.mrf.mxu0
    %4843 = vdwg.mxu0
    %4844 = vmatpush.bf16.msra.mxu0 %v4693
    %4845 = vmatpush.bf16.msra.mxu0 %v4692
    %4846 = vmatpush.bf16.msra.mxu0 %v4691
    %4847 = vmatpush.bf16.msra.mxu0 %v4690
    %4848 = vmatpush.bf16.msra.mxu0 %v4689
    %4849 = vmatpush.bf16.msra.mxu0 %v4688
    %4850 = vmatpush.bf16.msra.mxu0 %v4687
    %4851 = vmatpush.bf16.msra.mxu0 %v4686
    %4852 = vmatmul.bf16.gmra.mxu0 %v4248
    %v4853 = vpop.f32.mrf.mxu0
    %v4854 = vadd.f32 %v4841, %v4853
    %v4855 = vpop.f32.mrf.mxu0
    %4856 = vdwg.mxu0
    %4857 = vmatpush.bf16.msra.mxu0 %v4701
    %4858 = vmatpush.bf16.msra.mxu0 %v4700
    %4859 = vmatpush.bf16.msra.mxu0 %v4699
    %4860 = vmatpush.bf16.msra.mxu0 %v4698
    %4861 = vmatpush.bf16.msra.mxu0 %v4697
    %4862 = vmatpush.bf16.msra.mxu0 %v4696
    %4863 = vmatpush.bf16.msra.mxu0 %v4695
    %4864 = vmatpush.bf16.msra.mxu0 %v4694
    %4865 = vmatmul.bf16.gmra.mxu0 %v4249
    %v4866 = vpop.f32.mrf.mxu0
    %v4867 = vadd.f32 %v4854, %v4866
    %v4868 = vpop.f32.mrf.mxu0
    %4869 = vdwg.mxu0
    %4870 = vst [vmem:[#allocation11] sm:$0x3] %v4867
    // Predicated region
    $region42: #{tpu_custom_call.1} parent=1 // pred_check
      _
    $region43: #{tpu_custom_call.1} parent=1 // pred_check_branch
      %4872 = sbr.rel (0) target = $region45
    $region44: #{tpu_custom_call.1} parent=1 // pred_region
      %4874 = vsyncadd [#allocation4], 0
      %s4876 = sshll.u32 [#allocation11], 4
      %s4877 = int_to_ptr.vmem [resolvable:$true] %s4876
      %s4878 = sshll.u32 %s5, 4
      %s4879 = int_to_ptr.hbm [resolvable:$true] %s4878
      %4881 = dma.vmem_to_hbm [thread:$0]  %s4877, 32, %s4879, [#allocation4]
    $region45: #{tpu_custom_call.1} parent=1 // pred_fallthru
      _
    // Predicated region
    $region46: #{tpu_custom_call.1} parent=1 // pred_check
      _
    $region47: #{tpu_custom_call.1} parent=1 // pred_check_branch
      %4883 = sbr.rel (0) target = $region49
    $region48: #{tpu_custom_call.1} parent=1 // pred_region
      %4885 = dma.done [#allocation4], 32
    $region49: #{tpu_custom_call.1} parent=1 // pred_fallthru
      _
    %4886 = vsyncpa [#allocation3], 1
    %4887 = vsyncpa [#allocation6], 1
    %4888 = vsyncpa [#allocation9], 1
    %4889 = vsyncpa [#allocation4], 1

</llo_original>
